<compile_context>
chip_gen: v5e
topology: v5e:2x2
jax: 0.10.0
libtpu: 0.0.40
codegen_flags: <defaults>
</compile_context>

<pallas_src>
import jax
import jax.numpy as jnp
from jax.experimental import pallas as pl
from jax.experimental.pallas import tpu as pltpu

TB = 8  # images per grid step


# ------------------------------ fused kernel -------------------------------

def _cnn_fused_kernel(x_ref, w1e_ref, w1o_ref, b1_ref, w2e_ref, w2o_ref, b2_ref,
                      wfc_ref, bfc_ref, o_ref):
    tb = x_ref.shape[0]
    x = x_ref[...].astype(jnp.float32)                        # (TB, 28, 28)

    # ---- conv1 (5x5, 1->16) + bias + ReLU + horizontal 2x max -------------
    # H-strip row (b, y) holds input rows y..y+4 flattened: K = 5*28 = 140.
    strips1 = jnp.concatenate([x[:, i:i + 24, :] for i in range(5)], axis=-1)
    s1 = strips1.reshape(tb * 24, 5 * 28).astype(jnp.bfloat16)  # (TB*24, 140)
    a1e = jnp.dot(s1, w1e_ref[...], preferred_element_type=jnp.float32)  # even x
    a1o = jnp.dot(s1, w1o_ref[...], preferred_element_type=jnp.float32)  # odd  x
    h1 = jnp.maximum(jnp.maximum(a1e, a1o) + b1_ref[...], 0.0)   # (TB*24, 192)
    h1 = h1.reshape(tb, 24, 192)

    # ---- vertical half of maxpool1: max over adjacent conv1 rows ----------
    p1 = [jnp.maximum(h1[:, 2 * y, :], h1[:, 2 * y + 1, :]).astype(jnp.bfloat16)
          for y in range(12)]                                   # 12 x (TB, 192)

    # ---- conv2 (5x5, 16->32) + bias + ReLU + horizontal 2x max ------------
    h2 = []
    for y2 in range(8):
        strip = jnp.concatenate([p1[y2 + i] for i in range(5)], axis=-1)  # (TB, 960)
        a2e = jnp.dot(strip, w2e_ref[...], preferred_element_type=jnp.float32)
        a2o = jnp.dot(strip, w2o_ref[...], preferred_element_type=jnp.float32)
        h2.append(jnp.maximum(jnp.maximum(a2e, a2o) + b2_ref[...], 0.0))  # (TB, 128)

    # ---- vertical half of maxpool2 + fc1 ----------------------------------
    q = [jnp.maximum(h2[2 * y], h2[2 * y + 1]).astype(jnp.bfloat16) for y in range(4)]
    flat = jnp.concatenate(q, axis=-1)                          # (TB, 512)
    logits = jnp.dot(flat, wfc_ref[...], preferred_element_type=jnp.float32)
    o_ref[...] = (logits + bfc_ref[...]).astype(o_ref.dtype)


# -------------------------- one-time weight repack --------------------------

def prepare_params(params):
    """Repack PyTorch-layout weights into the fused-kernel layout (hoisted)."""
    w1, b1, w2, b2, wfc, bfc = params
    f32, bf16 = jnp.float32, jnp.bfloat16
    w1 = w1.astype(f32); w2 = w2.astype(f32); wfc = wfc.astype(f32)

    # conv1 strip matmul: row k = i*28 + u, col q = X*16 + co (X = pooled x pair).
    ki = jnp.arange(5 * 28)
    i1, u1 = ki // 28, ki % 28
    q1 = jnp.arange(12 * 16)
    X1, c1 = q1 // 16, q1 % 16
    w1s = w1[:, 0]                                              # (16, 5, 5)

    def build_w1(parity):
        j = u1[:, None] - (2 * X1 + parity)[None, :]            # (140, 192)
        valid = (j >= 0) & (j < 5)
        vals = w1s[c1[None, :], i1[:, None], jnp.clip(j, 0, 4)]
        return jnp.where(valid, vals, 0.0).astype(bf16)

    w1e, w1o = build_w1(0), build_w1(1)
    b1t = jnp.tile(b1.astype(f32), 12).reshape(1, 192)

    # conv2 per-row matmul: row k = i*192 + X*16 + ci, col q = X2*32 + co.
    k2 = jnp.arange(5 * 192)
    i2 = k2 // 192
    r2 = k2 % 192
    Xin, ci2 = r2 // 16, r2 % 16
    q2 = jnp.arange(4 * 32)
    Xout, co2 = q2 // 32, q2 % 32

    def build_w2(parity):
        j = Xin[:, None] - (2 * Xout + parity)[None, :]         # (960, 128)
        valid = (j >= 0) & (j < 5)
        vals = w2[co2[None, :], ci2[:, None], i2[:, None], jnp.clip(j, 0, 4)]
        return jnp.where(valid, vals, 0.0).astype(bf16)

    w2e, w2o = build_w2(0), build_w2(1)
    b2t = jnp.tile(b2.astype(f32), 4).reshape(1, 128)

    # fc1: kernel flat index m = Y2*128 + X2*32 + co; torch .view index is
    # co*16 + Y2*4 + X2.  Fold the permutation and the transpose into the weight.
    m = jnp.arange(512)
    Y2 = m // 128
    t = m % 128
    X2f, cof = t // 32, t % 32
    wfc_r = wfc[:, cof * 16 + Y2 * 4 + X2f].T.astype(bf16)      # (512, 10)
    bfc2 = bfc.astype(f32).reshape(1, 10)

    return (w1e, w1o, b1t, w2e, w2o, b2t, wfc_r, bfc2)


# --------------------------------- forward ----------------------------------

@jax.jit
def cnn_forward(x_nchw, prepped):
    w1e, w1o, b1t, w2e, w2o, b2t, wfc_r, bfc2 = prepped
    B = x_nchw.shape[0]
    assert x_nchw.shape[1:] == (1, 28, 28)
    x = x_nchw.reshape(B, 28, 28).astype(jnp.bfloat16)
    Bp = -(-B // TB) * TB
    if Bp != B:
        x = jnp.pad(x, ((0, Bp - B), (0, 0), (0, 0)))
    out = pl.pallas_call(
        _cnn_fused_kernel,
        out_shape=jax.ShapeDtypeStruct((Bp, 10), jnp.float32),
        grid=(Bp // TB,),
        in_specs=[
            pl.BlockSpec((TB, 28, 28), lambda b: (b, 0, 0)),   # input images
            pl.BlockSpec((140, 192), lambda b: (0, 0)),        # conv1 even-x
            pl.BlockSpec((140, 192), lambda b: (0, 0)),        # conv1 odd-x
            pl.BlockSpec((1, 192), lambda b: (0, 0)),          # conv1 bias (tiled)
            pl.BlockSpec((960, 128), lambda b: (0, 0)),        # conv2 even-x
            pl.BlockSpec((960, 128), lambda b: (0, 0)),        # conv2 odd-x
            pl.BlockSpec((1, 128), lambda b: (0, 0)),          # conv2 bias (tiled)
            pl.BlockSpec((512, 10), lambda b: (0, 0)),         # fc weight (permuted)
            pl.BlockSpec((1, 10), lambda b: (0, 0)),           # fc bias
        ],
        out_specs=pl.BlockSpec((TB, 10), lambda b: (b, 0)),
        compiler_params=pltpu.CompilerParams(
            dimension_semantics=("parallel",),
            vmem_limit_bytes=32 * 1024 * 1024,
        ),
    )(x, w1e, w1o, b1t, w2e, w2o, b2t, wfc_r, bfc2)
    return out[:B]


# --------------------------- reference + example -----------------------------

def init_params(key):
    k1, k2, k3, k4, k5, k6 = jax.random.split(key, 6)
    w1 = jax.random.normal(k1, (16, 1, 5, 5), jnp.float32) * 0.1
    b1 = jax.random.normal(k2, (16,), jnp.float32) * 0.1
    w2 = jax.random.normal(k3, (32, 16, 5, 5), jnp.float32) * 0.05
    b2 = jax.random.normal(k4, (32,), jnp.float32) * 0.05
    wfc = jax.random.normal(k5, (10, 32 * 4 * 4), jnp.float32) * 0.05
    bfc = jax.random.normal(k6, (10,), jnp.float32) * 0.05
    return (w1, b1, w2, b2, wfc, bfc)


def _reference_forward(x_nchw, params):
    w1, b1, w2, b2, wfc, bfc = params

    def conv(x, w, b):
        y = jax.lax.conv_general_dilated(
            x, w, (1, 1), 'VALID', dimension_numbers=('NCHW', 'OIHW', 'NCHW'))
        return jax.nn.relu(y + b[None, :, None, None])

    def pool(x):
        return jax.lax.reduce_window(x, -jnp.inf, jax.lax.max,
                                     (1, 1, 2, 2), (1, 1, 2, 2), 'VALID')

    h = pool(conv(x_nchw, w1, b1))
    h = pool(conv(h, w2, b2))
    flat = h.reshape(h.shape[0], -1)
    return flat @ wfc.T + bfc


if __name__ == "__main__":
    key = jax.random.PRNGKey(0)
    pkey, xkey = jax.random.split(key)
    raw_params = init_params(pkey)
    prepped = prepare_params(raw_params)
    # fc1 in_features = 32*4*4 forces 28x28 spatial input.
    x = jax.random.normal(xkey, (2, 1, 28, 28), jnp.float32)

    logits = cnn_forward(x, prepped)
    logits = jax.block_until_ready(logits)
    assert logits.shape == (2, 10) and logits.dtype == jnp.float32

    ref = _reference_forward(x, raw_params)
    err = float(jnp.max(jnp.abs(logits - ref)))
    assert err < 0.15, f"mismatch vs reference: {err}"
    print("KERNEL_OK")
</pallas_src>

<mosaic_0001>
module attributes {stable_mosaic.version = 11 : i64} {
  func.func @_cnn_fused_kernel(%arg0: i32, %arg1: memref<8x28x28xbf16, #tpu.memory_space<vmem>>, %arg2: memref<140x192xbf16, #tpu.memory_space<vmem>>, %arg3: memref<140x192xbf16, #tpu.memory_space<vmem>>, %arg4: memref<1x192xf32, #tpu.memory_space<vmem>>, %arg5: memref<960x128xbf16, #tpu.memory_space<vmem>>, %arg6: memref<960x128xbf16, #tpu.memory_space<vmem>>, %arg7: memref<1x128xf32, #tpu.memory_space<vmem>>, %arg8: memref<512x10xbf16, #tpu.memory_space<vmem>>, %arg9: memref<1x10xf32, #tpu.memory_space<vmem>>, %arg10: memref<8x10xf32, #tpu.memory_space<vmem>>) attributes {dimension_semantics = [#tpu.dimension_semantics<parallel>], iteration_bounds = array<i64: 1>, scalar_prefetch = 0 : i64, scratch_operands = 0 : i64, tpu.core_type = #tpu.core_type<tc>, window_params = [{transform_indices = @transform_0, window_bounds = array<i64: 8, 28, 28>}, {pipeline_mode = #tpu.pipeline_mode<synchronous>, transform_indices = @transform_1, window_bounds = array<i64: 140, 192>}, {pipeline_mode = #tpu.pipeline_mode<synchronous>, transform_indices = @transform_2, window_bounds = array<i64: 140, 192>}, {pipeline_mode = #tpu.pipeline_mode<synchronous>, transform_indices = @transform_3, window_bounds = array<i64: 1, 192>}, {pipeline_mode = #tpu.pipeline_mode<synchronous>, transform_indices = @transform_4, window_bounds = array<i64: 960, 128>}, {pipeline_mode = #tpu.pipeline_mode<synchronous>, transform_indices = @transform_5, window_bounds = array<i64: 960, 128>}, {pipeline_mode = #tpu.pipeline_mode<synchronous>, transform_indices = @transform_6, window_bounds = array<i64: 1, 128>}, {pipeline_mode = #tpu.pipeline_mode<synchronous>, transform_indices = @transform_7, window_bounds = array<i64: 512, 10>}, {pipeline_mode = #tpu.pipeline_mode<synchronous>, transform_indices = @transform_8, window_bounds = array<i64: 1, 10>}, {transform_indices = @transform_9, window_bounds = array<i64: 8, 10>}]} {
    %c0 = arith.constant 0 : index
    %c0_0 = arith.constant 0 : index
    %c0_1 = arith.constant 0 : index
    %0 = vector.load %arg1[%c0, %c0_0, %c0_1] : memref<8x28x28xbf16, #tpu.memory_space<vmem>>, vector<8x28x28xbf16>
    %1 = arith.extf %0 : vector<8x28x28xbf16> to vector<8x28x28xf32>
    %2 = vector.extract_strided_slice %1 {offsets = [0, 0, 0], sizes = [8, 24, 28], strides = [1, 1, 1]} : vector<8x28x28xf32> to vector<8x24x28xf32>
    %3 = vector.extract_strided_slice %1 {offsets = [0, 1, 0], sizes = [8, 24, 28], strides = [1, 1, 1]} : vector<8x28x28xf32> to vector<8x24x28xf32>
    %4 = vector.extract_strided_slice %1 {offsets = [0, 2, 0], sizes = [8, 24, 28], strides = [1, 1, 1]} : vector<8x28x28xf32> to vector<8x24x28xf32>
    %5 = vector.extract_strided_slice %1 {offsets = [0, 3, 0], sizes = [8, 24, 28], strides = [1, 1, 1]} : vector<8x28x28xf32> to vector<8x24x28xf32>
    %6 = vector.extract_strided_slice %1 {offsets = [0, 4, 0], sizes = [8, 24, 28], strides = [1, 1, 1]} : vector<8x28x28xf32> to vector<8x24x28xf32>
    %7 = tpu.concatenate %2, %3, %4, %5, %6 in 2 : vector<8x24x28xf32>, vector<8x24x28xf32>, vector<8x24x28xf32>, vector<8x24x28xf32>, vector<8x24x28xf32> -> vector<8x24x140xf32>
    %8 = vector.shape_cast %7 : vector<8x24x140xf32> to vector<192x140xf32>
    %9 = arith.truncf %8 : vector<192x140xf32> to vector<192x140xbf16>
    %c0_2 = arith.constant 0 : index
    %c0_3 = arith.constant 0 : index
    %10 = vector.load %arg2[%c0_2, %c0_3] : memref<140x192xbf16, #tpu.memory_space<vmem>>, vector<140x192xbf16>
    %cst = arith.constant dense<0.000000e+00> : vector<192x192xf32>
    %11 = tpu.matmul %9, %10, %cst {dimension_numbers = #tpu.dot_dimension_numbers<[1], [0], [0], [1], [0, 0, 1, 1], [], []>} : vector<192x140xbf16>, vector<140x192xbf16>, vector<192x192xf32> -> vector<192x192xf32>
    %c0_4 = arith.constant 0 : index
    %c0_5 = arith.constant 0 : index
    %12 = vector.load %arg3[%c0_4, %c0_5] : memref<140x192xbf16, #tpu.memory_space<vmem>>, vector<140x192xbf16>
    %cst_6 = arith.constant dense<0.000000e+00> : vector<192x192xf32>
    %13 = tpu.matmul %9, %12, %cst_6 {dimension_numbers = #tpu.dot_dimension_numbers<[1], [0], [0], [1], [0, 0, 1, 1], [], []>} : vector<192x140xbf16>, vector<140x192xbf16>, vector<192x192xf32> -> vector<192x192xf32>
    %14 = arith.maximumf %11, %13 : vector<192x192xf32>
    %c0_7 = arith.constant 0 : index
    %c0_8 = arith.constant 0 : index
    %15 = vector.load %arg4[%c0_7, %c0_8] : memref<1x192xf32, #tpu.memory_space<vmem>>, vector<1x192xf32>
    %16 = vector.broadcast %15 : vector<1x192xf32> to vector<192x192xf32>
    %17 = arith.addf %14, %16 : vector<192x192xf32>
    %cst_9 = arith.constant 0.000000e+00 : f32
    %18 = vector.broadcast %cst_9 : f32 to vector<192x192xf32>
    %19 = arith.maximumf %17, %18 : vector<192x192xf32>
    %20 = vector.shape_cast %19 : vector<192x192xf32> to vector<8x24x192xf32>
    %21 = vector.extract_strided_slice %20 {offsets = [0, 0, 0], sizes = [8, 1, 192], strides = [1, 1, 1]} : vector<8x24x192xf32> to vector<8x1x192xf32>
    %22 = vector.shape_cast %21 : vector<8x1x192xf32> to vector<8x192xf32>
    %23 = vector.extract_strided_slice %20 {offsets = [0, 1, 0], sizes = [8, 1, 192], strides = [1, 1, 1]} : vector<8x24x192xf32> to vector<8x1x192xf32>
    %24 = vector.shape_cast %23 : vector<8x1x192xf32> to vector<8x192xf32>
    %25 = arith.maximumf %22, %24 : vector<8x192xf32>
    %26 = arith.truncf %25 : vector<8x192xf32> to vector<8x192xbf16>
    %27 = vector.extract_strided_slice %20 {offsets = [0, 2, 0], sizes = [8, 1, 192], strides = [1, 1, 1]} : vector<8x24x192xf32> to vector<8x1x192xf32>
    %28 = vector.shape_cast %27 : vector<8x1x192xf32> to vector<8x192xf32>
    %29 = vector.extract_strided_slice %20 {offsets = [0, 3, 0], sizes = [8, 1, 192], strides = [1, 1, 1]} : vector<8x24x192xf32> to vector<8x1x192xf32>
    %30 = vector.shape_cast %29 : vector<8x1x192xf32> to vector<8x192xf32>
    %31 = arith.maximumf %28, %30 : vector<8x192xf32>
    %32 = arith.truncf %31 : vector<8x192xf32> to vector<8x192xbf16>
    %33 = vector.extract_strided_slice %20 {offsets = [0, 4, 0], sizes = [8, 1, 192], strides = [1, 1, 1]} : vector<8x24x192xf32> to vector<8x1x192xf32>
    %34 = vector.shape_cast %33 : vector<8x1x192xf32> to vector<8x192xf32>
    %35 = vector.extract_strided_slice %20 {offsets = [0, 5, 0], sizes = [8, 1, 192], strides = [1, 1, 1]} : vector<8x24x192xf32> to vector<8x1x192xf32>
    %36 = vector.shape_cast %35 : vector<8x1x192xf32> to vector<8x192xf32>
    %37 = arith.maximumf %34, %36 : vector<8x192xf32>
    %38 = arith.truncf %37 : vector<8x192xf32> to vector<8x192xbf16>
    %39 = vector.extract_strided_slice %20 {offsets = [0, 6, 0], sizes = [8, 1, 192], strides = [1, 1, 1]} : vector<8x24x192xf32> to vector<8x1x192xf32>
    %40 = vector.shape_cast %39 : vector<8x1x192xf32> to vector<8x192xf32>
    %41 = vector.extract_strided_slice %20 {offsets = [0, 7, 0], sizes = [8, 1, 192], strides = [1, 1, 1]} : vector<8x24x192xf32> to vector<8x1x192xf32>
    %42 = vector.shape_cast %41 : vector<8x1x192xf32> to vector<8x192xf32>
    %43 = arith.maximumf %40, %42 : vector<8x192xf32>
    %44 = arith.truncf %43 : vector<8x192xf32> to vector<8x192xbf16>
    %45 = vector.extract_strided_slice %20 {offsets = [0, 8, 0], sizes = [8, 1, 192], strides = [1, 1, 1]} : vector<8x24x192xf32> to vector<8x1x192xf32>
    %46 = vector.shape_cast %45 : vector<8x1x192xf32> to vector<8x192xf32>
    %47 = vector.extract_strided_slice %20 {offsets = [0, 9, 0], sizes = [8, 1, 192], strides = [1, 1, 1]} : vector<8x24x192xf32> to vector<8x1x192xf32>
    %48 = vector.shape_cast %47 : vector<8x1x192xf32> to vector<8x192xf32>
    %49 = arith.maximumf %46, %48 : vector<8x192xf32>
    %50 = arith.truncf %49 : vector<8x192xf32> to vector<8x192xbf16>
    %51 = vector.extract_strided_slice %20 {offsets = [0, 10, 0], sizes = [8, 1, 192], strides = [1, 1, 1]} : vector<8x24x192xf32> to vector<8x1x192xf32>
    %52 = vector.shape_cast %51 : vector<8x1x192xf32> to vector<8x192xf32>
    %53 = vector.extract_strided_slice %20 {offsets = [0, 11, 0], sizes = [8, 1, 192], strides = [1, 1, 1]} : vector<8x24x192xf32> to vector<8x1x192xf32>
    %54 = vector.shape_cast %53 : vector<8x1x192xf32> to vector<8x192xf32>
    %55 = arith.maximumf %52, %54 : vector<8x192xf32>
    %56 = arith.truncf %55 : vector<8x192xf32> to vector<8x192xbf16>
    %57 = vector.extract_strided_slice %20 {offsets = [0, 12, 0], sizes = [8, 1, 192], strides = [1, 1, 1]} : vector<8x24x192xf32> to vector<8x1x192xf32>
    %58 = vector.shape_cast %57 : vector<8x1x192xf32> to vector<8x192xf32>
    %59 = vector.extract_strided_slice %20 {offsets = [0, 13, 0], sizes = [8, 1, 192], strides = [1, 1, 1]} : vector<8x24x192xf32> to vector<8x1x192xf32>
    %60 = vector.shape_cast %59 : vector<8x1x192xf32> to vector<8x192xf32>
    %61 = arith.maximumf %58, %60 : vector<8x192xf32>
    %62 = arith.truncf %61 : vector<8x192xf32> to vector<8x192xbf16>
    %63 = vector.extract_strided_slice %20 {offsets = [0, 14, 0], sizes = [8, 1, 192], strides = [1, 1, 1]} : vector<8x24x192xf32> to vector<8x1x192xf32>
    %64 = vector.shape_cast %63 : vector<8x1x192xf32> to vector<8x192xf32>
    %65 = vector.extract_strided_slice %20 {offsets = [0, 15, 0], sizes = [8, 1, 192], strides = [1, 1, 1]} : vector<8x24x192xf32> to vector<8x1x192xf32>
    %66 = vector.shape_cast %65 : vector<8x1x192xf32> to vector<8x192xf32>
    %67 = arith.maximumf %64, %66 : vector<8x192xf32>
    %68 = arith.truncf %67 : vector<8x192xf32> to vector<8x192xbf16>
    %69 = vector.extract_strided_slice %20 {offsets = [0, 16, 0], sizes = [8, 1, 192], strides = [1, 1, 1]} : vector<8x24x192xf32> to vector<8x1x192xf32>
    %70 = vector.shape_cast %69 : vector<8x1x192xf32> to vector<8x192xf32>
    %71 = vector.extract_strided_slice %20 {offsets = [0, 17, 0], sizes = [8, 1, 192], strides = [1, 1, 1]} : vector<8x24x192xf32> to vector<8x1x192xf32>
    %72 = vector.shape_cast %71 : vector<8x1x192xf32> to vector<8x192xf32>
    %73 = arith.maximumf %70, %72 : vector<8x192xf32>
    %74 = arith.truncf %73 : vector<8x192xf32> to vector<8x192xbf16>
    %75 = vector.extract_strided_slice %20 {offsets = [0, 18, 0], sizes = [8, 1, 192], strides = [1, 1, 1]} : vector<8x24x192xf32> to vector<8x1x192xf32>
    %76 = vector.shape_cast %75 : vector<8x1x192xf32> to vector<8x192xf32>
    %77 = vector.extract_strided_slice %20 {offsets = [0, 19, 0], sizes = [8, 1, 192], strides = [1, 1, 1]} : vector<8x24x192xf32> to vector<8x1x192xf32>
    %78 = vector.shape_cast %77 : vector<8x1x192xf32> to vector<8x192xf32>
    %79 = arith.maximumf %76, %78 : vector<8x192xf32>
    %80 = arith.truncf %79 : vector<8x192xf32> to vector<8x192xbf16>
    %81 = vector.extract_strided_slice %20 {offsets = [0, 20, 0], sizes = [8, 1, 192], strides = [1, 1, 1]} : vector<8x24x192xf32> to vector<8x1x192xf32>
    %82 = vector.shape_cast %81 : vector<8x1x192xf32> to vector<8x192xf32>
    %83 = vector.extract_strided_slice %20 {offsets = [0, 21, 0], sizes = [8, 1, 192], strides = [1, 1, 1]} : vector<8x24x192xf32> to vector<8x1x192xf32>
    %84 = vector.shape_cast %83 : vector<8x1x192xf32> to vector<8x192xf32>
    %85 = arith.maximumf %82, %84 : vector<8x192xf32>
    %86 = arith.truncf %85 : vector<8x192xf32> to vector<8x192xbf16>
    %87 = vector.extract_strided_slice %20 {offsets = [0, 22, 0], sizes = [8, 1, 192], strides = [1, 1, 1]} : vector<8x24x192xf32> to vector<8x1x192xf32>
    %88 = vector.shape_cast %87 : vector<8x1x192xf32> to vector<8x192xf32>
    %89 = vector.extract_strided_slice %20 {offsets = [0, 23, 0], sizes = [8, 1, 192], strides = [1, 1, 1]} : vector<8x24x192xf32> to vector<8x1x192xf32>
    %90 = vector.shape_cast %89 : vector<8x1x192xf32> to vector<8x192xf32>
    %91 = arith.maximumf %88, %90 : vector<8x192xf32>
    %92 = arith.truncf %91 : vector<8x192xf32> to vector<8x192xbf16>
    %93 = tpu.concatenate %26, %32, %38, %44, %50 in 1 : vector<8x192xbf16>, vector<8x192xbf16>, vector<8x192xbf16>, vector<8x192xbf16>, vector<8x192xbf16> -> vector<8x960xbf16>
    %c0_10 = arith.constant 0 : index
    %c0_11 = arith.constant 0 : index
    %94 = vector.load %arg5[%c0_10, %c0_11] : memref<960x128xbf16, #tpu.memory_space<vmem>>, vector<960x128xbf16>
    %cst_12 = arith.constant dense<0.000000e+00> : vector<8x128xf32>
    %95 = tpu.matmul %93, %94, %cst_12 {dimension_numbers = #tpu.dot_dimension_numbers<[1], [0], [0], [1], [0, 0, 1, 1], [], []>} : vector<8x960xbf16>, vector<960x128xbf16>, vector<8x128xf32> -> vector<8x128xf32>
    %c0_13 = arith.constant 0 : index
    %c0_14 = arith.constant 0 : index
    %96 = vector.load %arg6[%c0_13, %c0_14] : memref<960x128xbf16, #tpu.memory_space<vmem>>, vector<960x128xbf16>
    %cst_15 = arith.constant dense<0.000000e+00> : vector<8x128xf32>
    %97 = tpu.matmul %93, %96, %cst_15 {dimension_numbers = #tpu.dot_dimension_numbers<[1], [0], [0], [1], [0, 0, 1, 1], [], []>} : vector<8x960xbf16>, vector<960x128xbf16>, vector<8x128xf32> -> vector<8x128xf32>
    %98 = arith.maximumf %95, %97 : vector<8x128xf32>
    %c0_16 = arith.constant 0 : index
    %c0_17 = arith.constant 0 : index
    %99 = vector.load %arg7[%c0_16, %c0_17] : memref<1x128xf32, #tpu.memory_space<vmem>>, vector<1x128xf32>
    %100 = vector.broadcast %99 : vector<1x128xf32> to vector<8x128xf32>
    %101 = arith.addf %98, %100 : vector<8x128xf32>
    %cst_18 = arith.constant 0.000000e+00 : f32
    %102 = vector.broadcast %cst_18 : f32 to vector<8x128xf32>
    %103 = arith.maximumf %101, %102 : vector<8x128xf32>
    %104 = tpu.concatenate %32, %38, %44, %50, %56 in 1 : vector<8x192xbf16>, vector<8x192xbf16>, vector<8x192xbf16>, vector<8x192xbf16>, vector<8x192xbf16> -> vector<8x960xbf16>
    %c0_19 = arith.constant 0 : index
    %c0_20 = arith.constant 0 : index
    %105 = vector.load %arg5[%c0_19, %c0_20] : memref<960x128xbf16, #tpu.memory_space<vmem>>, vector<960x128xbf16>
    %cst_21 = arith.constant dense<0.000000e+00> : vector<8x128xf32>
    %106 = tpu.matmul %104, %105, %cst_21 {dimension_numbers = #tpu.dot_dimension_numbers<[1], [0], [0], [1], [0, 0, 1, 1], [], []>} : vector<8x960xbf16>, vector<960x128xbf16>, vector<8x128xf32> -> vector<8x128xf32>
    %c0_22 = arith.constant 0 : index
    %c0_23 = arith.constant 0 : index
    %107 = vector.load %arg6[%c0_22, %c0_23] : memref<960x128xbf16, #tpu.memory_space<vmem>>, vector<960x128xbf16>
    %cst_24 = arith.constant dense<0.000000e+00> : vector<8x128xf32>
    %108 = tpu.matmul %104, %107, %cst_24 {dimension_numbers = #tpu.dot_dimension_numbers<[1], [0], [0], [1], [0, 0, 1, 1], [], []>} : vector<8x960xbf16>, vector<960x128xbf16>, vector<8x128xf32> -> vector<8x128xf32>
    %109 = arith.maximumf %106, %108 : vector<8x128xf32>
    %c0_25 = arith.constant 0 : index
    %c0_26 = arith.constant 0 : index
    %110 = vector.load %arg7[%c0_25, %c0_26] : memref<1x128xf32, #tpu.memory_space<vmem>>, vector<1x128xf32>
    %111 = vector.broadcast %110 : vector<1x128xf32> to vector<8x128xf32>
    %112 = arith.addf %109, %111 : vector<8x128xf32>
    %cst_27 = arith.constant 0.000000e+00 : f32
    %113 = vector.broadcast %cst_27 : f32 to vector<8x128xf32>
    %114 = arith.maximumf %112, %113 : vector<8x128xf32>
    %115 = tpu.concatenate %38, %44, %50, %56, %62 in 1 : vector<8x192xbf16>, vector<8x192xbf16>, vector<8x192xbf16>, vector<8x192xbf16>, vector<8x192xbf16> -> vector<8x960xbf16>
    %c0_28 = arith.constant 0 : index
    %c0_29 = arith.constant 0 : index
    %116 = vector.load %arg5[%c0_28, %c0_29] : memref<960x128xbf16, #tpu.memory_space<vmem>>, vector<960x128xbf16>
    %cst_30 = arith.constant dense<0.000000e+00> : vector<8x128xf32>
    %117 = tpu.matmul %115, %116, %cst_30 {dimension_numbers = #tpu.dot_dimension_numbers<[1], [0], [0], [1], [0, 0, 1, 1], [], []>} : vector<8x960xbf16>, vector<960x128xbf16>, vector<8x128xf32> -> vector<8x128xf32>
    %c0_31 = arith.constant 0 : index
    %c0_32 = arith.constant 0 : index
    %118 = vector.load %arg6[%c0_31, %c0_32] : memref<960x128xbf16, #tpu.memory_space<vmem>>, vector<960x128xbf16>
    %cst_33 = arith.constant dense<0.000000e+00> : vector<8x128xf32>
    %119 = tpu.matmul %115, %118, %cst_33 {dimension_numbers = #tpu.dot_dimension_numbers<[1], [0], [0], [1], [0, 0, 1, 1], [], []>} : vector<8x960xbf16>, vector<960x128xbf16>, vector<8x128xf32> -> vector<8x128xf32>
    %120 = arith.maximumf %117, %119 : vector<8x128xf32>
    %c0_34 = arith.constant 0 : index
    %c0_35 = arith.constant 0 : index
    %121 = vector.load %arg7[%c0_34, %c0_35] : memref<1x128xf32, #tpu.memory_space<vmem>>, vector<1x128xf32>
    %122 = vector.broadcast %121 : vector<1x128xf32> to vector<8x128xf32>
    %123 = arith.addf %120, %122 : vector<8x128xf32>
    %cst_36 = arith.constant 0.000000e+00 : f32
    %124 = vector.broadcast %cst_36 : f32 to vector<8x128xf32>
    %125 = arith.maximumf %123, %124 : vector<8x128xf32>
    %126 = tpu.concatenate %44, %50, %56, %62, %68 in 1 : vector<8x192xbf16>, vector<8x192xbf16>, vector<8x192xbf16>, vector<8x192xbf16>, vector<8x192xbf16> -> vector<8x960xbf16>
    %c0_37 = arith.constant 0 : index
    %c0_38 = arith.constant 0 : index
    %127 = vector.load %arg5[%c0_37, %c0_38] : memref<960x128xbf16, #tpu.memory_space<vmem>>, vector<960x128xbf16>
    %cst_39 = arith.constant dense<0.000000e+00> : vector<8x128xf32>
    %128 = tpu.matmul %126, %127, %cst_39 {dimension_numbers = #tpu.dot_dimension_numbers<[1], [0], [0], [1], [0, 0, 1, 1], [], []>} : vector<8x960xbf16>, vector<960x128xbf16>, vector<8x128xf32> -> vector<8x128xf32>
    %c0_40 = arith.constant 0 : index
    %c0_41 = arith.constant 0 : index
    %129 = vector.load %arg6[%c0_40, %c0_41] : memref<960x128xbf16, #tpu.memory_space<vmem>>, vector<960x128xbf16>
    %cst_42 = arith.constant dense<0.000000e+00> : vector<8x128xf32>
    %130 = tpu.matmul %126, %129, %cst_42 {dimension_numbers = #tpu.dot_dimension_numbers<[1], [0], [0], [1], [0, 0, 1, 1], [], []>} : vector<8x960xbf16>, vector<960x128xbf16>, vector<8x128xf32> -> vector<8x128xf32>
    %131 = arith.maximumf %128, %130 : vector<8x128xf32>
    %c0_43 = arith.constant 0 : index
    %c0_44 = arith.constant 0 : index
    %132 = vector.load %arg7[%c0_43, %c0_44] : memref<1x128xf32, #tpu.memory_space<vmem>>, vector<1x128xf32>
    %133 = vector.broadcast %132 : vector<1x128xf32> to vector<8x128xf32>
    %134 = arith.addf %131, %133 : vector<8x128xf32>
    %cst_45 = arith.constant 0.000000e+00 : f32
    %135 = vector.broadcast %cst_45 : f32 to vector<8x128xf32>
    %136 = arith.maximumf %134, %135 : vector<8x128xf32>
    %137 = tpu.concatenate %50, %56, %62, %68, %74 in 1 : vector<8x192xbf16>, vector<8x192xbf16>, vector<8x192xbf16>, vector<8x192xbf16>, vector<8x192xbf16> -> vector<8x960xbf16>
    %c0_46 = arith.constant 0 : index
    %c0_47 = arith.constant 0 : index
    %138 = vector.load %arg5[%c0_46, %c0_47] : memref<960x128xbf16, #tpu.memory_space<vmem>>, vector<960x128xbf16>
    %cst_48 = arith.constant dense<0.000000e+00> : vector<8x128xf32>
    %139 = tpu.matmul %137, %138, %cst_48 {dimension_numbers = #tpu.dot_dimension_numbers<[1], [0], [0], [1], [0, 0, 1, 1], [], []>} : vector<8x960xbf16>, vector<960x128xbf16>, vector<8x128xf32> -> vector<8x128xf32>
    %c0_49 = arith.constant 0 : index
    %c0_50 = arith.constant 0 : index
    %140 = vector.load %arg6[%c0_49, %c0_50] : memref<960x128xbf16, #tpu.memory_space<vmem>>, vector<960x128xbf16>
    %cst_51 = arith.constant dense<0.000000e+00> : vector<8x128xf32>
    %141 = tpu.matmul %137, %140, %cst_51 {dimension_numbers = #tpu.dot_dimension_numbers<[1], [0], [0], [1], [0, 0, 1, 1], [], []>} : vector<8x960xbf16>, vector<960x128xbf16>, vector<8x128xf32> -> vector<8x128xf32>
    %142 = arith.maximumf %139, %141 : vector<8x128xf32>
    %c0_52 = arith.constant 0 : index
    %c0_53 = arith.constant 0 : index
    %143 = vector.load %arg7[%c0_52, %c0_53] : memref<1x128xf32, #tpu.memory_space<vmem>>, vector<1x128xf32>
    %144 = vector.broadcast %143 : vector<1x128xf32> to vector<8x128xf32>
    %145 = arith.addf %142, %144 : vector<8x128xf32>
    %cst_54 = arith.constant 0.000000e+00 : f32
    %146 = vector.broadcast %cst_54 : f32 to vector<8x128xf32>
    %147 = arith.maximumf %145, %146 : vector<8x128xf32>
    %148 = tpu.concatenate %56, %62, %68, %74, %80 in 1 : vector<8x192xbf16>, vector<8x192xbf16>, vector<8x192xbf16>, vector<8x192xbf16>, vector<8x192xbf16> -> vector<8x960xbf16>
    %c0_55 = arith.constant 0 : index
    %c0_56 = arith.constant 0 : index
    %149 = vector.load %arg5[%c0_55, %c0_56] : memref<960x128xbf16, #tpu.memory_space<vmem>>, vector<960x128xbf16>
    %cst_57 = arith.constant dense<0.000000e+00> : vector<8x128xf32>
    %150 = tpu.matmul %148, %149, %cst_57 {dimension_numbers = #tpu.dot_dimension_numbers<[1], [0], [0], [1], [0, 0, 1, 1], [], []>} : vector<8x960xbf16>, vector<960x128xbf16>, vector<8x128xf32> -> vector<8x128xf32>
    %c0_58 = arith.constant 0 : index
    %c0_59 = arith.constant 0 : index
    %151 = vector.load %arg6[%c0_58, %c0_59] : memref<960x128xbf16, #tpu.memory_space<vmem>>, vector<960x128xbf16>
    %cst_60 = arith.constant dense<0.000000e+00> : vector<8x128xf32>
    %152 = tpu.matmul %148, %151, %cst_60 {dimension_numbers = #tpu.dot_dimension_numbers<[1], [0], [0], [1], [0, 0, 1, 1], [], []>} : vector<8x960xbf16>, vector<960x128xbf16>, vector<8x128xf32> -> vector<8x128xf32>
    %153 = arith.maximumf %150, %152 : vector<8x128xf32>
    %c0_61 = arith.constant 0 : index
    %c0_62 = arith.constant 0 : index
    %154 = vector.load %arg7[%c0_61, %c0_62] : memref<1x128xf32, #tpu.memory_space<vmem>>, vector<1x128xf32>
    %155 = vector.broadcast %154 : vector<1x128xf32> to vector<8x128xf32>
    %156 = arith.addf %153, %155 : vector<8x128xf32>
    %cst_63 = arith.constant 0.000000e+00 : f32
    %157 = vector.broadcast %cst_63 : f32 to vector<8x128xf32>
    %158 = arith.maximumf %156, %157 : vector<8x128xf32>
    %159 = tpu.concatenate %62, %68, %74, %80, %86 in 1 : vector<8x192xbf16>, vector<8x192xbf16>, vector<8x192xbf16>, vector<8x192xbf16>, vector<8x192xbf16> -> vector<8x960xbf16>
    %c0_64 = arith.constant 0 : index
    %c0_65 = arith.constant 0 : index
    %160 = vector.load %arg5[%c0_64, %c0_65] : memref<960x128xbf16, #tpu.memory_space<vmem>>, vector<960x128xbf16>
    %cst_66 = arith.constant dense<0.000000e+00> : vector<8x128xf32>
    %161 = tpu.matmul %159, %160, %cst_66 {dimension_numbers = #tpu.dot_dimension_numbers<[1], [0], [0], [1], [0, 0, 1, 1], [], []>} : vector<8x960xbf16>, vector<960x128xbf16>, vector<8x128xf32> -> vector<8x128xf32>
    %c0_67 = arith.constant 0 : index
    %c0_68 = arith.constant 0 : index
    %162 = vector.load %arg6[%c0_67, %c0_68] : memref<960x128xbf16, #tpu.memory_space<vmem>>, vector<960x128xbf16>
    %cst_69 = arith.constant dense<0.000000e+00> : vector<8x128xf32>
    %163 = tpu.matmul %159, %162, %cst_69 {dimension_numbers = #tpu.dot_dimension_numbers<[1], [0], [0], [1], [0, 0, 1, 1], [], []>} : vector<8x960xbf16>, vector<960x128xbf16>, vector<8x128xf32> -> vector<8x128xf32>
    %164 = arith.maximumf %161, %163 : vector<8x128xf32>
    %c0_70 = arith.constant 0 : index
    %c0_71 = arith.constant 0 : index
    %165 = vector.load %arg7[%c0_70, %c0_71] : memref<1x128xf32, #tpu.memory_space<vmem>>, vector<1x128xf32>
    %166 = vector.broadcast %165 : vector<1x128xf32> to vector<8x128xf32>
    %167 = arith.addf %164, %166 : vector<8x128xf32>
    %cst_72 = arith.constant 0.000000e+00 : f32
    %168 = vector.broadcast %cst_72 : f32 to vector<8x128xf32>
    %169 = arith.maximumf %167, %168 : vector<8x128xf32>
    %170 = tpu.concatenate %68, %74, %80, %86, %92 in 1 : vector<8x192xbf16>, vector<8x192xbf16>, vector<8x192xbf16>, vector<8x192xbf16>, vector<8x192xbf16> -> vector<8x960xbf16>
    %c0_73 = arith.constant 0 : index
    %c0_74 = arith.constant 0 : index
    %171 = vector.load %arg5[%c0_73, %c0_74] : memref<960x128xbf16, #tpu.memory_space<vmem>>, vector<960x128xbf16>
    %cst_75 = arith.constant dense<0.000000e+00> : vector<8x128xf32>
    %172 = tpu.matmul %170, %171, %cst_75 {dimension_numbers = #tpu.dot_dimension_numbers<[1], [0], [0], [1], [0, 0, 1, 1], [], []>} : vector<8x960xbf16>, vector<960x128xbf16>, vector<8x128xf32> -> vector<8x128xf32>
    %c0_76 = arith.constant 0 : index
    %c0_77 = arith.constant 0 : index
    %173 = vector.load %arg6[%c0_76, %c0_77] : memref<960x128xbf16, #tpu.memory_space<vmem>>, vector<960x128xbf16>
    %cst_78 = arith.constant dense<0.000000e+00> : vector<8x128xf32>
    %174 = tpu.matmul %170, %173, %cst_78 {dimension_numbers = #tpu.dot_dimension_numbers<[1], [0], [0], [1], [0, 0, 1, 1], [], []>} : vector<8x960xbf16>, vector<960x128xbf16>, vector<8x128xf32> -> vector<8x128xf32>
    %175 = arith.maximumf %172, %174 : vector<8x128xf32>
    %c0_79 = arith.constant 0 : index
    %c0_80 = arith.constant 0 : index
    %176 = vector.load %arg7[%c0_79, %c0_80] : memref<1x128xf32, #tpu.memory_space<vmem>>, vector<1x128xf32>
    %177 = vector.broadcast %176 : vector<1x128xf32> to vector<8x128xf32>
    %178 = arith.addf %175, %177 : vector<8x128xf32>
    %cst_81 = arith.constant 0.000000e+00 : f32
    %179 = vector.broadcast %cst_81 : f32 to vector<8x128xf32>
    %180 = arith.maximumf %178, %179 : vector<8x128xf32>
    %181 = arith.maximumf %103, %114 : vector<8x128xf32>
    %182 = arith.truncf %181 : vector<8x128xf32> to vector<8x128xbf16>
    %183 = arith.maximumf %125, %136 : vector<8x128xf32>
    %184 = arith.truncf %183 : vector<8x128xf32> to vector<8x128xbf16>
    %185 = arith.maximumf %147, %158 : vector<8x128xf32>
    %186 = arith.truncf %185 : vector<8x128xf32> to vector<8x128xbf16>
    %187 = arith.maximumf %169, %180 : vector<8x128xf32>
    %188 = arith.truncf %187 : vector<8x128xf32> to vector<8x128xbf16>
    %189 = tpu.concatenate %182, %184, %186, %188 in 1 : vector<8x128xbf16>, vector<8x128xbf16>, vector<8x128xbf16>, vector<8x128xbf16> -> vector<8x512xbf16>
    %c0_82 = arith.constant 0 : index
    %c0_83 = arith.constant 0 : index
    %190 = vector.load %arg8[%c0_82, %c0_83] : memref<512x10xbf16, #tpu.memory_space<vmem>>, vector<512x10xbf16>
    %cst_84 = arith.constant dense<0.000000e+00> : vector<8x10xf32>
    %191 = tpu.matmul %189, %190, %cst_84 {dimension_numbers = #tpu.dot_dimension_numbers<[1], [0], [0], [1], [0, 0, 1, 1], [], []>} : vector<8x512xbf16>, vector<512x10xbf16>, vector<8x10xf32> -> vector<8x10xf32>
    %c0_85 = arith.constant 0 : index
    %c0_86 = arith.constant 0 : index
    %192 = vector.load %arg9[%c0_85, %c0_86] : memref<1x10xf32, #tpu.memory_space<vmem>>, vector<1x10xf32>
    %193 = vector.broadcast %192 : vector<1x10xf32> to vector<8x10xf32>
    %194 = arith.addf %191, %193 : vector<8x10xf32>
    %c0_87 = arith.constant 0 : index
    %c0_88 = arith.constant 0 : index
    %195 = vector.load %arg10[%c0_87, %c0_88] : memref<8x10xf32, #tpu.memory_space<vmem>>, vector<8x10xf32>
    tpu.vector_store %arg10[%c0_87, %c0_88], %194 {strides = array<i32>} : memref<8x10xf32, #tpu.memory_space<vmem>>, vector<8x10xf32>,
    return
  }
  func.func @transform_0(%arg0: i32) -> (i32, i32, i32) {
    %c0_i32 = arith.constant 0 : i32
    %c0_i32_0 = arith.constant 0 : i32
    %c0_i32_1 = arith.constant 0 : i32
    return %arg0, %c0_i32, %c0_i32_0 : i32, i32, i32
  }
  func.func @transform_1(%arg0: i32) -> (i32, i32) {
    %c0_i32 = arith.constant 0 : i32
    %c0_i32_0 = arith.constant 0 : i32
    %c0_i32_1 = arith.constant 0 : i32
    return %c0_i32, %c0_i32_0 : i32, i32
  }
  func.func @transform_2(%arg0: i32) -> (i32, i32) {
    %c0_i32 = arith.constant 0 : i32
    %c0_i32_0 = arith.constant 0 : i32
    %c0_i32_1 = arith.constant 0 : i32
    return %c0_i32, %c0_i32_0 : i32, i32
  }
  func.func @transform_3(%arg0: i32) -> (i32, i32) {
    %c0_i32 = arith.constant 0 : i32
    %c0_i32_0 = arith.constant 0 : i32
    %c0_i32_1 = arith.constant 0 : i32
    return %c0_i32, %c0_i32_0 : i32, i32
  }
  func.func @transform_4(%arg0: i32) -> (i32, i32) {
    %c0_i32 = arith.constant 0 : i32
    %c0_i32_0 = arith.constant 0 : i32
    %c0_i32_1 = arith.constant 0 : i32
    return %c0_i32, %c0_i32_0 : i32, i32
  }
  func.func @transform_5(%arg0: i32) -> (i32, i32) {
    %c0_i32 = arith.constant 0 : i32
    %c0_i32_0 = arith.constant 0 : i32
    %c0_i32_1 = arith.constant 0 : i32
    return %c0_i32, %c0_i32_0 : i32, i32
  }
  func.func @transform_6(%arg0: i32) -> (i32, i32) {
    %c0_i32 = arith.constant 0 : i32
    %c0_i32_0 = arith.constant 0 : i32
    %c0_i32_1 = arith.constant 0 : i32
    return %c0_i32, %c0_i32_0 : i32, i32
  }
  func.func @transform_7(%arg0: i32) -> (i32, i32) {
    %c0_i32 = arith.constant 0 : i32
    %c0_i32_0 = arith.constant 0 : i32
    %c0_i32_1 = arith.constant 0 : i32
    return %c0_i32, %c0_i32_0 : i32, i32
  }
  func.func @transform_8(%arg0: i32) -> (i32, i32) {
    %c0_i32 = arith.constant 0 : i32
    %c0_i32_0 = arith.constant 0 : i32
    %c0_i32_1 = arith.constant 0 : i32
    return %c0_i32, %c0_i32_0 : i32, i32
  }
  func.func @transform_9(%arg0: i32) -> (i32, i32) {
    %c0_i32 = arith.constant 0 : i32
    %c0_i32_0 = arith.constant 0 : i32
    return %arg0, %c0_i32 : i32, i32
  }
}

</mosaic_0001>

<llo_original>
// kernel: cnn_forward.1
$region0: #{cnn_forward.1}
  #allocation0 [shape = 'u32[]', space=smem, size = 0x4, offset = 0x4, fixed_abs, tag = 'smem constant byte address 0x4 - core index']
  #allocation1 [shape = 'u32[72,128]{1,0:T(1,128)}', space=vmem, size = 0x9000, scoped, tag = 'internal scratch']
  %s0 = inlined_call_operand.vmem [shape: bf16[8,28,28], index: 0, kind: input, shape index: {}]
  %s1 = inlined_call_operand.vmem [shape: bf16[140,192], index: 1, kind: input, shape index: {}]
  %s2 = inlined_call_operand.vmem [shape: bf16[140,192], index: 2, kind: input, shape index: {}]
  %s3 = inlined_call_operand.vmem [shape: f32[1,192], index: 3, kind: input, shape index: {}]
  %s4 = inlined_call_operand.hbm [shape: bf16[960,128], index: 4, kind: input, shape index: {}]
  %s5 = inlined_call_operand.hbm [shape: bf16[960,128], index: 5, kind: input, shape index: {}]
  %s6 = inlined_call_operand.vmem [shape: f32[1,128], index: 6, kind: input, shape index: {}]
  %s7 = inlined_call_operand.vmem [shape: bf16[512,10], index: 7, kind: input, shape index: {}]
  %s8 = inlined_call_operand.vmem [shape: f32[1,10], index: 8, kind: input, shape index: {}]
  %s9 = inlined_call_operand.vmem [shape: f32[8,10], index: 9, kind: output, shape index: {}]
  %s10 = sld [smem:[#allocation0]]
  $region54: #{cnn_forward.1} parent=0
    _
  %s12 = ssub.s32 1, %s10
  %s13 = scalar_select 0, %s12, %s10
  $region1: #{cnn_forward.1} parent=0
    #allocation2 [shape = 'u8[245760]{0}', space=vmem, size = 0x3c000, scoped, tag = 'input window, operand 4, single buffered']
    #allocation3 [shape = 's32[1]{0}', space=sflag, size = 0x4, scoped, tag = 'scoped memory for cnn_forward.1']
    #allocation4 [shape = 'u8[245760]{0}', space=vmem, size = 0x3c000, scoped, tag = 'input window, operand 5, single buffered']
    #allocation5 [shape = 's32[1]{0}', space=sflag, size = 0x4, scoped, tag = 'scoped memory for cnn_forward.1']
    %14 = vsyncpa [#allocation3], 0
    %15 = vsyncpa [#allocation5], 0
    // Predicated region
    $region2: #{cnn_forward.1} parent=1 // pred_check
      _
    $region3: #{cnn_forward.1} parent=1 // pred_check_branch
      %17 = sbr.rel (0) target = $region5
    $region4: #{cnn_forward.1} parent=1 // pred_region
      _
    $region5: #{cnn_forward.1} parent=1 // pred_fallthru
      _
    // Predicated region
    $region6: #{cnn_forward.1} parent=1 // pred_check
      _
    $region7: #{cnn_forward.1} parent=1 // pred_check_branch
      %19 = sbr.rel (0) target = $region9
    $region8: #{cnn_forward.1} parent=1 // pred_region
      _
    $region9: #{cnn_forward.1} parent=1 // pred_fallthru
      _
    // Predicated region
    $region10: #{cnn_forward.1} parent=1 // pred_check
      _
    $region11: #{cnn_forward.1} parent=1 // pred_check_branch
      %21 = sbr.rel (0) target = $region13
    $region12: #{cnn_forward.1} parent=1 // pred_region
      _
    $region13: #{cnn_forward.1} parent=1 // pred_fallthru
      _
    // Predicated region
    $region14: #{cnn_forward.1} parent=1 // pred_check
      _
    $region15: #{cnn_forward.1} parent=1 // pred_check_branch
      %23 = sbr.rel (0) target = $region17
    $region16: #{cnn_forward.1} parent=1 // pred_region
      _
    $region17: #{cnn_forward.1} parent=1 // pred_fallthru
      _
    // Predicated region
    $region18: #{cnn_forward.1} parent=1 // pred_check
      _
    $region19: #{cnn_forward.1} parent=1 // pred_check_branch
      %25 = sbr.rel (0) target = $region21
    $region20: #{cnn_forward.1} parent=1 // pred_region
      %27 = vsyncadd [#allocation3], 0
      %s28 = sshll.u32 %s4, 4
      %s29 = int_to_ptr.hbm [resolvable:$true] %s28
      %s30 = sshll.u32 [#allocation2], 4
      %s31 = int_to_ptr.vmem [resolvable:$true] %s30
      %36 = dma.hbm_to_vmem [thread:$0]  %s29, 7680, %s31, [#allocation3], 64, 64, 4
    $region21: #{cnn_forward.1} parent=1 // pred_fallthru
      _
    // Predicated region
    $region22: #{cnn_forward.1} parent=1 // pred_check
      _
    $region23: #{cnn_forward.1} parent=1 // pred_check_branch
      %38 = sbr.rel (0) target = $region25
    $region24: #{cnn_forward.1} parent=1 // pred_region
      %40 = vsyncadd [#allocation5], 0
      %s41 = sshll.u32 %s5, 4
      %s42 = int_to_ptr.hbm [resolvable:$true] %s41
      %s43 = sshll.u32 [#allocation4], 4
      %s44 = int_to_ptr.vmem [resolvable:$true] %s43
      %49 = dma.hbm_to_vmem [thread:$0]  %s42, 7680, %s44, [#allocation5], 64, 64, 4
    $region25: #{cnn_forward.1} parent=1 // pred_fallthru
      _
    // Predicated region
    $region26: #{cnn_forward.1} parent=1 // pred_check
      _
    $region27: #{cnn_forward.1} parent=1 // pred_check_branch
      %51 = sbr.rel (0) target = $region29
    $region28: #{cnn_forward.1} parent=1 // pred_region
      _
    $region29: #{cnn_forward.1} parent=1 // pred_fallthru
      _
    // Predicated region
    $region30: #{cnn_forward.1} parent=1 // pred_check
      _
    $region31: #{cnn_forward.1} parent=1 // pred_check_branch
      %53 = sbr.rel (0) target = $region33
    $region32: #{cnn_forward.1} parent=1 // pred_region
      _
    $region33: #{cnn_forward.1} parent=1 // pred_fallthru
      _
    // Predicated region
    $region34: #{cnn_forward.1} parent=1 // pred_check
      _
    $region35: #{cnn_forward.1} parent=1 // pred_check_branch
      %55 = sbr.rel (0) target = $region37
    $region36: #{cnn_forward.1} parent=1 // pred_region
      _
    $region37: #{cnn_forward.1} parent=1 // pred_fallthru
      _
    // Predicated region
    $region38: #{cnn_forward.1} parent=1 // pred_check
      _
    $region39: #{cnn_forward.1} parent=1 // pred_check_branch
      %57 = sbr.rel (0) target = $region41
    $region40: #{cnn_forward.1} parent=1 // pred_region
      %59 = dma.done [#allocation3], 7680
    $region41: #{cnn_forward.1} parent=1 // pred_fallthru
      _
    // Predicated region
    $region42: #{cnn_forward.1} parent=1 // pred_check
      _
    $region43: #{cnn_forward.1} parent=1 // pred_check_branch
      %61 = sbr.rel (0) target = $region45
    $region44: #{cnn_forward.1} parent=1 // pred_region
      %63 = dma.done [#allocation5], 7680
    $region45: #{cnn_forward.1} parent=1 // pred_fallthru
      _
    %v65 = vld [vmem:[%s0] sm:$0xf]
    %v66 = vld [vmem:[%s0 + $0x4] sm:$0xf]
    %v67 = vld [vmem:[%s0 + $0x8] sm:$0xf]
    %v68 = vld [vmem:[%s0 + $0xc] sm:$0x3]
    %v69 = vld [vmem:[%s0 + $0x10] sm:$0xf]
    %v70 = vld [vmem:[%s0 + $0x14] sm:$0xf]
    %v71 = vld [vmem:[%s0 + $0x18] sm:$0xf]
    %v72 = vld [vmem:[%s0 + $0x1c] sm:$0x3]
    %v73 = vld [vmem:[%s0 + $0x20] sm:$0xf]
    %v74 = vld [vmem:[%s0 + $0x24] sm:$0xf]
    %v75 = vld [vmem:[%s0 + $0x28] sm:$0xf]
    %v76 = vld [vmem:[%s0 + $0x2c] sm:$0x3]
    %v77 = vld [vmem:[%s0 + $0x30] sm:$0xf]
    %v78 = vld [vmem:[%s0 + $0x34] sm:$0xf]
    %v79 = vld [vmem:[%s0 + $0x38] sm:$0xf]
    %v80 = vld [vmem:[%s0 + $0x3c] sm:$0x3]
    %v81 = vld [vmem:[%s0 + $0x40] sm:$0xf]
    %v82 = vld [vmem:[%s0 + $0x44] sm:$0xf]
    %v83 = vld [vmem:[%s0 + $0x48] sm:$0xf]
    %v84 = vld [vmem:[%s0 + $0x4c] sm:$0x3]
    %v85 = vld [vmem:[%s0 + $0x50] sm:$0xf]
    %v86 = vld [vmem:[%s0 + $0x54] sm:$0xf]
    %v87 = vld [vmem:[%s0 + $0x58] sm:$0xf]
    %v88 = vld [vmem:[%s0 + $0x5c] sm:$0x3]
    %v89 = vld [vmem:[%s0 + $0x60] sm:$0xf]
    %v90 = vld [vmem:[%s0 + $0x64] sm:$0xf]
    %v91 = vld [vmem:[%s0 + $0x68] sm:$0xf]
    %v92 = vld [vmem:[%s0 + $0x6c] sm:$0x3]
    %v93 = vld [vmem:[%s0 + $0x70] sm:$0xf]
    %v94 = vld [vmem:[%s0 + $0x74] sm:$0xf]
    %v95 = vld [vmem:[%s0 + $0x78] sm:$0xf]
    %v96 = vld [vmem:[%s0 + $0x7c] sm:$0x3]
    %v97 = vunpack.c.l.bf16 %v65
    %v98 = vunpack.c.l.bf16 %v66
    %v99 = vunpack.c.l.bf16 %v67
    %v100 = vunpack.c.l.bf16 %v68
    %v101 = vunpack.c.l.bf16 %v69
    %v102 = vunpack.c.l.bf16 %v70
    %v103 = vunpack.c.l.bf16 %v71
    %v104 = vunpack.c.l.bf16 %v72
    %v105 = vunpack.c.l.bf16 %v73
    %v106 = vunpack.c.l.bf16 %v74
    %v107 = vunpack.c.l.bf16 %v75
    %v108 = vunpack.c.l.bf16 %v76
    %v109 = vunpack.c.l.bf16 %v77
    %v110 = vunpack.c.l.bf16 %v78
    %v111 = vunpack.c.l.bf16 %v79
    %v112 = vunpack.c.l.bf16 %v80
    %v113 = vunpack.c.l.bf16 %v81
    %v114 = vunpack.c.l.bf16 %v82
    %v115 = vunpack.c.l.bf16 %v83
    %v116 = vunpack.c.l.bf16 %v84
    %v117 = vunpack.c.l.bf16 %v85
    %v118 = vunpack.c.l.bf16 %v86
    %v119 = vunpack.c.l.bf16 %v87
    %v120 = vunpack.c.l.bf16 %v88
    %v121 = vunpack.c.l.bf16 %v89
    %v122 = vunpack.c.l.bf16 %v90
    %v123 = vunpack.c.l.bf16 %v91
    %v124 = vunpack.c.l.bf16 %v92
    %v125 = vunpack.c.l.bf16 %v93
    %v126 = vunpack.c.l.bf16 %v94
    %v127 = vunpack.c.l.bf16 %v95
    %v128 = vunpack.c.l.bf16 %v96
    %vm161 = vcmask 1046528
    %v162 = vrot.slane %v97, 1
    %v163 = vrot.slane %v98, 1
    %v164 = vsel %vm161, %v162, %v163
    %v165 = vrot.slane %v99, 1
    %v166 = vsel %vm161, %v163, %v165
    %v167 = vrot.slane %v100, 1
    %v168 = vsel %vm161, %v165, %v167
    %v169 = vrot.slane %v101, 1
    %v170 = vrot.slane %v102, 1
    %v171 = vsel %vm161, %v169, %v170
    %v172 = vrot.slane %v103, 1
    %v173 = vsel %vm161, %v170, %v172
    %v174 = vrot.slane %v104, 1
    %v175 = vsel %vm161, %v172, %v174
    %v176 = vrot.slane %v105, 1
    %v177 = vrot.slane %v106, 1
    %v178 = vsel %vm161, %v176, %v177
    %v179 = vrot.slane %v107, 1
    %v180 = vsel %vm161, %v177, %v179
    %v181 = vrot.slane %v108, 1
    %v182 = vsel %vm161, %v179, %v181
    %v183 = vrot.slane %v109, 1
    %v184 = vrot.slane %v110, 1
    %v185 = vsel %vm161, %v183, %v184
    %v186 = vrot.slane %v111, 1
    %v187 = vsel %vm161, %v184, %v186
    %v188 = vrot.slane %v112, 1
    %v189 = vsel %vm161, %v186, %v188
    %v190 = vrot.slane %v113, 1
    %v191 = vrot.slane %v114, 1
    %v192 = vsel %vm161, %v190, %v191
    %v193 = vrot.slane %v115, 1
    %v194 = vsel %vm161, %v191, %v193
    %v195 = vrot.slane %v116, 1
    %v196 = vsel %vm161, %v193, %v195
    %v197 = vrot.slane %v117, 1
    %v198 = vrot.slane %v118, 1
    %v199 = vsel %vm161, %v197, %v198
    %v200 = vrot.slane %v119, 1
    %v201 = vsel %vm161, %v198, %v200
    %v202 = vrot.slane %v120, 1
    %v203 = vsel %vm161, %v200, %v202
    %v204 = vrot.slane %v121, 1
    %v205 = vrot.slane %v122, 1
    %v206 = vsel %vm161, %v204, %v205
    %v207 = vrot.slane %v123, 1
    %v208 = vsel %vm161, %v205, %v207
    %v209 = vrot.slane %v124, 1
    %v210 = vsel %vm161, %v207, %v209
    %v211 = vrot.slane %v125, 1
    %v212 = vrot.slane %v126, 1
    %v213 = vsel %vm161, %v211, %v212
    %v214 = vrot.slane %v127, 1
    %v215 = vsel %vm161, %v212, %v214
    %v216 = vrot.slane %v128, 1
    %v217 = vsel %vm161, %v214, %v216
    %218 = vrot.lane.b32.xlu0 %v164, 28
    %v219 = vpop.permute.xlu0 %218
    %220 = vrot.lane.b32.xlu0 %v166, 28
    %v221 = vpop.permute.xlu0 %220
    %222 = vrot.lane.b32.xlu0 %v168, 28
    %v223 = vpop.permute.xlu0 %222
    %224 = vrot.lane.b32.xlu0 %v171, 28
    %v225 = vpop.permute.xlu0 %224
    %226 = vrot.lane.b32.xlu0 %v173, 28
    %v227 = vpop.permute.xlu0 %226
    %228 = vrot.lane.b32.xlu0 %v175, 28
    %v229 = vpop.permute.xlu0 %228
    %230 = vrot.lane.b32.xlu0 %v178, 28
    %v231 = vpop.permute.xlu0 %230
    %232 = vrot.lane.b32.xlu0 %v180, 28
    %v233 = vpop.permute.xlu0 %232
    %234 = vrot.lane.b32.xlu0 %v182, 28
    %v235 = vpop.permute.xlu0 %234
    %236 = vrot.lane.b32.xlu0 %v185, 28
    %v237 = vpop.permute.xlu0 %236
    %238 = vrot.lane.b32.xlu0 %v187, 28
    %v239 = vpop.permute.xlu0 %238
    %240 = vrot.lane.b32.xlu0 %v189, 28
    %v241 = vpop.permute.xlu0 %240
    %242 = vrot.lane.b32.xlu0 %v192, 28
    %v243 = vpop.permute.xlu0 %242
    %244 = vrot.lane.b32.xlu0 %v194, 28
    %v245 = vpop.permute.xlu0 %244
    %246 = vrot.lane.b32.xlu0 %v196, 28
    %v247 = vpop.permute.xlu0 %246
    %248 = vrot.lane.b32.xlu0 %v199, 28
    %v249 = vpop.permute.xlu0 %248
    %250 = vrot.lane.b32.xlu0 %v201, 28
    %v251 = vpop.permute.xlu0 %250
    %252 = vrot.lane.b32.xlu0 %v203, 28
    %v253 = vpop.permute.xlu0 %252
    %254 = vrot.lane.b32.xlu0 %v206, 28
    %v255 = vpop.permute.xlu0 %254
    %256 = vrot.lane.b32.xlu0 %v208, 28
    %v257 = vpop.permute.xlu0 %256
    %258 = vrot.lane.b32.xlu0 %v210, 28
    %v259 = vpop.permute.xlu0 %258
    %260 = vrot.lane.b32.xlu0 %v213, 28
    %v261 = vpop.permute.xlu0 %260
    %262 = vrot.lane.b32.xlu0 %v215, 28
    %v263 = vpop.permute.xlu0 %262
    %264 = vrot.lane.b32.xlu0 %v217, 28
    %v265 = vpop.permute.xlu0 %264
    %vm290 = vcmask 1045504
    %v291 = vrot.slane %v97, 2
    %v292 = vrot.slane %v98, 2
    %v293 = vsel %vm290, %v291, %v292
    %v294 = vrot.slane %v99, 2
    %v295 = vsel %vm290, %v292, %v294
    %v296 = vrot.slane %v100, 2
    %v297 = vsel %vm290, %v294, %v296
    %v298 = vrot.slane %v101, 2
    %v299 = vrot.slane %v102, 2
    %v300 = vsel %vm290, %v298, %v299
    %v301 = vrot.slane %v103, 2
    %v302 = vsel %vm290, %v299, %v301
    %v303 = vrot.slane %v104, 2
    %v304 = vsel %vm290, %v301, %v303
    %v305 = vrot.slane %v105, 2
    %v306 = vrot.slane %v106, 2
    %v307 = vsel %vm290, %v305, %v306
    %v308 = vrot.slane %v107, 2
    %v309 = vsel %vm290, %v306, %v308
    %v310 = vrot.slane %v108, 2
    %v311 = vsel %vm290, %v308, %v310
    %v312 = vrot.slane %v109, 2
    %v313 = vrot.slane %v110, 2
    %v314 = vsel %vm290, %v312, %v313
    %v315 = vrot.slane %v111, 2
    %v316 = vsel %vm290, %v313, %v315
    %v317 = vrot.slane %v112, 2
    %v318 = vsel %vm290, %v315, %v317
    %v319 = vrot.slane %v113, 2
    %v320 = vrot.slane %v114, 2
    %v321 = vsel %vm290, %v319, %v320
    %v322 = vrot.slane %v115, 2
    %v323 = vsel %vm290, %v320, %v322
    %v324 = vrot.slane %v116, 2
    %v325 = vsel %vm290, %v322, %v324
    %v326 = vrot.slane %v117, 2
    %v327 = vrot.slane %v118, 2
    %v328 = vsel %vm290, %v326, %v327
    %v329 = vrot.slane %v119, 2
    %v330 = vsel %vm290, %v327, %v329
    %v331 = vrot.slane %v120, 2
    %v332 = vsel %vm290, %v329, %v331
    %v333 = vrot.slane %v121, 2
    %v334 = vrot.slane %v122, 2
    %v335 = vsel %vm290, %v333, %v334
    %v336 = vrot.slane %v123, 2
    %v337 = vsel %vm290, %v334, %v336
    %v338 = vrot.slane %v124, 2
    %v339 = vsel %vm290, %v336, %v338
    %v340 = vrot.slane %v125, 2
    %v341 = vrot.slane %v126, 2
    %v342 = vsel %vm290, %v340, %v341
    %v343 = vrot.slane %v127, 2
    %v344 = vsel %vm290, %v341, %v343
    %v345 = vrot.slane %v128, 2
    %v346 = vsel %vm290, %v343, %v345
    %347 = vrot.lane.b32.xlu0 %v293, 56
    %v348 = vpop.permute.xlu0 %347
    %349 = vrot.lane.b32.xlu0 %v295, 56
    %v350 = vpop.permute.xlu0 %349
    %351 = vrot.lane.b32.xlu0 %v297, 56
    %v352 = vpop.permute.xlu0 %351
    %353 = vrot.lane.b32.xlu0 %v300, 56
    %v354 = vpop.permute.xlu0 %353
    %355 = vrot.lane.b32.xlu0 %v302, 56
    %v356 = vpop.permute.xlu0 %355
    %357 = vrot.lane.b32.xlu0 %v304, 56
    %v358 = vpop.permute.xlu0 %357
    %359 = vrot.lane.b32.xlu0 %v307, 56
    %v360 = vpop.permute.xlu0 %359
    %361 = vrot.lane.b32.xlu0 %v309, 56
    %v362 = vpop.permute.xlu0 %361
    %363 = vrot.lane.b32.xlu0 %v311, 56
    %v364 = vpop.permute.xlu0 %363
    %365 = vrot.lane.b32.xlu0 %v314, 56
    %v366 = vpop.permute.xlu0 %365
    %367 = vrot.lane.b32.xlu0 %v316, 56
    %v368 = vpop.permute.xlu0 %367
    %369 = vrot.lane.b32.xlu0 %v318, 56
    %v370 = vpop.permute.xlu0 %369
    %371 = vrot.lane.b32.xlu0 %v321, 56
    %v372 = vpop.permute.xlu0 %371
    %373 = vrot.lane.b32.xlu0 %v323, 56
    %v374 = vpop.permute.xlu0 %373
    %375 = vrot.lane.b32.xlu0 %v325, 56
    %v376 = vpop.permute.xlu0 %375
    %377 = vrot.lane.b32.xlu0 %v328, 56
    %v378 = vpop.permute.xlu0 %377
    %379 = vrot.lane.b32.xlu0 %v330, 56
    %v380 = vpop.permute.xlu0 %379
    %381 = vrot.lane.b32.xlu0 %v332, 56
    %v382 = vpop.permute.xlu0 %381
    %383 = vrot.lane.b32.xlu0 %v335, 56
    %v384 = vpop.permute.xlu0 %383
    %385 = vrot.lane.b32.xlu0 %v337, 56
    %v386 = vpop.permute.xlu0 %385
    %387 = vrot.lane.b32.xlu0 %v339, 56
    %v388 = vpop.permute.xlu0 %387
    %389 = vrot.lane.b32.xlu0 %v342, 56
    %v390 = vpop.permute.xlu0 %389
    %391 = vrot.lane.b32.xlu0 %v344, 56
    %v392 = vpop.permute.xlu0 %391
    %393 = vrot.lane.b32.xlu0 %v346, 56
    %v394 = vpop.permute.xlu0 %393
    %vm419 = vcmask 1044480
    %v420 = vrot.slane %v97, 3
    %v421 = vrot.slane %v98, 3
    %v422 = vsel %vm419, %v420, %v421
    %v423 = vrot.slane %v99, 3
    %v424 = vsel %vm419, %v421, %v423
    %v425 = vrot.slane %v100, 3
    %v426 = vsel %vm419, %v423, %v425
    %v427 = vrot.slane %v101, 3
    %v428 = vrot.slane %v102, 3
    %v429 = vsel %vm419, %v427, %v428
    %v430 = vrot.slane %v103, 3
    %v431 = vsel %vm419, %v428, %v430
    %v432 = vrot.slane %v104, 3
    %v433 = vsel %vm419, %v430, %v432
    %v434 = vrot.slane %v105, 3
    %v435 = vrot.slane %v106, 3
    %v436 = vsel %vm419, %v434, %v435
    %v437 = vrot.slane %v107, 3
    %v438 = vsel %vm419, %v435, %v437
    %v439 = vrot.slane %v108, 3
    %v440 = vsel %vm419, %v437, %v439
    %v441 = vrot.slane %v109, 3
    %v442 = vrot.slane %v110, 3
    %v443 = vsel %vm419, %v441, %v442
    %v444 = vrot.slane %v111, 3
    %v445 = vsel %vm419, %v442, %v444
    %v446 = vrot.slane %v112, 3
    %v447 = vsel %vm419, %v444, %v446
    %v448 = vrot.slane %v113, 3
    %v449 = vrot.slane %v114, 3
    %v450 = vsel %vm419, %v448, %v449
    %v451 = vrot.slane %v115, 3
    %v452 = vsel %vm419, %v449, %v451
    %v453 = vrot.slane %v116, 3
    %v454 = vsel %vm419, %v451, %v453
    %v455 = vrot.slane %v117, 3
    %v456 = vrot.slane %v118, 3
    %v457 = vsel %vm419, %v455, %v456
    %v458 = vrot.slane %v119, 3
    %v459 = vsel %vm419, %v456, %v458
    %v460 = vrot.slane %v120, 3
    %v461 = vsel %vm419, %v458, %v460
    %v462 = vrot.slane %v121, 3
    %v463 = vrot.slane %v122, 3
    %v464 = vsel %vm419, %v462, %v463
    %v465 = vrot.slane %v123, 3
    %v466 = vsel %vm419, %v463, %v465
    %v467 = vrot.slane %v124, 3
    %v468 = vsel %vm419, %v465, %v467
    %v469 = vrot.slane %v125, 3
    %v470 = vrot.slane %v126, 3
    %v471 = vsel %vm419, %v469, %v470
    %v472 = vrot.slane %v127, 3
    %v473 = vsel %vm419, %v470, %v472
    %v474 = vrot.slane %v128, 3
    %v475 = vsel %vm419, %v472, %v474
    %476 = vrot.lane.b32.xlu0 %v422, 84
    %v477 = vpop.permute.xlu0 %476
    %478 = vrot.lane.b32.xlu0 %v424, 84
    %v479 = vpop.permute.xlu0 %478
    %480 = vrot.lane.b32.xlu0 %v426, 84
    %v481 = vpop.permute.xlu0 %480
    %482 = vrot.lane.b32.xlu0 %v429, 84
    %v483 = vpop.permute.xlu0 %482
    %484 = vrot.lane.b32.xlu0 %v431, 84
    %v485 = vpop.permute.xlu0 %484
    %486 = vrot.lane.b32.xlu0 %v433, 84
    %v487 = vpop.permute.xlu0 %486
    %488 = vrot.lane.b32.xlu0 %v436, 84
    %v489 = vpop.permute.xlu0 %488
    %490 = vrot.lane.b32.xlu0 %v438, 84
    %v491 = vpop.permute.xlu0 %490
    %492 = vrot.lane.b32.xlu0 %v440, 84
    %v493 = vpop.permute.xlu0 %492
    %494 = vrot.lane.b32.xlu0 %v443, 84
    %v495 = vpop.permute.xlu0 %494
    %496 = vrot.lane.b32.xlu0 %v445, 84
    %v497 = vpop.permute.xlu0 %496
    %498 = vrot.lane.b32.xlu0 %v447, 84
    %v499 = vpop.permute.xlu0 %498
    %500 = vrot.lane.b32.xlu0 %v450, 84
    %v501 = vpop.permute.xlu0 %500
    %502 = vrot.lane.b32.xlu0 %v452, 84
    %v503 = vpop.permute.xlu0 %502
    %504 = vrot.lane.b32.xlu0 %v454, 84
    %v505 = vpop.permute.xlu0 %504
    %506 = vrot.lane.b32.xlu0 %v457, 84
    %v507 = vpop.permute.xlu0 %506
    %508 = vrot.lane.b32.xlu0 %v459, 84
    %v509 = vpop.permute.xlu0 %508
    %510 = vrot.lane.b32.xlu0 %v461, 84
    %v511 = vpop.permute.xlu0 %510
    %512 = vrot.lane.b32.xlu0 %v464, 84
    %v513 = vpop.permute.xlu0 %512
    %514 = vrot.lane.b32.xlu0 %v466, 84
    %v515 = vpop.permute.xlu0 %514
    %516 = vrot.lane.b32.xlu0 %v468, 84
    %v517 = vpop.permute.xlu0 %516
    %518 = vrot.lane.b32.xlu0 %v471, 84
    %v519 = vpop.permute.xlu0 %518
    %520 = vrot.lane.b32.xlu0 %v473, 84
    %v521 = vpop.permute.xlu0 %520
    %522 = vrot.lane.b32.xlu0 %v475, 84
    %v523 = vpop.permute.xlu0 %522
    %vm548 = vcmask 1043456
    %v549 = vrot.slane %v97, 4
    %v550 = vrot.slane %v98, 4
    %v551 = vsel %vm548, %v549, %v550
    %v552 = vrot.slane %v99, 4
    %v553 = vsel %vm548, %v550, %v552
    %v554 = vrot.slane %v100, 4
    %v555 = vsel %vm548, %v552, %v554
    %v556 = vrot.slane %v101, 4
    %v557 = vrot.slane %v102, 4
    %v558 = vsel %vm548, %v556, %v557
    %v559 = vrot.slane %v103, 4
    %v560 = vsel %vm548, %v557, %v559
    %v561 = vrot.slane %v104, 4
    %v562 = vsel %vm548, %v559, %v561
    %v563 = vrot.slane %v105, 4
    %v564 = vrot.slane %v106, 4
    %v565 = vsel %vm548, %v563, %v564
    %v566 = vrot.slane %v107, 4
    %v567 = vsel %vm548, %v564, %v566
    %v568 = vrot.slane %v108, 4
    %v569 = vsel %vm548, %v566, %v568
    %v570 = vrot.slane %v109, 4
    %v571 = vrot.slane %v110, 4
    %v572 = vsel %vm548, %v570, %v571
    %v573 = vrot.slane %v111, 4
    %v574 = vsel %vm548, %v571, %v573
    %v575 = vrot.slane %v112, 4
    %v576 = vsel %vm548, %v573, %v575
    %v577 = vrot.slane %v113, 4
    %v578 = vrot.slane %v114, 4
    %v579 = vsel %vm548, %v577, %v578
    %v580 = vrot.slane %v115, 4
    %v581 = vsel %vm548, %v578, %v580
    %v582 = vrot.slane %v116, 4
    %v583 = vsel %vm548, %v580, %v582
    %v584 = vrot.slane %v117, 4
    %v585 = vrot.slane %v118, 4
    %v586 = vsel %vm548, %v584, %v585
    %v587 = vrot.slane %v119, 4
    %v588 = vsel %vm548, %v585, %v587
    %v589 = vrot.slane %v120, 4
    %v590 = vsel %vm548, %v587, %v589
    %v591 = vrot.slane %v121, 4
    %v592 = vrot.slane %v122, 4
    %v593 = vsel %vm548, %v591, %v592
    %v594 = vrot.slane %v123, 4
    %v595 = vsel %vm548, %v592, %v594
    %v596 = vrot.slane %v124, 4
    %v597 = vsel %vm548, %v594, %v596
    %v598 = vrot.slane %v125, 4
    %v599 = vrot.slane %v126, 4
    %v600 = vsel %vm548, %v598, %v599
    %v601 = vrot.slane %v127, 4
    %v602 = vsel %vm548, %v599, %v601
    %v603 = vrot.slane %v128, 4
    %v604 = vsel %vm548, %v601, %v603
    %605 = vrot.lane.b32.xlu0 %v551, 112
    %v606 = vpop.permute.xlu0 %605
    %607 = vrot.lane.b32.xlu0 %v553, 112
    %v608 = vpop.permute.xlu0 %607
    %609 = vrot.lane.b32.xlu0 %v555, 112
    %v610 = vpop.permute.xlu0 %609
    %611 = vrot.lane.b32.xlu0 %v558, 112
    %v612 = vpop.permute.xlu0 %611
    %613 = vrot.lane.b32.xlu0 %v560, 112
    %v614 = vpop.permute.xlu0 %613
    %615 = vrot.lane.b32.xlu0 %v562, 112
    %v616 = vpop.permute.xlu0 %615
    %617 = vrot.lane.b32.xlu0 %v565, 112
    %v618 = vpop.permute.xlu0 %617
    %619 = vrot.lane.b32.xlu0 %v567, 112
    %v620 = vpop.permute.xlu0 %619
    %621 = vrot.lane.b32.xlu0 %v569, 112
    %v622 = vpop.permute.xlu0 %621
    %623 = vrot.lane.b32.xlu0 %v572, 112
    %v624 = vpop.permute.xlu0 %623
    %625 = vrot.lane.b32.xlu0 %v574, 112
    %v626 = vpop.permute.xlu0 %625
    %627 = vrot.lane.b32.xlu0 %v576, 112
    %v628 = vpop.permute.xlu0 %627
    %629 = vrot.lane.b32.xlu0 %v579, 112
    %v630 = vpop.permute.xlu0 %629
    %631 = vrot.lane.b32.xlu0 %v581, 112
    %v632 = vpop.permute.xlu0 %631
    %633 = vrot.lane.b32.xlu0 %v583, 112
    %v634 = vpop.permute.xlu0 %633
    %635 = vrot.lane.b32.xlu0 %v586, 112
    %v636 = vpop.permute.xlu0 %635
    %637 = vrot.lane.b32.xlu0 %v588, 112
    %v638 = vpop.permute.xlu0 %637
    %639 = vrot.lane.b32.xlu0 %v590, 112
    %v640 = vpop.permute.xlu0 %639
    %641 = vrot.lane.b32.xlu0 %v593, 112
    %v642 = vpop.permute.xlu0 %641
    %643 = vrot.lane.b32.xlu0 %v595, 112
    %v644 = vpop.permute.xlu0 %643
    %645 = vrot.lane.b32.xlu0 %v597, 112
    %v646 = vpop.permute.xlu0 %645
    %647 = vrot.lane.b32.xlu0 %v600, 112
    %v648 = vpop.permute.xlu0 %647
    %649 = vrot.lane.b32.xlu0 %v602, 112
    %v650 = vpop.permute.xlu0 %649
    %651 = vrot.lane.b32.xlu0 %v604, 112
    %v652 = vpop.permute.xlu0 %651
    %vm677 = vcmask 228352
    %v678 = vsel %vm677, %v97, %v219
    %v679 = vsel %vm677, %v98, %v221
    %v680 = vsel %vm677, %v99, %v223
    %v681 = vsel %vm677, %v101, %v225
    %v682 = vsel %vm677, %v102, %v227
    %v683 = vsel %vm677, %v103, %v229
    %v684 = vsel %vm677, %v105, %v231
    %v685 = vsel %vm677, %v106, %v233
    %v686 = vsel %vm677, %v107, %v235
    %v687 = vsel %vm677, %v109, %v237
    %v688 = vsel %vm677, %v110, %v239
    %v689 = vsel %vm677, %v111, %v241
    %v690 = vsel %vm677, %v113, %v243
    %v691 = vsel %vm677, %v114, %v245
    %v692 = vsel %vm677, %v115, %v247
    %v693 = vsel %vm677, %v117, %v249
    %v694 = vsel %vm677, %v118, %v251
    %v695 = vsel %vm677, %v119, %v253
    %v696 = vsel %vm677, %v121, %v255
    %v697 = vsel %vm677, %v122, %v257
    %v698 = vsel %vm677, %v123, %v259
    %v699 = vsel %vm677, %v125, %v261
    %v700 = vsel %vm677, %v126, %v263
    %v701 = vsel %vm677, %v127, %v265
    %vm702 = vcmask 457728
    %v703 = vsel %vm702, %v678, %v348
    %v704 = vsel %vm702, %v679, %v350
    %v705 = vsel %vm702, %v680, %v352
    %v706 = vsel %vm702, %v681, %v354
    %v707 = vsel %vm702, %v682, %v356
    %v708 = vsel %vm702, %v683, %v358
    %v709 = vsel %vm702, %v684, %v360
    %v710 = vsel %vm702, %v685, %v362
    %v711 = vsel %vm702, %v686, %v364
    %v712 = vsel %vm702, %v687, %v366
    %v713 = vsel %vm702, %v688, %v368
    %v714 = vsel %vm702, %v689, %v370
    %v715 = vsel %vm702, %v690, %v372
    %v716 = vsel %vm702, %v691, %v374
    %v717 = vsel %vm702, %v692, %v376
    %v718 = vsel %vm702, %v693, %v378
    %v719 = vsel %vm702, %v694, %v380
    %v720 = vsel %vm702, %v695, %v382
    %v721 = vsel %vm702, %v696, %v384
    %v722 = vsel %vm702, %v697, %v386
    %v723 = vsel %vm702, %v698, %v388
    %v724 = vsel %vm702, %v699, %v390
    %v725 = vsel %vm702, %v700, %v392
    %v726 = vsel %vm702, %v701, %v394
    %vm727 = vcmask 687104
    %v728 = vsel %vm727, %v703, %v477
    %v729 = vsel %vm727, %v704, %v479
    %v730 = vsel %vm727, %v705, %v481
    %v731 = vsel %vm727, %v706, %v483
    %v732 = vsel %vm727, %v707, %v485
    %v733 = vsel %vm727, %v708, %v487
    %v734 = vsel %vm727, %v709, %v489
    %v735 = vsel %vm727, %v710, %v491
    %v736 = vsel %vm727, %v711, %v493
    %v737 = vsel %vm727, %v712, %v495
    %v738 = vsel %vm727, %v713, %v497
    %v739 = vsel %vm727, %v714, %v499
    %v740 = vsel %vm727, %v715, %v501
    %v741 = vsel %vm727, %v716, %v503
    %v742 = vsel %vm727, %v717, %v505
    %v743 = vsel %vm727, %v718, %v507
    %v744 = vsel %vm727, %v719, %v509
    %v745 = vsel %vm727, %v720, %v511
    %v746 = vsel %vm727, %v721, %v513
    %v747 = vsel %vm727, %v722, %v515
    %v748 = vsel %vm727, %v723, %v517
    %v749 = vsel %vm727, %v724, %v519
    %v750 = vsel %vm727, %v725, %v521
    %v751 = vsel %vm727, %v726, %v523
    %vm752 = vcmask 916480
    %v753 = vsel %vm752, %v728, %v606
    %v754 = vsel %vm752, %v729, %v608
    %v755 = vsel %vm752, %v730, %v610
    %v756 = vsel %vm752, %v731, %v612
    %v757 = vsel %vm752, %v732, %v614
    %v758 = vsel %vm752, %v733, %v616
    %v759 = vsel %vm752, %v734, %v618
    %v760 = vsel %vm752, %v735, %v620
    %v761 = vsel %vm752, %v736, %v622
    %v762 = vsel %vm752, %v737, %v624
    %v763 = vsel %vm752, %v738, %v626
    %v764 = vsel %vm752, %v739, %v628
    %v765 = vsel %vm752, %v740, %v630
    %v766 = vsel %vm752, %v741, %v632
    %v767 = vsel %vm752, %v742, %v634
    %v768 = vsel %vm752, %v743, %v636
    %v769 = vsel %vm752, %v744, %v638
    %v770 = vsel %vm752, %v745, %v640
    %v771 = vsel %vm752, %v746, %v642
    %v772 = vsel %vm752, %v747, %v644
    %v773 = vsel %vm752, %v748, %v646
    %v774 = vsel %vm752, %v749, %v648
    %v775 = vsel %vm752, %v750, %v650
    %v776 = vsel %vm752, %v751, %v652
    %v777 = vpack.c.bf16 %v754, %v753
    %v778 = vpack.c.bf16 %v608, %v606
    %v779 = vpack.c.bf16 %v756, %v755
    %v780 = vpack.c.bf16 %v612, %v610
    %v781 = vpack.c.bf16 %v758, %v757
    %v782 = vpack.c.bf16 %v616, %v614
    %v783 = vpack.c.bf16 %v760, %v759
    %v784 = vpack.c.bf16 %v620, %v618
    %v785 = vpack.c.bf16 %v762, %v761
    %v786 = vpack.c.bf16 %v624, %v622
    %v787 = vpack.c.bf16 %v764, %v763
    %v788 = vpack.c.bf16 %v628, %v626
    %v789 = vpack.c.bf16 %v766, %v765
    %v790 = vpack.c.bf16 %v632, %v630
    %v791 = vpack.c.bf16 %v768, %v767
    %v792 = vpack.c.bf16 %v636, %v634
    %v793 = vpack.c.bf16 %v770, %v769
    %v794 = vpack.c.bf16 %v640, %v638
    %v795 = vpack.c.bf16 %v772, %v771
    %v796 = vpack.c.bf16 %v644, %v642
    %v797 = vpack.c.bf16 %v774, %v773
    %v798 = vpack.c.bf16 %v648, %v646
    %v799 = vpack.c.bf16 %v776, %v775
    %v800 = vpack.c.bf16 %v652, %v650
    %v801 = vld [vmem:[%s1] sm:$0xff]
    %v802 = vld [vmem:[%s1 + $0x8] sm:$0xff]
    %v803 = vld [vmem:[%s1 + $0x10] sm:$0xff]
    %v804 = vld [vmem:[%s1 + $0x18] sm:$0xff]
    %v805 = vld [vmem:[%s1 + $0x20] sm:$0xff]
    %v806 = vld [vmem:[%s1 + $0x28] sm:$0xff]
    %v807 = vld [vmem:[%s1 + $0x30] sm:$0xff]
    %v808 = vld [vmem:[%s1 + $0x38] sm:$0xff]
    %v809 = vld [vmem:[%s1 + $0x40] sm:$0xff]
    %v810 = vld [vmem:[%s1 + $0x48] sm:$0xff]
    %v811 = vld [vmem:[%s1 + $0x50] sm:$0xff]
    %v812 = vld [vmem:[%s1 + $0x58] sm:$0xff]
    %v813 = vld [vmem:[%s1 + $0x60] sm:$0xff]
    %v814 = vld [vmem:[%s1 + $0x68] sm:$0xff]
    %v815 = vld [vmem:[%s1 + $0x70] sm:$0xff]
    %v816 = vld [vmem:[%s1 + $0x78] sm:$0xff]
    %v817 = vld [vmem:[%s1 + $0x80] sm:$0xff]
    %v818 = vld [vmem:[%s1 + $0x88] sm:$0x33]
    %v837 = vunpack.c.l.b16 %v801
    %v838 = vunpack.c.h.b16 %v801
    %v839 = vunpack.c.l.b16 %v802
    %v840 = vunpack.c.h.b16 %v802
    %v841 = vunpack.c.l.b16 %v803
    %v842 = vunpack.c.h.b16 %v803
    %v843 = vunpack.c.l.b16 %v804
    %v844 = vunpack.c.h.b16 %v804
    %v845 = vunpack.c.l.b16 %v805
    %v846 = vunpack.c.h.b16 %v805
    %v847 = vunpack.c.l.b16 %v806
    %v848 = vunpack.c.h.b16 %v806
    %v849 = vunpack.c.l.b16 %v807
    %v850 = vunpack.c.h.b16 %v807
    %v851 = vunpack.c.l.b16 %v808
    %v852 = vunpack.c.h.b16 %v808
    %v853 = vunpack.c.l.b16 %v809
    %v854 = vunpack.c.h.b16 %v809
    %v855 = vunpack.c.l.b16 %v810
    %v856 = vunpack.c.h.b16 %v810
    %v857 = vunpack.c.l.b16 %v811
    %v858 = vunpack.c.h.b16 %v811
    %v859 = vunpack.c.l.b16 %v812
    %v860 = vunpack.c.h.b16 %v812
    %v861 = vunpack.c.l.b16 %v813
    %v862 = vunpack.c.h.b16 %v813
    %v863 = vunpack.c.l.b16 %v814
    %v864 = vunpack.c.h.b16 %v814
    %v865 = vunpack.c.l.b16 %v815
    %v866 = vunpack.c.h.b16 %v815
    %v867 = vunpack.c.l.b16 %v816
    %v868 = vunpack.c.h.b16 %v816
    %v869 = vunpack.c.l.b16 %v817
    %v870 = vunpack.c.h.b16 %v817
    %v871 = vunpack.c.l.b16 %v818
    %v872 = vunpack.c.h.b16 %v818
    %v873 = vpack.c.b16 %v839, %v837
    %v874 = vpack.c.b16 %v840, %v838
    %v875 = vpack.c.b16 %v843, %v841
    %v876 = vpack.c.b16 %v844, %v842
    %v877 = vpack.c.b16 %v847, %v845
    %v878 = vpack.c.b16 %v848, %v846
    %v879 = vpack.c.b16 %v851, %v849
    %v880 = vpack.c.b16 %v852, %v850
    %v881 = vpack.c.b16 %v855, %v853
    %v882 = vpack.c.b16 %v856, %v854
    %v883 = vpack.c.b16 %v859, %v857
    %v884 = vpack.c.b16 %v860, %v858
    %v885 = vpack.c.b16 %v863, %v861
    %v886 = vpack.c.b16 %v864, %v862
    %v887 = vpack.c.b16 %v867, %v865
    %v888 = vpack.c.b16 %v868, %v866
    %v889 = vpack.c.b16 %v871, %v869
    %v890 = vpack.c.b16 %v872, %v870
    %vm907 = vcmask 97280
    %v909 = vsel %vm907, %v778, 0
    %v912 = vsel %vm907, %v780, 0
    %v915 = vsel %vm907, %v782, 0
    %v918 = vsel %vm907, %v784, 0
    %v921 = vsel %vm907, %v786, 0
    %v924 = vsel %vm907, %v788, 0
    %v927 = vsel %vm907, %v790, 0
    %v930 = vsel %vm907, %v792, 0
    %v933 = vsel %vm907, %v794, 0
    %v936 = vsel %vm907, %v796, 0
    %v939 = vsel %vm907, %v798, 0
    %v942 = vsel %vm907, %v800, 0
    %v945 = vsel %vm290, %v889, 0
    %v948 = vsel %vm290, %v890, 0
    %950 = vmatpush.bf16.msra.mxu0 %v887
    %951 = vmatpush.bf16.msra.mxu0 %v885
    %952 = vmatpush.bf16.msra.mxu0 %v883
    %953 = vmatpush.bf16.msra.mxu0 %v881
    %954 = vmatpush.bf16.msra.mxu0 %v879
    %955 = vmatpush.bf16.msra.mxu0 %v877
    %956 = vmatpush.bf16.msra.mxu0 %v875
    %957 = vmatpush.bf16.msra.mxu0 %v873
    %958 = vmatmul.bf16.gmra.mxu0 %v777
    %v959 = vpop.f32.mrf.mxu0
    %v960 = vadd.f32 0.0, %v959
    %v961 = vpop.f32.mrf.mxu0
    %v962 = vadd.f32 0.0, %v961
    %963 = vmatmul.bf16.gmra.mxu0 %v779
    %v964 = vpop.f32.mrf.mxu0
    %v965 = vadd.f32 0.0, %v964
    %v966 = vpop.f32.mrf.mxu0
    %v967 = vadd.f32 0.0, %v966
    %968 = vmatmul.bf16.gmra.mxu0 %v781
    %v969 = vpop.f32.mrf.mxu0
    %v970 = vadd.f32 0.0, %v969
    %v971 = vpop.f32.mrf.mxu0
    %v972 = vadd.f32 0.0, %v971
    %973 = vmatmul.bf16.gmra.mxu0 %v783
    %v974 = vpop.f32.mrf.mxu0
    %v975 = vadd.f32 0.0, %v974
    %v976 = vpop.f32.mrf.mxu0
    %v977 = vadd.f32 0.0, %v976
    %978 = vmatmul.bf16.gmra.mxu0 %v785
    %v979 = vpop.f32.mrf.mxu0
    %v980 = vadd.f32 0.0, %v979
    %v981 = vpop.f32.mrf.mxu0
    %v982 = vadd.f32 0.0, %v981
    %983 = vmatmul.bf16.gmra.mxu0 %v787
    %v984 = vpop.f32.mrf.mxu0
    %v985 = vadd.f32 0.0, %v984
    %v986 = vpop.f32.mrf.mxu0
    %v987 = vadd.f32 0.0, %v986
    %988 = vmatmul.bf16.gmra.mxu0 %v789
    %v989 = vpop.f32.mrf.mxu0
    %v990 = vadd.f32 0.0, %v989
    %v991 = vpop.f32.mrf.mxu0
    %v992 = vadd.f32 0.0, %v991
    %993 = vmatmul.bf16.gmra.mxu0 %v791
    %v994 = vpop.f32.mrf.mxu0
    %v995 = vadd.f32 0.0, %v994
    %v996 = vpop.f32.mrf.mxu0
    %v997 = vadd.f32 0.0, %v996
    %998 = vmatmul.bf16.gmra.mxu0 %v793
    %v999 = vpop.f32.mrf.mxu0
    %v1000 = vadd.f32 0.0, %v999
    %v1001 = vpop.f32.mrf.mxu0
    %v1002 = vadd.f32 0.0, %v1001
    %1003 = vmatmul.bf16.gmra.mxu0 %v795
    %v1004 = vpop.f32.mrf.mxu0
    %v1005 = vadd.f32 0.0, %v1004
    %v1006 = vpop.f32.mrf.mxu0
    %v1007 = vadd.f32 0.0, %v1006
    %1008 = vmatmul.bf16.gmra.mxu0 %v797
    %v1009 = vpop.f32.mrf.mxu0
    %v1010 = vadd.f32 0.0, %v1009
    %v1011 = vpop.f32.mrf.mxu0
    %v1012 = vadd.f32 0.0, %v1011
    %1013 = vmatmul.bf16.gmra.mxu0 %v799
    %v1014 = vpop.f32.mrf.mxu0
    %v1015 = vadd.f32 0.0, %v1014
    %v1016 = vpop.f32.mrf.mxu0
    %v1017 = vadd.f32 0.0, %v1016
    %1018 = vdwg.mxu0
    %1019 = vmatpush.bf16.msra.mxu0 0
    %1020 = vmatpush.bf16.msra.mxu0 0
    %1021 = vmatpush.bf16.msra.mxu0 0
    %1022 = vmatpush.bf16.msra.mxu0 0
    %1023 = vmatpush.bf16.msra.mxu0 0
    %1024 = vmatpush.bf16.msra.mxu0 0
    %1025 = vmatpush.bf16.msra.mxu0 0
    %1026 = vmatpush.bf16.msra.mxu0 %v945
    %1027 = vmatmul.bf16.gmra.mxu0 %v909
    %v1028 = vpop.f32.mrf.mxu0
    %v1029 = vadd.f32 %v960, %v1028
    %v1030 = vpop.f32.mrf.mxu0
    %v1031 = vadd.f32 %v962, %v1030
    %1032 = vmatmul.bf16.gmra.mxu0 %v912
    %v1033 = vpop.f32.mrf.mxu0
    %v1034 = vadd.f32 %v965, %v1033
    %v1035 = vpop.f32.mrf.mxu0
    %v1036 = vadd.f32 %v967, %v1035
    %1037 = vmatmul.bf16.gmra.mxu0 %v915
    %v1038 = vpop.f32.mrf.mxu0
    %v1039 = vadd.f32 %v970, %v1038
    %v1040 = vpop.f32.mrf.mxu0
    %v1041 = vadd.f32 %v972, %v1040
    %1042 = vmatmul.bf16.gmra.mxu0 %v918
    %v1043 = vpop.f32.mrf.mxu0
    %v1044 = vadd.f32 %v975, %v1043
    %v1045 = vpop.f32.mrf.mxu0
    %v1046 = vadd.f32 %v977, %v1045
    %1047 = vmatmul.bf16.gmra.mxu0 %v921
    %v1048 = vpop.f32.mrf.mxu0
    %v1049 = vadd.f32 %v980, %v1048
    %v1050 = vpop.f32.mrf.mxu0
    %v1051 = vadd.f32 %v982, %v1050
    %1052 = vmatmul.bf16.gmra.mxu0 %v924
    %v1053 = vpop.f32.mrf.mxu0
    %v1054 = vadd.f32 %v985, %v1053
    %v1055 = vpop.f32.mrf.mxu0
    %v1056 = vadd.f32 %v987, %v1055
    %1057 = vmatmul.bf16.gmra.mxu0 %v927
    %v1058 = vpop.f32.mrf.mxu0
    %v1059 = vadd.f32 %v990, %v1058
    %v1060 = vpop.f32.mrf.mxu0
    %v1061 = vadd.f32 %v992, %v1060
    %1062 = vmatmul.bf16.gmra.mxu0 %v930
    %v1063 = vpop.f32.mrf.mxu0
    %v1064 = vadd.f32 %v995, %v1063
    %v1065 = vpop.f32.mrf.mxu0
    %v1066 = vadd.f32 %v997, %v1065
    %1067 = vmatmul.bf16.gmra.mxu0 %v933
    %v1068 = vpop.f32.mrf.mxu0
    %v1069 = vadd.f32 %v1000, %v1068
    %v1070 = vpop.f32.mrf.mxu0
    %v1071 = vadd.f32 %v1002, %v1070
    %1072 = vmatmul.bf16.gmra.mxu0 %v936
    %v1073 = vpop.f32.mrf.mxu0
    %v1074 = vadd.f32 %v1005, %v1073
    %v1075 = vpop.f32.mrf.mxu0
    %v1076 = vadd.f32 %v1007, %v1075
    %1077 = vmatmul.bf16.gmra.mxu0 %v939
    %v1078 = vpop.f32.mrf.mxu0
    %v1079 = vadd.f32 %v1010, %v1078
    %v1080 = vpop.f32.mrf.mxu0
    %v1081 = vadd.f32 %v1012, %v1080
    %1082 = vmatmul.bf16.gmra.mxu0 %v942
    %v1083 = vpop.f32.mrf.mxu0
    %v1084 = vadd.f32 %v1015, %v1083
    %v1085 = vpop.f32.mrf.mxu0
    %v1086 = vadd.f32 %v1017, %v1085
    %1087 = vdwg.mxu0
    %1088 = vmatpush.bf16.msra.mxu0 %v888
    %1089 = vmatpush.bf16.msra.mxu0 %v886
    %1090 = vmatpush.bf16.msra.mxu0 %v884
    %1091 = vmatpush.bf16.msra.mxu0 %v882
    %1092 = vmatpush.bf16.msra.mxu0 %v880
    %1093 = vmatpush.bf16.msra.mxu0 %v878
    %1094 = vmatpush.bf16.msra.mxu0 %v876
    %1095 = vmatpush.bf16.msra.mxu0 %v874
    %1096 = vmatmul.bf16.gmra.mxu0 %v777
    %v1097 = vpop.f32.mrf.mxu0
    %v1098 = vadd.f32 0.0, %v1097
    %v1099 = vpop.f32.mrf.mxu0
    %v1100 = vadd.f32 0.0, %v1099
    %1101 = vmatmul.bf16.gmra.mxu0 %v779
    %v1102 = vpop.f32.mrf.mxu0
    %v1103 = vadd.f32 0.0, %v1102
    %v1104 = vpop.f32.mrf.mxu0
    %v1105 = vadd.f32 0.0, %v1104
    %1106 = vmatmul.bf16.gmra.mxu0 %v781
    %v1107 = vpop.f32.mrf.mxu0
    %v1108 = vadd.f32 0.0, %v1107
    %v1109 = vpop.f32.mrf.mxu0
    %v1110 = vadd.f32 0.0, %v1109
    %1111 = vmatmul.bf16.gmra.mxu0 %v783
    %v1112 = vpop.f32.mrf.mxu0
    %v1113 = vadd.f32 0.0, %v1112
    %v1114 = vpop.f32.mrf.mxu0
    %v1115 = vadd.f32 0.0, %v1114
    %1116 = vmatmul.bf16.gmra.mxu0 %v785
    %v1117 = vpop.f32.mrf.mxu0
    %v1118 = vadd.f32 0.0, %v1117
    %v1119 = vpop.f32.mrf.mxu0
    %v1120 = vadd.f32 0.0, %v1119
    %1121 = vmatmul.bf16.gmra.mxu0 %v787
    %v1122 = vpop.f32.mrf.mxu0
    %v1123 = vadd.f32 0.0, %v1122
    %v1124 = vpop.f32.mrf.mxu0
    %v1125 = vadd.f32 0.0, %v1124
    %1126 = vmatmul.bf16.gmra.mxu0 %v789
    %v1127 = vpop.f32.mrf.mxu0
    %v1128 = vadd.f32 0.0, %v1127
    %v1129 = vpop.f32.mrf.mxu0
    %v1130 = vadd.f32 0.0, %v1129
    %1131 = vmatmul.bf16.gmra.mxu0 %v791
    %v1132 = vpop.f32.mrf.mxu0
    %v1133 = vadd.f32 0.0, %v1132
    %v1134 = vpop.f32.mrf.mxu0
    %v1135 = vadd.f32 0.0, %v1134
    %1136 = vmatmul.bf16.gmra.mxu0 %v793
    %v1137 = vpop.f32.mrf.mxu0
    %v1138 = vadd.f32 0.0, %v1137
    %v1139 = vpop.f32.mrf.mxu0
    %v1140 = vadd.f32 0.0, %v1139
    %1141 = vmatmul.bf16.gmra.mxu0 %v795
    %v1142 = vpop.f32.mrf.mxu0
    %v1143 = vadd.f32 0.0, %v1142
    %v1144 = vpop.f32.mrf.mxu0
    %v1145 = vadd.f32 0.0, %v1144
    %1146 = vmatmul.bf16.gmra.mxu0 %v797
    %v1147 = vpop.f32.mrf.mxu0
    %v1148 = vadd.f32 0.0, %v1147
    %v1149 = vpop.f32.mrf.mxu0
    %v1150 = vadd.f32 0.0, %v1149
    %1151 = vmatmul.bf16.gmra.mxu0 %v799
    %v1152 = vpop.f32.mrf.mxu0
    %v1153 = vadd.f32 0.0, %v1152
    %v1154 = vpop.f32.mrf.mxu0
    %v1155 = vadd.f32 0.0, %v1154
    %1156 = vdwg.mxu0
    %1157 = vmatpush.bf16.msra.mxu0 0
    %1158 = vmatpush.bf16.msra.mxu0 0
    %1159 = vmatpush.bf16.msra.mxu0 0
    %1160 = vmatpush.bf16.msra.mxu0 0
    %1161 = vmatpush.bf16.msra.mxu0 0
    %1162 = vmatpush.bf16.msra.mxu0 0
    %1163 = vmatpush.bf16.msra.mxu0 0
    %1164 = vmatpush.bf16.msra.mxu0 %v948
    %1165 = vmatmul.bf16.gmra.mxu0 %v909
    %v1166 = vpop.f32.mrf.mxu0
    %v1167 = vadd.f32 %v1098, %v1166
    %v1168 = vpop.f32.mrf.mxu0
    %v1169 = vadd.f32 %v1100, %v1168
    %1170 = vmatmul.bf16.gmra.mxu0 %v912
    %v1171 = vpop.f32.mrf.mxu0
    %v1172 = vadd.f32 %v1103, %v1171
    %v1173 = vpop.f32.mrf.mxu0
    %v1174 = vadd.f32 %v1105, %v1173
    %1175 = vmatmul.bf16.gmra.mxu0 %v915
    %v1176 = vpop.f32.mrf.mxu0
    %v1177 = vadd.f32 %v1108, %v1176
    %v1178 = vpop.f32.mrf.mxu0
    %v1179 = vadd.f32 %v1110, %v1178
    %1180 = vmatmul.bf16.gmra.mxu0 %v918
    %v1181 = vpop.f32.mrf.mxu0
    %v1182 = vadd.f32 %v1113, %v1181
    %v1183 = vpop.f32.mrf.mxu0
    %v1184 = vadd.f32 %v1115, %v1183
    %1185 = vmatmul.bf16.gmra.mxu0 %v921
    %v1186 = vpop.f32.mrf.mxu0
    %v1187 = vadd.f32 %v1118, %v1186
    %v1188 = vpop.f32.mrf.mxu0
    %v1189 = vadd.f32 %v1120, %v1188
    %1190 = vmatmul.bf16.gmra.mxu0 %v924
    %v1191 = vpop.f32.mrf.mxu0
    %v1192 = vadd.f32 %v1123, %v1191
    %v1193 = vpop.f32.mrf.mxu0
    %v1194 = vadd.f32 %v1125, %v1193
    %1195 = vmatmul.bf16.gmra.mxu0 %v927
    %v1196 = vpop.f32.mrf.mxu0
    %v1197 = vadd.f32 %v1128, %v1196
    %v1198 = vpop.f32.mrf.mxu0
    %v1199 = vadd.f32 %v1130, %v1198
    %1200 = vmatmul.bf16.gmra.mxu0 %v930
    %v1201 = vpop.f32.mrf.mxu0
    %v1202 = vadd.f32 %v1133, %v1201
    %v1203 = vpop.f32.mrf.mxu0
    %v1204 = vadd.f32 %v1135, %v1203
    %1205 = vmatmul.bf16.gmra.mxu0 %v933
    %v1206 = vpop.f32.mrf.mxu0
    %v1207 = vadd.f32 %v1138, %v1206
    %v1208 = vpop.f32.mrf.mxu0
    %v1209 = vadd.f32 %v1140, %v1208
    %1210 = vmatmul.bf16.gmra.mxu0 %v936
    %v1211 = vpop.f32.mrf.mxu0
    %v1212 = vadd.f32 %v1143, %v1211
    %v1213 = vpop.f32.mrf.mxu0
    %v1214 = vadd.f32 %v1145, %v1213
    %1215 = vmatmul.bf16.gmra.mxu0 %v939
    %v1216 = vpop.f32.mrf.mxu0
    %v1217 = vadd.f32 %v1148, %v1216
    %v1218 = vpop.f32.mrf.mxu0
    %v1219 = vadd.f32 %v1150, %v1218
    %1220 = vmatmul.bf16.gmra.mxu0 %v942
    %v1221 = vpop.f32.mrf.mxu0
    %v1222 = vadd.f32 %v1153, %v1221
    %v1223 = vpop.f32.mrf.mxu0
    %v1224 = vadd.f32 %v1155, %v1223
    %1225 = vdwg.mxu0
    %v1226 = vld [vmem:[%s2] sm:$0xff]
    %v1227 = vld [vmem:[%s2 + $0x8] sm:$0xff]
    %v1228 = vld [vmem:[%s2 + $0x10] sm:$0xff]
    %v1229 = vld [vmem:[%s2 + $0x18] sm:$0xff]
    %v1230 = vld [vmem:[%s2 + $0x20] sm:$0xff]
    %v1231 = vld [vmem:[%s2 + $0x28] sm:$0xff]
    %v1232 = vld [vmem:[%s2 + $0x30] sm:$0xff]
    %v1233 = vld [vmem:[%s2 + $0x38] sm:$0xff]
    %v1234 = vld [vmem:[%s2 + $0x40] sm:$0xff]
    %v1235 = vld [vmem:[%s2 + $0x48] sm:$0xff]
    %v1236 = vld [vmem:[%s2 + $0x50] sm:$0xff]
    %v1237 = vld [vmem:[%s2 + $0x58] sm:$0xff]
    %v1238 = vld [vmem:[%s2 + $0x60] sm:$0xff]
    %v1239 = vld [vmem:[%s2 + $0x68] sm:$0xff]
    %v1240 = vld [vmem:[%s2 + $0x70] sm:$0xff]
    %v1241 = vld [vmem:[%s2 + $0x78] sm:$0xff]
    %v1242 = vld [vmem:[%s2 + $0x80] sm:$0xff]
    %v1243 = vld [vmem:[%s2 + $0x88] sm:$0x33]
    %v1262 = vunpack.c.l.b16 %v1226
    %v1263 = vunpack.c.h.b16 %v1226
    %v1264 = vunpack.c.l.b16 %v1227
    %v1265 = vunpack.c.h.b16 %v1227
    %v1266 = vunpack.c.l.b16 %v1228
    %v1267 = vunpack.c.h.b16 %v1228
    %v1268 = vunpack.c.l.b16 %v1229
    %v1269 = vunpack.c.h.b16 %v1229
    %v1270 = vunpack.c.l.b16 %v1230
    %v1271 = vunpack.c.h.b16 %v1230
    %v1272 = vunpack.c.l.b16 %v1231
    %v1273 = vunpack.c.h.b16 %v1231
    %v1274 = vunpack.c.l.b16 %v1232
    %v1275 = vunpack.c.h.b16 %v1232
    %v1276 = vunpack.c.l.b16 %v1233
    %v1277 = vunpack.c.h.b16 %v1233
    %v1278 = vunpack.c.l.b16 %v1234
    %v1279 = vunpack.c.h.b16 %v1234
    %v1280 = vunpack.c.l.b16 %v1235
    %v1281 = vunpack.c.h.b16 %v1235
    %v1282 = vunpack.c.l.b16 %v1236
    %v1283 = vunpack.c.h.b16 %v1236
    %v1284 = vunpack.c.l.b16 %v1237
    %v1285 = vunpack.c.h.b16 %v1237
    %v1286 = vunpack.c.l.b16 %v1238
    %v1287 = vunpack.c.h.b16 %v1238
    %v1288 = vunpack.c.l.b16 %v1239
    %v1289 = vunpack.c.h.b16 %v1239
    %v1290 = vunpack.c.l.b16 %v1240
    %v1291 = vunpack.c.h.b16 %v1240
    %v1292 = vunpack.c.l.b16 %v1241
    %v1293 = vunpack.c.h.b16 %v1241
    %v1294 = vunpack.c.l.b16 %v1242
    %v1295 = vunpack.c.h.b16 %v1242
    %v1296 = vunpack.c.l.b16 %v1243
    %v1297 = vunpack.c.h.b16 %v1243
    %v1298 = vpack.c.b16 %v1264, %v1262
    %v1299 = vpack.c.b16 %v1265, %v1263
    %v1300 = vpack.c.b16 %v1268, %v1266
    %v1301 = vpack.c.b16 %v1269, %v1267
    %v1302 = vpack.c.b16 %v1272, %v1270
    %v1303 = vpack.c.b16 %v1273, %v1271
    %v1304 = vpack.c.b16 %v1276, %v1274
    %v1305 = vpack.c.b16 %v1277, %v1275
    %v1306 = vpack.c.b16 %v1280, %v1278
    %v1307 = vpack.c.b16 %v1281, %v1279
    %v1308 = vpack.c.b16 %v1284, %v1282
    %v1309 = vpack.c.b16 %v1285, %v1283
    %v1310 = vpack.c.b16 %v1288, %v1286
    %v1311 = vpack.c.b16 %v1289, %v1287
    %v1312 = vpack.c.b16 %v1292, %v1290
    %v1313 = vpack.c.b16 %v1293, %v1291
    %v1314 = vpack.c.b16 %v1296, %v1294
    %v1315 = vpack.c.b16 %v1297, %v1295
    %v1333 = vsel %vm290, %v1314, 0
    %v1336 = vsel %vm290, %v1315, 0
    %1338 = vmatpush.bf16.msra.mxu0 %v1312
    %1339 = vmatpush.bf16.msra.mxu0 %v1310
    %1340 = vmatpush.bf16.msra.mxu0 %v1308
    %1341 = vmatpush.bf16.msra.mxu0 %v1306
    %1342 = vmatpush.bf16.msra.mxu0 %v1304
    %1343 = vmatpush.bf16.msra.mxu0 %v1302
    %1344 = vmatpush.bf16.msra.mxu0 %v1300
    %1345 = vmatpush.bf16.msra.mxu0 %v1298
    %1346 = vmatmul.bf16.gmra.mxu0 %v777
    %v1347 = vpop.f32.mrf.mxu0
    %v1348 = vadd.f32 0.0, %v1347
    %v1349 = vpop.f32.mrf.mxu0
    %v1350 = vadd.f32 0.0, %v1349
    %1351 = vmatmul.bf16.gmra.mxu0 %v779
    %v1352 = vpop.f32.mrf.mxu0
    %v1353 = vadd.f32 0.0, %v1352
    %v1354 = vpop.f32.mrf.mxu0
    %v1355 = vadd.f32 0.0, %v1354
    %1356 = vmatmul.bf16.gmra.mxu0 %v781
    %v1357 = vpop.f32.mrf.mxu0
    %v1358 = vadd.f32 0.0, %v1357
    %v1359 = vpop.f32.mrf.mxu0
    %v1360 = vadd.f32 0.0, %v1359
    %1361 = vmatmul.bf16.gmra.mxu0 %v783
    %v1362 = vpop.f32.mrf.mxu0
    %v1363 = vadd.f32 0.0, %v1362
    %v1364 = vpop.f32.mrf.mxu0
    %v1365 = vadd.f32 0.0, %v1364
    %1366 = vmatmul.bf16.gmra.mxu0 %v785
    %v1367 = vpop.f32.mrf.mxu0
    %v1368 = vadd.f32 0.0, %v1367
    %v1369 = vpop.f32.mrf.mxu0
    %v1370 = vadd.f32 0.0, %v1369
    %1371 = vmatmul.bf16.gmra.mxu0 %v787
    %v1372 = vpop.f32.mrf.mxu0
    %v1373 = vadd.f32 0.0, %v1372
    %v1374 = vpop.f32.mrf.mxu0
    %v1375 = vadd.f32 0.0, %v1374
    %1376 = vmatmul.bf16.gmra.mxu0 %v789
    %v1377 = vpop.f32.mrf.mxu0
    %v1378 = vadd.f32 0.0, %v1377
    %v1379 = vpop.f32.mrf.mxu0
    %v1380 = vadd.f32 0.0, %v1379
    %1381 = vmatmul.bf16.gmra.mxu0 %v791
    %v1382 = vpop.f32.mrf.mxu0
    %v1383 = vadd.f32 0.0, %v1382
    %v1384 = vpop.f32.mrf.mxu0
    %v1385 = vadd.f32 0.0, %v1384
    %1386 = vmatmul.bf16.gmra.mxu0 %v793
    %v1387 = vpop.f32.mrf.mxu0
    %v1388 = vadd.f32 0.0, %v1387
    %v1389 = vpop.f32.mrf.mxu0
    %v1390 = vadd.f32 0.0, %v1389
    %1391 = vmatmul.bf16.gmra.mxu0 %v795
    %v1392 = vpop.f32.mrf.mxu0
    %v1393 = vadd.f32 0.0, %v1392
    %v1394 = vpop.f32.mrf.mxu0
    %v1395 = vadd.f32 0.0, %v1394
    %1396 = vmatmul.bf16.gmra.mxu0 %v797
    %v1397 = vpop.f32.mrf.mxu0
    %v1398 = vadd.f32 0.0, %v1397
    %v1399 = vpop.f32.mrf.mxu0
    %v1400 = vadd.f32 0.0, %v1399
    %1401 = vmatmul.bf16.gmra.mxu0 %v799
    %v1402 = vpop.f32.mrf.mxu0
    %v1403 = vadd.f32 0.0, %v1402
    %v1404 = vpop.f32.mrf.mxu0
    %v1405 = vadd.f32 0.0, %v1404
    %1406 = vdwg.mxu0
    %1407 = vmatpush.bf16.msra.mxu0 0
    %1408 = vmatpush.bf16.msra.mxu0 0
    %1409 = vmatpush.bf16.msra.mxu0 0
    %1410 = vmatpush.bf16.msra.mxu0 0
    %1411 = vmatpush.bf16.msra.mxu0 0
    %1412 = vmatpush.bf16.msra.mxu0 0
    %1413 = vmatpush.bf16.msra.mxu0 0
    %1414 = vmatpush.bf16.msra.mxu0 %v1333
    %1415 = vmatmul.bf16.gmra.mxu0 %v909
    %v1416 = vpop.f32.mrf.mxu0
    %v1417 = vadd.f32 %v1348, %v1416
    %v1418 = vpop.f32.mrf.mxu0
    %v1419 = vadd.f32 %v1350, %v1418
    %1420 = vmatmul.bf16.gmra.mxu0 %v912
    %v1421 = vpop.f32.mrf.mxu0
    %v1422 = vadd.f32 %v1353, %v1421
    %v1423 = vpop.f32.mrf.mxu0
    %v1424 = vadd.f32 %v1355, %v1423
    %1425 = vmatmul.bf16.gmra.mxu0 %v915
    %v1426 = vpop.f32.mrf.mxu0
    %v1427 = vadd.f32 %v1358, %v1426
    %v1428 = vpop.f32.mrf.mxu0
    %v1429 = vadd.f32 %v1360, %v1428
    %1430 = vmatmul.bf16.gmra.mxu0 %v918
    %v1431 = vpop.f32.mrf.mxu0
    %v1432 = vadd.f32 %v1363, %v1431
    %v1433 = vpop.f32.mrf.mxu0
    %v1434 = vadd.f32 %v1365, %v1433
    %1435 = vmatmul.bf16.gmra.mxu0 %v921
    %v1436 = vpop.f32.mrf.mxu0
    %v1437 = vadd.f32 %v1368, %v1436
    %v1438 = vpop.f32.mrf.mxu0
    %v1439 = vadd.f32 %v1370, %v1438
    %1440 = vmatmul.bf16.gmra.mxu0 %v924
    %v1441 = vpop.f32.mrf.mxu0
    %v1442 = vadd.f32 %v1373, %v1441
    %v1443 = vpop.f32.mrf.mxu0
    %v1444 = vadd.f32 %v1375, %v1443
    %1445 = vmatmul.bf16.gmra.mxu0 %v927
    %v1446 = vpop.f32.mrf.mxu0
    %v1447 = vadd.f32 %v1378, %v1446
    %v1448 = vpop.f32.mrf.mxu0
    %v1449 = vadd.f32 %v1380, %v1448
    %1450 = vmatmul.bf16.gmra.mxu0 %v930
    %v1451 = vpop.f32.mrf.mxu0
    %v1452 = vadd.f32 %v1383, %v1451
    %v1453 = vpop.f32.mrf.mxu0
    %v1454 = vadd.f32 %v1385, %v1453
    %1455 = vmatmul.bf16.gmra.mxu0 %v933
    %v1456 = vpop.f32.mrf.mxu0
    %v1457 = vadd.f32 %v1388, %v1456
    %v1458 = vpop.f32.mrf.mxu0
    %v1459 = vadd.f32 %v1390, %v1458
    %1460 = vmatmul.bf16.gmra.mxu0 %v936
    %v1461 = vpop.f32.mrf.mxu0
    %v1462 = vadd.f32 %v1393, %v1461
    %v1463 = vpop.f32.mrf.mxu0
    %v1464 = vadd.f32 %v1395, %v1463
    %1465 = vmatmul.bf16.gmra.mxu0 %v939
    %v1466 = vpop.f32.mrf.mxu0
    %v1467 = vadd.f32 %v1398, %v1466
    %v1468 = vpop.f32.mrf.mxu0
    %v1469 = vadd.f32 %v1400, %v1468
    %1470 = vmatmul.bf16.gmra.mxu0 %v942
    %v1471 = vpop.f32.mrf.mxu0
    %v1472 = vadd.f32 %v1403, %v1471
    %v1473 = vpop.f32.mrf.mxu0
    %v1474 = vadd.f32 %v1405, %v1473
    %1475 = vdwg.mxu0
    %1476 = vmatpush.bf16.msra.mxu0 %v1313
    %1477 = vmatpush.bf16.msra.mxu0 %v1311
    %1478 = vmatpush.bf16.msra.mxu0 %v1309
    %1479 = vmatpush.bf16.msra.mxu0 %v1307
    %1480 = vmatpush.bf16.msra.mxu0 %v1305
    %1481 = vmatpush.bf16.msra.mxu0 %v1303
    %1482 = vmatpush.bf16.msra.mxu0 %v1301
    %1483 = vmatpush.bf16.msra.mxu0 %v1299
    %1484 = vmatmul.bf16.gmra.mxu0 %v777
    %v1485 = vpop.f32.mrf.mxu0
    %v1486 = vadd.f32 0.0, %v1485
    %v1487 = vpop.f32.mrf.mxu0
    %v1488 = vadd.f32 0.0, %v1487
    %1489 = vmatmul.bf16.gmra.mxu0 %v779
    %v1490 = vpop.f32.mrf.mxu0
    %v1491 = vadd.f32 0.0, %v1490
    %v1492 = vpop.f32.mrf.mxu0
    %v1493 = vadd.f32 0.0, %v1492
    %1494 = vmatmul.bf16.gmra.mxu0 %v781
    %v1495 = vpop.f32.mrf.mxu0
    %v1496 = vadd.f32 0.0, %v1495
    %v1497 = vpop.f32.mrf.mxu0
    %v1498 = vadd.f32 0.0, %v1497
    %1499 = vmatmul.bf16.gmra.mxu0 %v783
    %v1500 = vpop.f32.mrf.mxu0
    %v1501 = vadd.f32 0.0, %v1500
    %v1502 = vpop.f32.mrf.mxu0
    %v1503 = vadd.f32 0.0, %v1502
    %1504 = vmatmul.bf16.gmra.mxu0 %v785
    %v1505 = vpop.f32.mrf.mxu0
    %v1506 = vadd.f32 0.0, %v1505
    %v1507 = vpop.f32.mrf.mxu0
    %v1508 = vadd.f32 0.0, %v1507
    %1509 = vmatmul.bf16.gmra.mxu0 %v787
    %v1510 = vpop.f32.mrf.mxu0
    %v1511 = vadd.f32 0.0, %v1510
    %v1512 = vpop.f32.mrf.mxu0
    %v1513 = vadd.f32 0.0, %v1512
    %1514 = vmatmul.bf16.gmra.mxu0 %v789
    %v1515 = vpop.f32.mrf.mxu0
    %v1516 = vadd.f32 0.0, %v1515
    %v1517 = vpop.f32.mrf.mxu0
    %v1518 = vadd.f32 0.0, %v1517
    %1519 = vmatmul.bf16.gmra.mxu0 %v791
    %v1520 = vpop.f32.mrf.mxu0
    %v1521 = vadd.f32 0.0, %v1520
    %v1522 = vpop.f32.mrf.mxu0
    %v1523 = vadd.f32 0.0, %v1522
    %1524 = vmatmul.bf16.gmra.mxu0 %v793
    %v1525 = vpop.f32.mrf.mxu0
    %v1526 = vadd.f32 0.0, %v1525
    %v1527 = vpop.f32.mrf.mxu0
    %v1528 = vadd.f32 0.0, %v1527
    %1529 = vmatmul.bf16.gmra.mxu0 %v795
    %v1530 = vpop.f32.mrf.mxu0
    %v1531 = vadd.f32 0.0, %v1530
    %v1532 = vpop.f32.mrf.mxu0
    %v1533 = vadd.f32 0.0, %v1532
    %1534 = vmatmul.bf16.gmra.mxu0 %v797
    %v1535 = vpop.f32.mrf.mxu0
    %v1536 = vadd.f32 0.0, %v1535
    %v1537 = vpop.f32.mrf.mxu0
    %v1538 = vadd.f32 0.0, %v1537
    %1539 = vmatmul.bf16.gmra.mxu0 %v799
    %v1540 = vpop.f32.mrf.mxu0
    %v1541 = vadd.f32 0.0, %v1540
    %v1542 = vpop.f32.mrf.mxu0
    %v1543 = vadd.f32 0.0, %v1542
    %1544 = vdwg.mxu0
    %1545 = vmatpush.bf16.msra.mxu0 0
    %1546 = vmatpush.bf16.msra.mxu0 0
    %1547 = vmatpush.bf16.msra.mxu0 0
    %1548 = vmatpush.bf16.msra.mxu0 0
    %1549 = vmatpush.bf16.msra.mxu0 0
    %1550 = vmatpush.bf16.msra.mxu0 0
    %1551 = vmatpush.bf16.msra.mxu0 0
    %1552 = vmatpush.bf16.msra.mxu0 %v1336
    %1553 = vmatmul.bf16.gmra.mxu0 %v909
    %v1554 = vpop.f32.mrf.mxu0
    %v1555 = vadd.f32 %v1486, %v1554
    %v1556 = vpop.f32.mrf.mxu0
    %v1557 = vadd.f32 %v1488, %v1556
    %1558 = vmatmul.bf16.gmra.mxu0 %v912
    %v1559 = vpop.f32.mrf.mxu0
    %v1560 = vadd.f32 %v1491, %v1559
    %v1561 = vpop.f32.mrf.mxu0
    %v1562 = vadd.f32 %v1493, %v1561
    %1563 = vmatmul.bf16.gmra.mxu0 %v915
    %v1564 = vpop.f32.mrf.mxu0
    %v1565 = vadd.f32 %v1496, %v1564
    %v1566 = vpop.f32.mrf.mxu0
    %v1567 = vadd.f32 %v1498, %v1566
    %1568 = vmatmul.bf16.gmra.mxu0 %v918
    %v1569 = vpop.f32.mrf.mxu0
    %v1570 = vadd.f32 %v1501, %v1569
    %v1571 = vpop.f32.mrf.mxu0
    %v1572 = vadd.f32 %v1503, %v1571
    %1573 = vmatmul.bf16.gmra.mxu0 %v921
    %v1574 = vpop.f32.mrf.mxu0
    %v1575 = vadd.f32 %v1506, %v1574
    %v1576 = vpop.f32.mrf.mxu0
    %v1577 = vadd.f32 %v1508, %v1576
    %1578 = vmatmul.bf16.gmra.mxu0 %v924
    %v1579 = vpop.f32.mrf.mxu0
    %v1580 = vadd.f32 %v1511, %v1579
    %v1581 = vpop.f32.mrf.mxu0
    %v1582 = vadd.f32 %v1513, %v1581
    %1583 = vmatmul.bf16.gmra.mxu0 %v927
    %v1584 = vpop.f32.mrf.mxu0
    %v1585 = vadd.f32 %v1516, %v1584
    %v1586 = vpop.f32.mrf.mxu0
    %v1587 = vadd.f32 %v1518, %v1586
    %1588 = vmatmul.bf16.gmra.mxu0 %v930
    %v1589 = vpop.f32.mrf.mxu0
    %v1590 = vadd.f32 %v1521, %v1589
    %v1591 = vpop.f32.mrf.mxu0
    %v1592 = vadd.f32 %v1523, %v1591
    %1593 = vmatmul.bf16.gmra.mxu0 %v933
    %v1594 = vpop.f32.mrf.mxu0
    %v1595 = vadd.f32 %v1526, %v1594
    %v1596 = vpop.f32.mrf.mxu0
    %v1597 = vadd.f32 %v1528, %v1596
    %1598 = vmatmul.bf16.gmra.mxu0 %v936
    %v1599 = vpop.f32.mrf.mxu0
    %v1600 = vadd.f32 %v1531, %v1599
    %v1601 = vpop.f32.mrf.mxu0
    %v1602 = vadd.f32 %v1533, %v1601
    %1603 = vmatmul.bf16.gmra.mxu0 %v939
    %v1604 = vpop.f32.mrf.mxu0
    %v1605 = vadd.f32 %v1536, %v1604
    %v1606 = vpop.f32.mrf.mxu0
    %v1607 = vadd.f32 %v1538, %v1606
    %1608 = vmatmul.bf16.gmra.mxu0 %v942
    %v1609 = vpop.f32.mrf.mxu0
    %v1610 = vadd.f32 %v1541, %v1609
    %v1611 = vpop.f32.mrf.mxu0
    %v1612 = vadd.f32 %v1543, %v1611
    %1613 = vdwg.mxu0
    %v1614 = vmax.f32 %v1029, %v1417
    %v1615 = vmax.f32 %v1167, %v1555
    %v1616 = vmax.f32 %v1031, %v1419
    %v1617 = vmax.f32 %v1169, %v1557
    %v1618 = vmax.f32 %v1034, %v1422
    %v1619 = vmax.f32 %v1172, %v1560
    %v1620 = vmax.f32 %v1036, %v1424
    %v1621 = vmax.f32 %v1174, %v1562
    %v1622 = vmax.f32 %v1039, %v1427
    %v1623 = vmax.f32 %v1177, %v1565
    %v1624 = vmax.f32 %v1041, %v1429
    %v1625 = vmax.f32 %v1179, %v1567
    %v1626 = vmax.f32 %v1044, %v1432
    %v1627 = vmax.f32 %v1182, %v1570
    %v1628 = vmax.f32 %v1046, %v1434
    %v1629 = vmax.f32 %v1184, %v1572
    %v1630 = vmax.f32 %v1049, %v1437
    %v1631 = vmax.f32 %v1187, %v1575
    %v1632 = vmax.f32 %v1051, %v1439
    %v1633 = vmax.f32 %v1189, %v1577
    %v1634 = vmax.f32 %v1054, %v1442
    %v1635 = vmax.f32 %v1192, %v1580
    %v1636 = vmax.f32 %v1056, %v1444
    %v1637 = vmax.f32 %v1194, %v1582
    %v1638 = vmax.f32 %v1059, %v1447
    %v1639 = vmax.f32 %v1197, %v1585
    %v1640 = vmax.f32 %v1061, %v1449
    %v1641 = vmax.f32 %v1199, %v1587
    %v1642 = vmax.f32 %v1064, %v1452
    %v1643 = vmax.f32 %v1202, %v1590
    %v1644 = vmax.f32 %v1066, %v1454
    %v1645 = vmax.f32 %v1204, %v1592
    %v1646 = vmax.f32 %v1069, %v1457
    %v1647 = vmax.f32 %v1207, %v1595
    %v1648 = vmax.f32 %v1071, %v1459
    %v1649 = vmax.f32 %v1209, %v1597
    %v1650 = vmax.f32 %v1074, %v1462
    %v1651 = vmax.f32 %v1212, %v1600
    %v1652 = vmax.f32 %v1076, %v1464
    %v1653 = vmax.f32 %v1214, %v1602
    %v1654 = vmax.f32 %v1079, %v1467
    %v1655 = vmax.f32 %v1217, %v1605
    %v1656 = vmax.f32 %v1081, %v1469
    %v1657 = vmax.f32 %v1219, %v1607
    %v1658 = vmax.f32 %v1084, %v1472
    %v1659 = vmax.f32 %v1222, %v1610
    %v1660 = vmax.f32 %v1086, %v1474
    %v1661 = vmax.f32 %v1224, %v1612
    %v1662 = vld [vmem:[%s3] sm:$0x3]
    %v1664 = vperm.slane %v1662, 0
    %v1665 = vperm.slane %v1662, 1
    %v1668 = vadd.f32 %v1614, %v1664
    %v1669 = vadd.f32 %v1615, %v1665
    %v1670 = vadd.f32 %v1616, %v1664
    %v1671 = vadd.f32 %v1617, %v1665
    %v1672 = vadd.f32 %v1618, %v1664
    %v1673 = vadd.f32 %v1619, %v1665
    %v1674 = vadd.f32 %v1620, %v1664
    %v1675 = vadd.f32 %v1621, %v1665
    %v1676 = vadd.f32 %v1622, %v1664
    %v1677 = vadd.f32 %v1623, %v1665
    %v1678 = vadd.f32 %v1624, %v1664
    %v1679 = vadd.f32 %v1625, %v1665
    %v1680 = vadd.f32 %v1626, %v1664
    %v1681 = vadd.f32 %v1627, %v1665
    %v1682 = vadd.f32 %v1628, %v1664
    %v1683 = vadd.f32 %v1629, %v1665
    %v1684 = vadd.f32 %v1630, %v1664
    %v1685 = vadd.f32 %v1631, %v1665
    %v1686 = vadd.f32 %v1632, %v1664
    %v1687 = vadd.f32 %v1633, %v1665
    %v1688 = vadd.f32 %v1634, %v1664
    %v1689 = vadd.f32 %v1635, %v1665
    %v1690 = vadd.f32 %v1636, %v1664
    %v1691 = vadd.f32 %v1637, %v1665
    %v1692 = vadd.f32 %v1638, %v1664
    %v1693 = vadd.f32 %v1639, %v1665
    %v1694 = vadd.f32 %v1640, %v1664
    %v1695 = vadd.f32 %v1641, %v1665
    %v1696 = vadd.f32 %v1642, %v1664
    %v1697 = vadd.f32 %v1643, %v1665
    %v1698 = vadd.f32 %v1644, %v1664
    %v1699 = vadd.f32 %v1645, %v1665
    %v1700 = vadd.f32 %v1646, %v1664
    %v1701 = vadd.f32 %v1647, %v1665
    %v1702 = vadd.f32 %v1648, %v1664
    %v1703 = vadd.f32 %v1649, %v1665
    %v1704 = vadd.f32 %v1650, %v1664
    %v1705 = vadd.f32 %v1651, %v1665
    %v1706 = vadd.f32 %v1652, %v1664
    %v1707 = vadd.f32 %v1653, %v1665
    %v1708 = vadd.f32 %v1654, %v1664
    %v1709 = vadd.f32 %v1655, %v1665
    %v1710 = vadd.f32 %v1656, %v1664
    %v1711 = vadd.f32 %v1657, %v1665
    %v1712 = vadd.f32 %v1658, %v1664
    %v1713 = vadd.f32 %v1659, %v1665
    %v1714 = vadd.f32 %v1660, %v1664
    %v1715 = vadd.f32 %v1661, %v1665
    %v1716 = vmax.f32 %v1668, 0.0
    %v1717 = vmax.f32 %v1669, 0.0
    %v1718 = vmax.f32 %v1670, 0.0
    %v1719 = vmax.f32 %v1671, 0.0
    %v1720 = vmax.f32 %v1672, 0.0
    %v1721 = vmax.f32 %v1673, 0.0
    %v1722 = vmax.f32 %v1674, 0.0
    %v1723 = vmax.f32 %v1675, 0.0
    %v1724 = vmax.f32 %v1676, 0.0
    %v1725 = vmax.f32 %v1677, 0.0
    %v1726 = vmax.f32 %v1678, 0.0
    %v1727 = vmax.f32 %v1679, 0.0
    %v1728 = vmax.f32 %v1680, 0.0
    %v1729 = vmax.f32 %v1681, 0.0
    %v1730 = vmax.f32 %v1682, 0.0
    %v1731 = vmax.f32 %v1683, 0.0
    %v1732 = vmax.f32 %v1684, 0.0
    %v1733 = vmax.f32 %v1685, 0.0
    %v1734 = vmax.f32 %v1686, 0.0
    %v1735 = vmax.f32 %v1687, 0.0
    %v1736 = vmax.f32 %v1688, 0.0
    %v1737 = vmax.f32 %v1689, 0.0
    %v1738 = vmax.f32 %v1690, 0.0
    %v1739 = vmax.f32 %v1691, 0.0
    %v1740 = vmax.f32 %v1692, 0.0
    %v1741 = vmax.f32 %v1693, 0.0
    %v1742 = vmax.f32 %v1694, 0.0
    %v1743 = vmax.f32 %v1695, 0.0
    %v1744 = vmax.f32 %v1696, 0.0
    %v1745 = vmax.f32 %v1697, 0.0
    %v1746 = vmax.f32 %v1698, 0.0
    %v1747 = vmax.f32 %v1699, 0.0
    %v1748 = vmax.f32 %v1700, 0.0
    %v1749 = vmax.f32 %v1701, 0.0
    %v1750 = vmax.f32 %v1702, 0.0
    %v1751 = vmax.f32 %v1703, 0.0
    %v1752 = vmax.f32 %v1704, 0.0
    %v1753 = vmax.f32 %v1705, 0.0
    %v1754 = vmax.f32 %v1706, 0.0
    %v1755 = vmax.f32 %v1707, 0.0
    %v1756 = vmax.f32 %v1708, 0.0
    %v1757 = vmax.f32 %v1709, 0.0
    %v1758 = vmax.f32 %v1710, 0.0
    %v1759 = vmax.f32 %v1711, 0.0
    %v1760 = vmax.f32 %v1712, 0.0
    %v1761 = vmax.f32 %v1713, 0.0
    %v1762 = vmax.f32 %v1714, 0.0
    %v1763 = vmax.f32 %v1715, 0.0
    %v1780 = vrot.slane %v1716, 1
    %v1781 = vrot.slane %v1717, 1
    %v1782 = vrot.slane %v1722, 1
    %v1783 = vrot.slane %v1723, 1
    %v1784 = vrot.slane %v1728, 1
    %v1785 = vrot.slane %v1729, 1
    %v1786 = vrot.slane %v1734, 1
    %v1787 = vrot.slane %v1735, 1
    %v1788 = vrot.slane %v1740, 1
    %v1789 = vrot.slane %v1741, 1
    %v1790 = vrot.slane %v1746, 1
    %v1791 = vrot.slane %v1747, 1
    %v1792 = vrot.slane %v1752, 1
    %v1793 = vrot.slane %v1753, 1
    %v1794 = vrot.slane %v1758, 1
    %v1795 = vrot.slane %v1759, 1
    %v1812 = vmax.f32 %v1716, %v1780
    %v1813 = vmax.f32 %v1717, %v1781
    %v1814 = vmax.f32 %v1722, %v1782
    %v1815 = vmax.f32 %v1723, %v1783
    %v1816 = vmax.f32 %v1728, %v1784
    %v1817 = vmax.f32 %v1729, %v1785
    %v1818 = vmax.f32 %v1734, %v1786
    %v1819 = vmax.f32 %v1735, %v1787
    %v1820 = vmax.f32 %v1740, %v1788
    %v1821 = vmax.f32 %v1741, %v1789
    %v1822 = vmax.f32 %v1746, %v1790
    %v1823 = vmax.f32 %v1747, %v1791
    %v1824 = vmax.f32 %v1752, %v1792
    %v1825 = vmax.f32 %v1753, %v1793
    %v1826 = vmax.f32 %v1758, %v1794
    %v1827 = vmax.f32 %v1759, %v1795
    %v1828 = vpack.c.bf16 %v1813, %v1812
    %v1829 = vpack.c.bf16 %v1815, %v1814
    %v1830 = vpack.c.bf16 %v1817, %v1816
    %v1831 = vpack.c.bf16 %v1819, %v1818
    %v1832 = vpack.c.bf16 %v1821, %v1820
    %v1833 = vpack.c.bf16 %v1823, %v1822
    %v1834 = vpack.c.bf16 %v1825, %v1824
    %v1835 = vpack.c.bf16 %v1827, %v1826
    %v1852 = vrot.slane %v1718, 1
    %v1853 = vrot.slane %v1719, 1
    %v1854 = vrot.slane %v1724, 1
    %v1855 = vrot.slane %v1725, 1
    %v1856 = vrot.slane %v1730, 1
    %v1857 = vrot.slane %v1731, 1
    %v1858 = vrot.slane %v1736, 1
    %v1859 = vrot.slane %v1737, 1
    %v1860 = vrot.slane %v1742, 1
    %v1861 = vrot.slane %v1743, 1
    %v1862 = vrot.slane %v1748, 1
    %v1863 = vrot.slane %v1749, 1
    %v1864 = vrot.slane %v1754, 1
    %v1865 = vrot.slane %v1755, 1
    %v1866 = vrot.slane %v1760, 1
    %v1867 = vrot.slane %v1761, 1
    %v1884 = vmax.f32 %v1718, %v1852
    %v1885 = vmax.f32 %v1719, %v1853
    %v1886 = vmax.f32 %v1724, %v1854
    %v1887 = vmax.f32 %v1725, %v1855
    %v1888 = vmax.f32 %v1730, %v1856
    %v1889 = vmax.f32 %v1731, %v1857
    %v1890 = vmax.f32 %v1736, %v1858
    %v1891 = vmax.f32 %v1737, %v1859
    %v1892 = vmax.f32 %v1742, %v1860
    %v1893 = vmax.f32 %v1743, %v1861
    %v1894 = vmax.f32 %v1748, %v1862
    %v1895 = vmax.f32 %v1749, %v1863
    %v1896 = vmax.f32 %v1754, %v1864
    %v1897 = vmax.f32 %v1755, %v1865
    %v1898 = vmax.f32 %v1760, %v1866
    %v1899 = vmax.f32 %v1761, %v1867
    %v1900 = vpack.c.bf16 %v1885, %v1884
    %v1901 = vpack.c.bf16 %v1887, %v1886
    %v1902 = vpack.c.bf16 %v1889, %v1888
    %v1903 = vpack.c.bf16 %v1891, %v1890
    %v1904 = vpack.c.bf16 %v1893, %v1892
    %v1905 = vpack.c.bf16 %v1895, %v1894
    %v1906 = vpack.c.bf16 %v1897, %v1896
    %v1907 = vpack.c.bf16 %v1899, %v1898
    %v1924 = vrot.slane %v1720, 1
    %v1925 = vrot.slane %v1721, 1
    %v1926 = vrot.slane %v1726, 1
    %v1927 = vrot.slane %v1727, 1
    %v1928 = vrot.slane %v1732, 1
    %v1929 = vrot.slane %v1733, 1
    %v1930 = vrot.slane %v1738, 1
    %v1931 = vrot.slane %v1739, 1
    %v1932 = vrot.slane %v1744, 1
    %v1933 = vrot.slane %v1745, 1
    %v1934 = vrot.slane %v1750, 1
    %v1935 = vrot.slane %v1751, 1
    %v1936 = vrot.slane %v1756, 1
    %v1937 = vrot.slane %v1757, 1
    %v1938 = vrot.slane %v1762, 1
    %v1939 = vrot.slane %v1763, 1
    %v1956 = vmax.f32 %v1720, %v1924
    %v1957 = vmax.f32 %v1721, %v1925
    %v1958 = vmax.f32 %v1726, %v1926
    %v1959 = vmax.f32 %v1727, %v1927
    %v1960 = vmax.f32 %v1732, %v1928
    %v1961 = vmax.f32 %v1733, %v1929
    %v1962 = vmax.f32 %v1738, %v1930
    %v1963 = vmax.f32 %v1739, %v1931
    %v1964 = vmax.f32 %v1744, %v1932
    %v1965 = vmax.f32 %v1745, %v1933
    %v1966 = vmax.f32 %v1750, %v1934
    %v1967 = vmax.f32 %v1751, %v1935
    %v1968 = vmax.f32 %v1756, %v1936
    %v1969 = vmax.f32 %v1757, %v1937
    %v1970 = vmax.f32 %v1762, %v1938
    %v1971 = vmax.f32 %v1763, %v1939
    %v1972 = vpack.c.bf16 %v1957, %v1956
    %v1973 = vpack.c.bf16 %v1959, %v1958
    %v1974 = vpack.c.bf16 %v1961, %v1960
    %v1975 = vpack.c.bf16 %v1963, %v1962
    %v1976 = vpack.c.bf16 %v1965, %v1964
    %v1977 = vpack.c.bf16 %v1967, %v1966
    %v1978 = vpack.c.bf16 %v1969, %v1968
    %v1979 = vpack.c.bf16 %v1971, %v1970
    %v1988 = vunpack.c.l.b16 %v1828
    %v1989 = vunpack.c.h.b16 %v1828
    %v1990 = vunpack.c.l.b16 %v1829
    %v1991 = vunpack.c.h.b16 %v1829
    %v1992 = vunpack.c.l.b16 %v1830
    %v1993 = vunpack.c.h.b16 %v1830
    %v1994 = vunpack.c.l.b16 %v1831
    %v1995 = vunpack.c.h.b16 %v1831
    %v1996 = vunpack.c.l.b16 %v1832
    %v1997 = vunpack.c.h.b16 %v1832
    %v1998 = vunpack.c.l.b16 %v1833
    %v1999 = vunpack.c.h.b16 %v1833
    %v2000 = vunpack.c.l.b16 %v1834
    %v2001 = vunpack.c.h.b16 %v1834
    %v2002 = vunpack.c.l.b16 %v1835
    %v2003 = vunpack.c.h.b16 %v1835
    %v2004 = vpack.c.b16 %v1988, %v1988
    %v2005 = vpack.c.b16 %v1989, %v1989
    %v2006 = vpack.c.b16 %v1990, %v1990
    %v2007 = vpack.c.b16 %v1991, %v1991
    %v2008 = vpack.c.b16 %v1992, %v1992
    %v2009 = vpack.c.b16 %v1993, %v1993
    %v2010 = vpack.c.b16 %v1994, %v1994
    %v2011 = vpack.c.b16 %v1995, %v1995
    %v2012 = vpack.c.b16 %v1996, %v1996
    %v2013 = vpack.c.b16 %v1997, %v1997
    %v2014 = vpack.c.b16 %v1998, %v1998
    %v2015 = vpack.c.b16 %v1999, %v1999
    %v2016 = vpack.c.b16 %v2000, %v2000
    %v2017 = vpack.c.b16 %v2001, %v2001
    %v2018 = vpack.c.b16 %v2002, %v2002
    %v2019 = vpack.c.b16 %v2003, %v2003
    %v2020 = vunpack.c.l.b16 %v2004
    %v2021 = vunpack.c.l.b16 %v2005
    %v2022 = vunpack.c.l.b16 %v2006
    %v2023 = vunpack.c.l.b16 %v2007
    %v2024 = vunpack.c.l.b16 %v2008
    %v2025 = vunpack.c.l.b16 %v2009
    %v2026 = vunpack.c.l.b16 %v2010
    %v2027 = vunpack.c.l.b16 %v2011
    %v2028 = vunpack.c.l.b16 %v2012
    %v2029 = vunpack.c.l.b16 %v2013
    %v2030 = vunpack.c.l.b16 %v2014
    %v2031 = vunpack.c.l.b16 %v2015
    %v2032 = vunpack.c.l.b16 %v2016
    %v2033 = vunpack.c.l.b16 %v2017
    %v2034 = vunpack.c.l.b16 %v2018
    %v2035 = vunpack.c.l.b16 %v2019
    %v2036 = vrot.slane %v2022, 7
    %vm2037 = vcmask 1041409
    %v2038 = vsel %vm2037, %v2036, %v2020
    %v2039 = vrot.slane %v2024, 6
    %vm2040 = vcmask 1042434
    %v2041 = vsel %vm2040, %v2039, %v2038
    %v2042 = vrot.slane %v2026, 5
    %vm2043 = vcmask 1043459
    %v2044 = vsel %vm2043, %v2042, %v2041
    %v2045 = vrot.slane %v2028, 4
    %vm2046 = vcmask 1044484
    %v2047 = vsel %vm2046, %v2045, %v2044
    %v2048 = vrot.slane %v2030, 3
    %vm2049 = vcmask 1045509
    %v2050 = vsel %vm2049, %v2048, %v2047
    %v2051 = vrot.slane %v2032, 2
    %vm2052 = vcmask 1046534
    %v2053 = vsel %vm2052, %v2051, %v2050
    %v2054 = vrot.slane %v2034, 1
    %vm2055 = vcmask 1047559
    %v2056 = vsel %vm2055, %v2054, %v2053
    %v2057 = vrot.slane %v2023, 7
    %v2058 = vsel %vm2037, %v2057, %v2021
    %v2059 = vrot.slane %v2025, 6
    %v2060 = vsel %vm2040, %v2059, %v2058
    %v2061 = vrot.slane %v2027, 5
    %v2062 = vsel %vm2043, %v2061, %v2060
    %v2063 = vrot.slane %v2029, 4
    %v2064 = vsel %vm2046, %v2063, %v2062
    %v2065 = vrot.slane %v2031, 3
    %v2066 = vsel %vm2049, %v2065, %v2064
    %v2067 = vrot.slane %v2033, 2
    %v2068 = vsel %vm2052, %v2067, %v2066
    %v2069 = vrot.slane %v2035, 1
    %v2070 = vsel %vm2055, %v2069, %v2068
    %v2071 = vpack.c.b16 %v2056, %v2056
    %v2072 = vpack.c.b16 %v2070, %v2070
    %v2074 = vrot.slane %v2020, 2
    %v2075 = vrot.slane %v2022, 1
    %v2076 = vsel %vm2037, %v2075, %v2074
    %v2077 = vsel %vm2040, %v2024, %v2076
    %v2078 = vrot.slane %v2026, 7
    %v2079 = vsel %vm2043, %v2078, %v2077
    %v2080 = vrot.slane %v2028, 6
    %v2081 = vsel %vm2046, %v2080, %v2079
    %v2082 = vrot.slane %v2030, 5
    %v2083 = vsel %vm2049, %v2082, %v2081
    %v2084 = vrot.slane %v2032, 4
    %v2085 = vsel %vm2052, %v2084, %v2083
    %v2086 = vrot.slane %v2034, 3
    %v2087 = vsel %vm2055, %v2086, %v2085
    %v2088 = vrot.slane %v2021, 2
    %v2089 = vrot.slane %v2023, 1
    %v2090 = vsel %vm2037, %v2089, %v2088
    %v2091 = vsel %vm2040, %v2025, %v2090
    %v2092 = vrot.slane %v2027, 7
    %v2093 = vsel %vm2043, %v2092, %v2091
    %v2094 = vrot.slane %v2029, 6
    %v2095 = vsel %vm2046, %v2094, %v2093
    %v2096 = vrot.slane %v2031, 5
    %v2097 = vsel %vm2049, %v2096, %v2095
    %v2098 = vrot.slane %v2033, 4
    %v2099 = vsel %vm2052, %v2098, %v2097
    %v2100 = vrot.slane %v2035, 3
    %v2101 = vsel %vm2055, %v2100, %v2099
    %v2102 = vpack.c.b16 %v2087, %v2087
    %v2103 = vpack.c.b16 %v2101, %v2101
    %2104 = vrot.lane.b32.xlu0 %v2102, 64
    %v2105 = vpop.permute.xlu0 %2104
    %2106 = vrot.lane.b32.xlu0 %v2103, 64
    %v2107 = vpop.permute.xlu0 %2106
    %vm2108 = vcmask 523264
    %v2109 = vsel %vm2108, %v2105, %v2107
    %v2111 = vrot.slane %v2020, 4
    %v2112 = vrot.slane %v2022, 3
    %v2113 = vsel %vm2037, %v2112, %v2111
    %v2114 = vrot.slane %v2024, 2
    %v2115 = vsel %vm2040, %v2114, %v2113
    %v2116 = vrot.slane %v2026, 1
    %v2117 = vsel %vm2043, %v2116, %v2115
    %v2118 = vsel %vm2046, %v2028, %v2117
    %v2119 = vrot.slane %v2030, 7
    %v2120 = vsel %vm2049, %v2119, %v2118
    %v2121 = vrot.slane %v2032, 6
    %v2122 = vsel %vm2052, %v2121, %v2120
    %v2123 = vrot.slane %v2034, 5
    %v2124 = vsel %vm2055, %v2123, %v2122
    %v2125 = vrot.slane %v2021, 4
    %v2126 = vrot.slane %v2023, 3
    %v2127 = vsel %vm2037, %v2126, %v2125
    %v2128 = vrot.slane %v2025, 2
    %v2129 = vsel %vm2040, %v2128, %v2127
    %v2130 = vrot.slane %v2027, 1
    %v2131 = vsel %vm2043, %v2130, %v2129
    %v2132 = vsel %vm2046, %v2029, %v2131
    %v2133 = vrot.slane %v2031, 7
    %v2134 = vsel %vm2049, %v2133, %v2132
    %v2135 = vrot.slane %v2033, 6
    %v2136 = vsel %vm2052, %v2135, %v2134
    %v2137 = vrot.slane %v2035, 5
    %v2138 = vsel %vm2055, %v2137, %v2136
    %v2139 = vpack.c.b16 %v2124, %v2124
    %v2140 = vpack.c.b16 %v2138, %v2138
    %v2142 = vrot.slane %v2020, 6
    %v2143 = vrot.slane %v2022, 5
    %v2144 = vsel %vm2037, %v2143, %v2142
    %v2145 = vrot.slane %v2024, 4
    %v2146 = vsel %vm2040, %v2145, %v2144
    %v2147 = vrot.slane %v2026, 3
    %v2148 = vsel %vm2043, %v2147, %v2146
    %v2149 = vrot.slane %v2028, 2
    %v2150 = vsel %vm2046, %v2149, %v2148
    %v2151 = vrot.slane %v2030, 1
    %v2152 = vsel %vm2049, %v2151, %v2150
    %v2153 = vsel %vm2052, %v2032, %v2152
    %v2154 = vrot.slane %v2034, 7
    %v2155 = vsel %vm2055, %v2154, %v2153
    %v2156 = vrot.slane %v2021, 6
    %v2157 = vrot.slane %v2023, 5
    %v2158 = vsel %vm2037, %v2157, %v2156
    %v2159 = vrot.slane %v2025, 4
    %v2160 = vsel %vm2040, %v2159, %v2158
    %v2161 = vrot.slane %v2027, 3
    %v2162 = vsel %vm2043, %v2161, %v2160
    %v2163 = vrot.slane %v2029, 2
    %v2164 = vsel %vm2046, %v2163, %v2162
    %v2165 = vrot.slane %v2031, 1
    %v2166 = vsel %vm2049, %v2165, %v2164
    %v2167 = vsel %vm2052, %v2033, %v2166
    %v2168 = vrot.slane %v2035, 7
    %v2169 = vsel %vm2055, %v2168, %v2167
    %v2170 = vpack.c.b16 %v2155, %v2155
    %v2171 = vpack.c.b16 %v2169, %v2169
    %2172 = vrot.lane.b32.xlu0 %v2170, 64
    %v2173 = vpop.permute.xlu0 %2172
    %2174 = vrot.lane.b32.xlu0 %v2171, 64
    %v2175 = vpop.permute.xlu0 %2174
    %v2176 = vsel %vm2108, %v2173, %v2175
    %v2186 = vunpack.c.l.b16 %v1900
    %v2187 = vunpack.c.h.b16 %v1900
    %v2188 = vunpack.c.l.b16 %v1901
    %v2189 = vunpack.c.h.b16 %v1901
    %v2190 = vunpack.c.l.b16 %v1902
    %v2191 = vunpack.c.h.b16 %v1902
    %v2192 = vunpack.c.l.b16 %v1903
    %v2193 = vunpack.c.h.b16 %v1903
    %v2194 = vunpack.c.l.b16 %v1904
    %v2195 = vunpack.c.h.b16 %v1904
    %v2196 = vunpack.c.l.b16 %v1905
    %v2197 = vunpack.c.h.b16 %v1905
    %v2198 = vunpack.c.l.b16 %v1906
    %v2199 = vunpack.c.h.b16 %v1906
    %v2200 = vunpack.c.l.b16 %v1907
    %v2201 = vunpack.c.h.b16 %v1907
    %v2202 = vpack.c.b16 %v2186, %v2186
    %v2203 = vpack.c.b16 %v2187, %v2187
    %v2204 = vpack.c.b16 %v2188, %v2188
    %v2205 = vpack.c.b16 %v2189, %v2189
    %v2206 = vpack.c.b16 %v2190, %v2190
    %v2207 = vpack.c.b16 %v2191, %v2191
    %v2208 = vpack.c.b16 %v2192, %v2192
    %v2209 = vpack.c.b16 %v2193, %v2193
    %v2210 = vpack.c.b16 %v2194, %v2194
    %v2211 = vpack.c.b16 %v2195, %v2195
    %v2212 = vpack.c.b16 %v2196, %v2196
    %v2213 = vpack.c.b16 %v2197, %v2197
    %v2214 = vpack.c.b16 %v2198, %v2198
    %v2215 = vpack.c.b16 %v2199, %v2199
    %v2216 = vpack.c.b16 %v2200, %v2200
    %v2217 = vpack.c.b16 %v2201, %v2201
    %v2218 = vunpack.c.l.b16 %v2202
    %v2219 = vunpack.c.l.b16 %v2203
    %v2220 = vunpack.c.l.b16 %v2204
    %v2221 = vunpack.c.l.b16 %v2205
    %v2222 = vunpack.c.l.b16 %v2206
    %v2223 = vunpack.c.l.b16 %v2207
    %v2224 = vunpack.c.l.b16 %v2208
    %v2225 = vunpack.c.l.b16 %v2209
    %v2226 = vunpack.c.l.b16 %v2210
    %v2227 = vunpack.c.l.b16 %v2211
    %v2228 = vunpack.c.l.b16 %v2212
    %v2229 = vunpack.c.l.b16 %v2213
    %v2230 = vunpack.c.l.b16 %v2214
    %v2231 = vunpack.c.l.b16 %v2215
    %v2232 = vunpack.c.l.b16 %v2216
    %v2233 = vunpack.c.l.b16 %v2217
    %v2234 = vrot.slane %v2220, 7
    %v2235 = vsel %vm2037, %v2234, %v2218
    %v2236 = vrot.slane %v2222, 6
    %v2237 = vsel %vm2040, %v2236, %v2235
    %v2238 = vrot.slane %v2224, 5
    %v2239 = vsel %vm2043, %v2238, %v2237
    %v2240 = vrot.slane %v2226, 4
    %v2241 = vsel %vm2046, %v2240, %v2239
    %v2242 = vrot.slane %v2228, 3
    %v2243 = vsel %vm2049, %v2242, %v2241
    %v2244 = vrot.slane %v2230, 2
    %v2245 = vsel %vm2052, %v2244, %v2243
    %v2246 = vrot.slane %v2232, 1
    %v2247 = vsel %vm2055, %v2246, %v2245
    %v2248 = vrot.slane %v2221, 7
    %v2249 = vsel %vm2037, %v2248, %v2219
    %v2250 = vrot.slane %v2223, 6
    %v2251 = vsel %vm2040, %v2250, %v2249
    %v2252 = vrot.slane %v2225, 5
    %v2253 = vsel %vm2043, %v2252, %v2251
    %v2254 = vrot.slane %v2227, 4
    %v2255 = vsel %vm2046, %v2254, %v2253
    %v2256 = vrot.slane %v2229, 3
    %v2257 = vsel %vm2049, %v2256, %v2255
    %v2258 = vrot.slane %v2231, 2
    %v2259 = vsel %vm2052, %v2258, %v2257
    %v2260 = vrot.slane %v2233, 1
    %v2261 = vsel %vm2055, %v2260, %v2259
    %v2262 = vpack.c.b16 %v2247, %v2247
    %v2263 = vpack.c.b16 %v2261, %v2261
    %vm2265 = vcmask 523264
    %v2268 = vsel %vm2265, %v2072, %v2105
    %v2272 = vsel %vm2265, %v2140, %v2173
    %v2274 = vld [vmem:[#allocation2] sm:$0xf]
    %v2275 = vld [vmem:[#allocation2 + $0x4] sm:$0xf]
    %v2276 = vld [vmem:[#allocation2 + $0x8] sm:$0xf]
    %v2277 = vld [vmem:[#allocation2 + $0xc] sm:$0xf]
    %v2278 = vld [vmem:[#allocation2 + $0x10] sm:$0xf]
    %v2279 = vld [vmem:[#allocation2 + $0x14] sm:$0xf]
    %v2280 = vld [vmem:[#allocation2 + $0x18] sm:$0xf]
    %v2281 = vld [vmem:[#allocation2 + $0x1c] sm:$0xf]
    %v2282 = vld [vmem:[#allocation2 + $0x20] sm:$0xf]
    %v2283 = vld [vmem:[#allocation2 + $0x24] sm:$0xf]
    %v2284 = vld [vmem:[#allocation2 + $0x28] sm:$0xf]
    %v2285 = vld [vmem:[#allocation2 + $0x2c] sm:$0xf]
    %v2286 = vld [vmem:[#allocation2 + $0x30] sm:$0xf]
    %v2287 = vld [vmem:[#allocation2 + $0x34] sm:$0xf]
    %v2288 = vld [vmem:[#allocation2 + $0x38] sm:$0xf]
    %v2289 = vld [vmem:[#allocation2 + $0x3c] sm:$0xf]
    %v2290 = vld [vmem:[#allocation2 + $0x40] sm:$0xf]
    %v2291 = vld [vmem:[#allocation2 + $0x44] sm:$0xf]
    %v2292 = vld [vmem:[#allocation2 + $0x48] sm:$0xf]
    %v2293 = vld [vmem:[#allocation2 + $0x4c] sm:$0xf]
    %v2294 = vld [vmem:[#allocation2 + $0x50] sm:$0xf]
    %v2295 = vld [vmem:[#allocation2 + $0x54] sm:$0xf]
    %v2296 = vld [vmem:[#allocation2 + $0x58] sm:$0xf]
    %v2297 = vld [vmem:[#allocation2 + $0x5c] sm:$0xf]
    %v2298 = vld [vmem:[#allocation2 + $0x60] sm:$0xf]
    %v2299 = vld [vmem:[#allocation2 + $0x64] sm:$0xf]
    %v2300 = vld [vmem:[#allocation2 + $0x68] sm:$0xf]
    %v2301 = vld [vmem:[#allocation2 + $0x6c] sm:$0xf]
    %v2302 = vld [vmem:[#allocation2 + $0x70] sm:$0xf]
    %v2303 = vld [vmem:[#allocation2 + $0x74] sm:$0xf]
    %v2304 = vld [vmem:[#allocation2 + $0x78] sm:$0xf]
    %v2305 = vld [vmem:[#allocation2 + $0x7c] sm:$0xf]
    %v2306 = vld [vmem:[#allocation2 + $0x80] sm:$0xf]
    %v2307 = vld [vmem:[#allocation2 + $0x84] sm:$0xf]
    %v2308 = vld [vmem:[#allocation2 + $0x88] sm:$0xf]
    %v2309 = vld [vmem:[#allocation2 + $0x8c] sm:$0xf]
    %v2310 = vld [vmem:[#allocation2 + $0x90] sm:$0xf]
    %v2311 = vld [vmem:[#allocation2 + $0x94] sm:$0xf]
    %v2312 = vld [vmem:[#allocation2 + $0x98] sm:$0xf]
    %v2313 = vld [vmem:[#allocation2 + $0x9c] sm:$0xf]
    %v2314 = vld [vmem:[#allocation2 + $0xa0] sm:$0xf]
    %v2315 = vld [vmem:[#allocation2 + $0xa4] sm:$0xf]
    %v2316 = vld [vmem:[#allocation2 + $0xa8] sm:$0xf]
    %v2317 = vld [vmem:[#allocation2 + $0xac] sm:$0xf]
    %v2318 = vld [vmem:[#allocation2 + $0xb0] sm:$0xf]
    %v2319 = vld [vmem:[#allocation2 + $0xb4] sm:$0xf]
    %v2320 = vld [vmem:[#allocation2 + $0xb8] sm:$0xf]
    %v2321 = vld [vmem:[#allocation2 + $0xbc] sm:$0xf]
    %v2322 = vld [vmem:[#allocation2 + $0xc0] sm:$0xf]
    %v2323 = vld [vmem:[#allocation2 + $0xc4] sm:$0xf]
    %v2324 = vld [vmem:[#allocation2 + $0xc8] sm:$0xf]
    %v2325 = vld [vmem:[#allocation2 + $0xcc] sm:$0xf]
    %v2326 = vld [vmem:[#allocation2 + $0xd0] sm:$0xf]
    %v2327 = vld [vmem:[#allocation2 + $0xd4] sm:$0xf]
    %v2328 = vld [vmem:[#allocation2 + $0xd8] sm:$0xf]
    %v2329 = vld [vmem:[#allocation2 + $0xdc] sm:$0xf]
    %v2330 = vld [vmem:[#allocation2 + $0xe0] sm:$0xf]
    %v2331 = vld [vmem:[#allocation2 + $0xe4] sm:$0xf]
    %v2332 = vld [vmem:[#allocation2 + $0xe8] sm:$0xf]
    %v2333 = vld [vmem:[#allocation2 + $0xec] sm:$0xf]
    %v2334 = vld [vmem:[#allocation2 + $0xf0] sm:$0xf]
    %v2335 = vld [vmem:[#allocation2 + $0xf4] sm:$0xf]
    %v2336 = vld [vmem:[#allocation2 + $0xf8] sm:$0xf]
    %v2337 = vld [vmem:[#allocation2 + $0xfc] sm:$0xf]
    %v2338 = vld [vmem:[#allocation2 + $0x100] sm:$0xf]
    %v2339 = vld [vmem:[#allocation2 + $0x104] sm:$0xf]
    %v2340 = vld [vmem:[#allocation2 + $0x108] sm:$0xf]
    %v2341 = vld [vmem:[#allocation2 + $0x10c] sm:$0xf]
    %v2342 = vld [vmem:[#allocation2 + $0x110] sm:$0xf]
    %v2343 = vld [vmem:[#allocation2 + $0x114] sm:$0xf]
    %v2344 = vld [vmem:[#allocation2 + $0x118] sm:$0xf]
    %v2345 = vld [vmem:[#allocation2 + $0x11c] sm:$0xf]
    %v2346 = vld [vmem:[#allocation2 + $0x120] sm:$0xf]
    %v2347 = vld [vmem:[#allocation2 + $0x124] sm:$0xf]
    %v2348 = vld [vmem:[#allocation2 + $0x128] sm:$0xf]
    %v2349 = vld [vmem:[#allocation2 + $0x12c] sm:$0xf]
    %v2350 = vld [vmem:[#allocation2 + $0x130] sm:$0xf]
    %v2351 = vld [vmem:[#allocation2 + $0x134] sm:$0xf]
    %v2352 = vld [vmem:[#allocation2 + $0x138] sm:$0xf]
    %v2353 = vld [vmem:[#allocation2 + $0x13c] sm:$0xf]
    %v2354 = vld [vmem:[#allocation2 + $0x140] sm:$0xf]
    %v2355 = vld [vmem:[#allocation2 + $0x144] sm:$0xf]
    %v2356 = vld [vmem:[#allocation2 + $0x148] sm:$0xf]
    %v2357 = vld [vmem:[#allocation2 + $0x14c] sm:$0xf]
    %v2358 = vld [vmem:[#allocation2 + $0x150] sm:$0xf]
    %v2359 = vld [vmem:[#allocation2 + $0x154] sm:$0xf]
    %v2360 = vld [vmem:[#allocation2 + $0x158] sm:$0xf]
    %v2361 = vld [vmem:[#allocation2 + $0x15c] sm:$0xf]
    %v2362 = vld [vmem:[#allocation2 + $0x160] sm:$0xf]
    %v2363 = vld [vmem:[#allocation2 + $0x164] sm:$0xf]
    %v2364 = vld [vmem:[#allocation2 + $0x168] sm:$0xf]
    %v2365 = vld [vmem:[#allocation2 + $0x16c] sm:$0xf]
    %v2366 = vld [vmem:[#allocation2 + $0x170] sm:$0xf]
    %v2367 = vld [vmem:[#allocation2 + $0x174] sm:$0xf]
    %v2368 = vld [vmem:[#allocation2 + $0x178] sm:$0xf]
    %v2369 = vld [vmem:[#allocation2 + $0x17c] sm:$0xf]
    %v2370 = vld [vmem:[#allocation2 + $0x180] sm:$0xf]
    %v2371 = vld [vmem:[#allocation2 + $0x184] sm:$0xf]
    %v2372 = vld [vmem:[#allocation2 + $0x188] sm:$0xf]
    %v2373 = vld [vmem:[#allocation2 + $0x18c] sm:$0xf]
    %v2374 = vld [vmem:[#allocation2 + $0x190] sm:$0xf]
    %v2375 = vld [vmem:[#allocation2 + $0x194] sm:$0xf]
    %v2376 = vld [vmem:[#allocation2 + $0x198] sm:$0xf]
    %v2377 = vld [vmem:[#allocation2 + $0x19c] sm:$0xf]
    %v2378 = vld [vmem:[#allocation2 + $0x1a0] sm:$0xf]
    %v2379 = vld [vmem:[#allocation2 + $0x1a4] sm:$0xf]
    %v2380 = vld [vmem:[#allocation2 + $0x1a8] sm:$0xf]
    %v2381 = vld [vmem:[#allocation2 + $0x1ac] sm:$0xf]
    %v2382 = vld [vmem:[#allocation2 + $0x1b0] sm:$0xf]
    %v2383 = vld [vmem:[#allocation2 + $0x1b4] sm:$0xf]
    %v2384 = vld [vmem:[#allocation2 + $0x1b8] sm:$0xf]
    %v2385 = vld [vmem:[#allocation2 + $0x1bc] sm:$0xf]
    %v2386 = vld [vmem:[#allocation2 + $0x1c0] sm:$0xf]
    %v2387 = vld [vmem:[#allocation2 + $0x1c4] sm:$0xf]
    %v2388 = vld [vmem:[#allocation2 + $0x1c8] sm:$0xf]
    %v2389 = vld [vmem:[#allocation2 + $0x1cc] sm:$0xf]
    %v2390 = vld [vmem:[#allocation2 + $0x1d0] sm:$0xf]
    %v2391 = vld [vmem:[#allocation2 + $0x1d4] sm:$0xf]
    %v2392 = vld [vmem:[#allocation2 + $0x1d8] sm:$0xf]
    %v2393 = vld [vmem:[#allocation2 + $0x1dc] sm:$0xf]
    %v2514 = vunpack.c.l.b16 %v2274
    %v2515 = vunpack.c.l.b16 %v2275
    %v2516 = vunpack.c.l.b16 %v2276
    %v2517 = vunpack.c.l.b16 %v2277
    %v2518 = vunpack.c.l.b16 %v2278
    %v2519 = vunpack.c.l.b16 %v2279
    %v2520 = vunpack.c.l.b16 %v2280
    %v2521 = vunpack.c.l.b16 %v2281
    %v2522 = vunpack.c.l.b16 %v2282
    %v2523 = vunpack.c.l.b16 %v2283
    %v2524 = vunpack.c.l.b16 %v2284
    %v2525 = vunpack.c.l.b16 %v2285
    %v2526 = vunpack.c.l.b16 %v2286
    %v2527 = vunpack.c.l.b16 %v2287
    %v2528 = vunpack.c.l.b16 %v2288
    %v2529 = vunpack.c.l.b16 %v2289
    %v2530 = vunpack.c.l.b16 %v2290
    %v2531 = vunpack.c.l.b16 %v2291
    %v2532 = vunpack.c.l.b16 %v2292
    %v2533 = vunpack.c.l.b16 %v2293
    %v2534 = vunpack.c.l.b16 %v2294
    %v2535 = vunpack.c.l.b16 %v2295
    %v2536 = vunpack.c.l.b16 %v2296
    %v2537 = vunpack.c.l.b16 %v2297
    %v2538 = vunpack.c.l.b16 %v2298
    %v2539 = vunpack.c.l.b16 %v2299
    %v2540 = vunpack.c.l.b16 %v2300
    %v2541 = vunpack.c.l.b16 %v2301
    %v2542 = vunpack.c.l.b16 %v2302
    %v2543 = vunpack.c.l.b16 %v2303
    %v2544 = vunpack.c.l.b16 %v2304
    %v2545 = vunpack.c.l.b16 %v2305
    %v2546 = vunpack.c.l.b16 %v2306
    %v2547 = vunpack.c.l.b16 %v2307
    %v2548 = vunpack.c.l.b16 %v2308
    %v2549 = vunpack.c.l.b16 %v2309
    %v2550 = vunpack.c.l.b16 %v2310
    %v2551 = vunpack.c.l.b16 %v2311
    %v2552 = vunpack.c.l.b16 %v2312
    %v2553 = vunpack.c.l.b16 %v2313
    %v2554 = vunpack.c.l.b16 %v2314
    %v2555 = vunpack.c.l.b16 %v2315
    %v2556 = vunpack.c.l.b16 %v2316
    %v2557 = vunpack.c.l.b16 %v2317
    %v2558 = vunpack.c.l.b16 %v2318
    %v2559 = vunpack.c.l.b16 %v2319
    %v2560 = vunpack.c.l.b16 %v2320
    %v2561 = vunpack.c.l.b16 %v2321
    %v2562 = vunpack.c.l.b16 %v2322
    %v2563 = vunpack.c.l.b16 %v2323
    %v2564 = vunpack.c.l.b16 %v2324
    %v2565 = vunpack.c.l.b16 %v2325
    %v2566 = vunpack.c.l.b16 %v2326
    %v2567 = vunpack.c.l.b16 %v2327
    %v2568 = vunpack.c.l.b16 %v2328
    %v2569 = vunpack.c.l.b16 %v2329
    %v2570 = vunpack.c.l.b16 %v2330
    %v2571 = vunpack.c.l.b16 %v2331
    %v2572 = vunpack.c.l.b16 %v2332
    %v2573 = vunpack.c.l.b16 %v2333
    %v2574 = vunpack.c.l.b16 %v2334
    %v2575 = vunpack.c.l.b16 %v2335
    %v2576 = vunpack.c.l.b16 %v2336
    %v2577 = vunpack.c.l.b16 %v2337
    %v2578 = vunpack.c.l.b16 %v2338
    %v2579 = vunpack.c.l.b16 %v2339
    %v2580 = vunpack.c.l.b16 %v2340
    %v2581 = vunpack.c.l.b16 %v2341
    %v2582 = vunpack.c.l.b16 %v2342
    %v2583 = vunpack.c.l.b16 %v2343
    %v2584 = vunpack.c.l.b16 %v2344
    %v2585 = vunpack.c.l.b16 %v2345
    %v2586 = vunpack.c.l.b16 %v2346
    %v2587 = vunpack.c.l.b16 %v2347
    %v2588 = vunpack.c.l.b16 %v2348
    %v2589 = vunpack.c.l.b16 %v2349
    %v2590 = vunpack.c.l.b16 %v2350
    %v2591 = vunpack.c.l.b16 %v2351
    %v2592 = vunpack.c.l.b16 %v2352
    %v2593 = vunpack.c.l.b16 %v2353
    %v2594 = vunpack.c.l.b16 %v2354
    %v2595 = vunpack.c.l.b16 %v2355
    %v2596 = vunpack.c.l.b16 %v2356
    %v2597 = vunpack.c.l.b16 %v2357
    %v2598 = vunpack.c.l.b16 %v2358
    %v2599 = vunpack.c.l.b16 %v2359
    %v2600 = vunpack.c.l.b16 %v2360
    %v2601 = vunpack.c.l.b16 %v2361
    %v2602 = vunpack.c.l.b16 %v2362
    %v2603 = vunpack.c.l.b16 %v2363
    %v2604 = vunpack.c.l.b16 %v2364
    %v2605 = vunpack.c.l.b16 %v2365
    %v2606 = vunpack.c.l.b16 %v2366
    %v2607 = vunpack.c.l.b16 %v2367
    %v2608 = vunpack.c.l.b16 %v2368
    %v2609 = vunpack.c.l.b16 %v2369
    %v2610 = vunpack.c.l.b16 %v2370
    %v2611 = vunpack.c.l.b16 %v2371
    %v2612 = vunpack.c.l.b16 %v2372
    %v2613 = vunpack.c.l.b16 %v2373
    %v2614 = vunpack.c.l.b16 %v2374
    %v2615 = vunpack.c.l.b16 %v2375
    %v2616 = vunpack.c.l.b16 %v2376
    %v2617 = vunpack.c.l.b16 %v2377
    %v2618 = vunpack.c.l.b16 %v2378
    %v2619 = vunpack.c.l.b16 %v2379
    %v2620 = vunpack.c.l.b16 %v2380
    %v2621 = vunpack.c.l.b16 %v2381
    %v2622 = vunpack.c.l.b16 %v2382
    %v2623 = vunpack.c.l.b16 %v2383
    %v2624 = vunpack.c.l.b16 %v2384
    %v2625 = vunpack.c.l.b16 %v2385
    %v2626 = vunpack.c.l.b16 %v2386
    %v2627 = vunpack.c.l.b16 %v2387
    %v2628 = vunpack.c.l.b16 %v2388
    %v2629 = vunpack.c.l.b16 %v2389
    %v2630 = vunpack.c.l.b16 %v2390
    %v2631 = vunpack.c.l.b16 %v2391
    %v2632 = vunpack.c.l.b16 %v2392
    %v2633 = vunpack.c.l.b16 %v2393
    %v2634 = vpack.c.b16 %v2515, %v2514
    %v2635 = vpack.c.b16 %v2517, %v2516
    %v2636 = vpack.c.b16 %v2519, %v2518
    %v2637 = vpack.c.b16 %v2521, %v2520
    %v2638 = vpack.c.b16 %v2523, %v2522
    %v2639 = vpack.c.b16 %v2525, %v2524
    %v2640 = vpack.c.b16 %v2527, %v2526
    %v2641 = vpack.c.b16 %v2529, %v2528
    %v2642 = vpack.c.b16 %v2531, %v2530
    %v2643 = vpack.c.b16 %v2533, %v2532
    %v2644 = vpack.c.b16 %v2535, %v2534
    %v2645 = vpack.c.b16 %v2537, %v2536
    %v2646 = vpack.c.b16 %v2539, %v2538
    %v2647 = vpack.c.b16 %v2541, %v2540
    %v2648 = vpack.c.b16 %v2543, %v2542
    %v2649 = vpack.c.b16 %v2545, %v2544
    %v2650 = vpack.c.b16 %v2547, %v2546
    %v2651 = vpack.c.b16 %v2549, %v2548
    %v2652 = vpack.c.b16 %v2551, %v2550
    %v2653 = vpack.c.b16 %v2553, %v2552
    %v2654 = vpack.c.b16 %v2555, %v2554
    %v2655 = vpack.c.b16 %v2557, %v2556
    %v2656 = vpack.c.b16 %v2559, %v2558
    %v2657 = vpack.c.b16 %v2561, %v2560
    %v2658 = vpack.c.b16 %v2563, %v2562
    %v2659 = vpack.c.b16 %v2565, %v2564
    %v2660 = vpack.c.b16 %v2567, %v2566
    %v2661 = vpack.c.b16 %v2569, %v2568
    %v2662 = vpack.c.b16 %v2571, %v2570
    %v2663 = vpack.c.b16 %v2573, %v2572
    %v2664 = vpack.c.b16 %v2575, %v2574
    %v2665 = vpack.c.b16 %v2577, %v2576
    %v2666 = vpack.c.b16 %v2579, %v2578
    %v2667 = vpack.c.b16 %v2581, %v2580
    %v2668 = vpack.c.b16 %v2583, %v2582
    %v2669 = vpack.c.b16 %v2585, %v2584
    %v2670 = vpack.c.b16 %v2587, %v2586
    %v2671 = vpack.c.b16 %v2589, %v2588
    %v2672 = vpack.c.b16 %v2591, %v2590
    %v2673 = vpack.c.b16 %v2593, %v2592
    %v2674 = vpack.c.b16 %v2595, %v2594
    %v2675 = vpack.c.b16 %v2597, %v2596
    %v2676 = vpack.c.b16 %v2599, %v2598
    %v2677 = vpack.c.b16 %v2601, %v2600
    %v2678 = vpack.c.b16 %v2603, %v2602
    %v2679 = vpack.c.b16 %v2605, %v2604
    %v2680 = vpack.c.b16 %v2607, %v2606
    %v2681 = vpack.c.b16 %v2609, %v2608
    %v2682 = vpack.c.b16 %v2611, %v2610
    %v2683 = vpack.c.b16 %v2613, %v2612
    %v2684 = vpack.c.b16 %v2615, %v2614
    %v2685 = vpack.c.b16 %v2617, %v2616
    %v2686 = vpack.c.b16 %v2619, %v2618
    %v2687 = vpack.c.b16 %v2621, %v2620
    %v2688 = vpack.c.b16 %v2623, %v2622
    %v2689 = vpack.c.b16 %v2625, %v2624
    %v2690 = vpack.c.b16 %v2627, %v2626
    %v2691 = vpack.c.b16 %v2629, %v2628
    %v2692 = vpack.c.b16 %v2631, %v2630
    %v2693 = vpack.c.b16 %v2633, %v2632
    %v2755 = vsel %vm2265, %v2263, 0
    %2757 = vmatpush.bf16.msra.mxu0 %v2641
    %2758 = vmatpush.bf16.msra.mxu0 %v2640
    %2759 = vmatpush.bf16.msra.mxu0 %v2639
    %2760 = vmatpush.bf16.msra.mxu0 %v2638
    %2761 = vmatpush.bf16.msra.mxu0 %v2637
    %2762 = vmatpush.bf16.msra.mxu0 %v2636
    %2763 = vmatpush.bf16.msra.mxu0 %v2635
    %2764 = vmatpush.bf16.msra.mxu0 %v2634
    %2765 = vmatmul.bf16.gmra.mxu0 %v2071
    %v2766 = vpop.f32.mrf.mxu0
    %v2767 = vadd.f32 0.0, %v2766
    %v2768 = vpop.f32.mrf.mxu0
    %2769 = vdwg.mxu0
    %2770 = vmatpush.bf16.msra.mxu0 %v2649
    %2771 = vmatpush.bf16.msra.mxu0 %v2648
    %2772 = vmatpush.bf16.msra.mxu0 %v2647
    %2773 = vmatpush.bf16.msra.mxu0 %v2646
    %2774 = vmatpush.bf16.msra.mxu0 %v2645
    %2775 = vmatpush.bf16.msra.mxu0 %v2644
    %2776 = vmatpush.bf16.msra.mxu0 %v2643
    %2777 = vmatpush.bf16.msra.mxu0 %v2642
    %2778 = vmatmul.bf16.gmra.mxu0 %v2268
    %v2779 = vpop.f32.mrf.mxu0
    %v2780 = vadd.f32 %v2767, %v2779
    %v2781 = vpop.f32.mrf.mxu0
    %2782 = vdwg.mxu0
    %2783 = vmatpush.bf16.msra.mxu0 %v2657
    %2784 = vmatpush.bf16.msra.mxu0 %v2656
    %2785 = vmatpush.bf16.msra.mxu0 %v2655
    %2786 = vmatpush.bf16.msra.mxu0 %v2654
    %2787 = vmatpush.bf16.msra.mxu0 %v2653
    %2788 = vmatpush.bf16.msra.mxu0 %v2652
    %2789 = vmatpush.bf16.msra.mxu0 %v2651
    %2790 = vmatpush.bf16.msra.mxu0 %v2650
    %2791 = vmatmul.bf16.gmra.mxu0 %v2109
    %v2792 = vpop.f32.mrf.mxu0
    %v2793 = vadd.f32 %v2780, %v2792
    %v2794 = vpop.f32.mrf.mxu0
    %2795 = vdwg.mxu0
    %2796 = vmatpush.bf16.msra.mxu0 %v2665
    %2797 = vmatpush.bf16.msra.mxu0 %v2664
    %2798 = vmatpush.bf16.msra.mxu0 %v2663
    %2799 = vmatpush.bf16.msra.mxu0 %v2662
    %2800 = vmatpush.bf16.msra.mxu0 %v2661
    %2801 = vmatpush.bf16.msra.mxu0 %v2660
    %2802 = vmatpush.bf16.msra.mxu0 %v2659
    %2803 = vmatpush.bf16.msra.mxu0 %v2658
    %2804 = vmatmul.bf16.gmra.mxu0 %v2139
    %v2805 = vpop.f32.mrf.mxu0
    %v2806 = vadd.f32 %v2793, %v2805
    %v2807 = vpop.f32.mrf.mxu0
    %2808 = vdwg.mxu0
    %2809 = vmatpush.bf16.msra.mxu0 %v2673
    %2810 = vmatpush.bf16.msra.mxu0 %v2672
    %2811 = vmatpush.bf16.msra.mxu0 %v2671
    %2812 = vmatpush.bf16.msra.mxu0 %v2670
    %2813 = vmatpush.bf16.msra.mxu0 %v2669
    %2814 = vmatpush.bf16.msra.mxu0 %v2668
    %2815 = vmatpush.bf16.msra.mxu0 %v2667
    %2816 = vmatpush.bf16.msra.mxu0 %v2666
    %2817 = vmatmul.bf16.gmra.mxu0 %v2272
    %v2818 = vpop.f32.mrf.mxu0
    %v2819 = vadd.f32 %v2806, %v2818
    %v2820 = vpop.f32.mrf.mxu0
    %2821 = vdwg.mxu0
    %2822 = vmatpush.bf16.msra.mxu0 %v2681
    %2823 = vmatpush.bf16.msra.mxu0 %v2680
    %2824 = vmatpush.bf16.msra.mxu0 %v2679
    %2825 = vmatpush.bf16.msra.mxu0 %v2678
    %2826 = vmatpush.bf16.msra.mxu0 %v2677
    %2827 = vmatpush.bf16.msra.mxu0 %v2676
    %2828 = vmatpush.bf16.msra.mxu0 %v2675
    %2829 = vmatpush.bf16.msra.mxu0 %v2674
    %2830 = vmatmul.bf16.gmra.mxu0 %v2176
    %v2831 = vpop.f32.mrf.mxu0
    %v2832 = vadd.f32 %v2819, %v2831
    %v2833 = vpop.f32.mrf.mxu0
    %2834 = vdwg.mxu0
    %2835 = vmatpush.bf16.msra.mxu0 %v2689
    %2836 = vmatpush.bf16.msra.mxu0 %v2688
    %2837 = vmatpush.bf16.msra.mxu0 %v2687
    %2838 = vmatpush.bf16.msra.mxu0 %v2686
    %2839 = vmatpush.bf16.msra.mxu0 %v2685
    %2840 = vmatpush.bf16.msra.mxu0 %v2684
    %2841 = vmatpush.bf16.msra.mxu0 %v2683
    %2842 = vmatpush.bf16.msra.mxu0 %v2682
    %2843 = vmatmul.bf16.gmra.mxu0 %v2262
    %v2844 = vpop.f32.mrf.mxu0
    %v2845 = vadd.f32 %v2832, %v2844
    %v2846 = vpop.f32.mrf.mxu0
    %2847 = vdwg.mxu0
    %2848 = vmatpush.bf16.msra.mxu0 0
    %2849 = vmatpush.bf16.msra.mxu0 0
    %2850 = vmatpush.bf16.msra.mxu0 0
    %2851 = vmatpush.bf16.msra.mxu0 0
    %2852 = vmatpush.bf16.msra.mxu0 %v2693
    %2853 = vmatpush.bf16.msra.mxu0 %v2692
    %2854 = vmatpush.bf16.msra.mxu0 %v2691
    %2855 = vmatpush.bf16.msra.mxu0 %v2690
    %2856 = vmatmul.bf16.gmra.mxu0 %v2755
    %v2857 = vpop.f32.mrf.mxu0
    %v2858 = vadd.f32 %v2845, %v2857
    %v2859 = vpop.f32.mrf.mxu0
    %2860 = vdwg.mxu0
    %v2861 = vld [vmem:[#allocation4] sm:$0xf]
    %v2862 = vld [vmem:[#allocation4 + $0x4] sm:$0xf]
    %v2863 = vld [vmem:[#allocation4 + $0x8] sm:$0xf]
    %v2864 = vld [vmem:[#allocation4 + $0xc] sm:$0xf]
    %v2865 = vld [vmem:[#allocation4 + $0x10] sm:$0xf]
    %v2866 = vld [vmem:[#allocation4 + $0x14] sm:$0xf]
    %v2867 = vld [vmem:[#allocation4 + $0x18] sm:$0xf]
    %v2868 = vld [vmem:[#allocation4 + $0x1c] sm:$0xf]
    %v2869 = vld [vmem:[#allocation4 + $0x20] sm:$0xf]
    %v2870 = vld [vmem:[#allocation4 + $0x24] sm:$0xf]
    %v2871 = vld [vmem:[#allocation4 + $0x28] sm:$0xf]
    %v2872 = vld [vmem:[#allocation4 + $0x2c] sm:$0xf]
    %v2873 = vld [vmem:[#allocation4 + $0x30] sm:$0xf]
    %v2874 = vld [vmem:[#allocation4 + $0x34] sm:$0xf]
    %v2875 = vld [vmem:[#allocation4 + $0x38] sm:$0xf]
    %v2876 = vld [vmem:[#allocation4 + $0x3c] sm:$0xf]
    %v2877 = vld [vmem:[#allocation4 + $0x40] sm:$0xf]
    %v2878 = vld [vmem:[#allocation4 + $0x44] sm:$0xf]
    %v2879 = vld [vmem:[#allocation4 + $0x48] sm:$0xf]
    %v2880 = vld [vmem:[#allocation4 + $0x4c] sm:$0xf]
    %v2881 = vld [vmem:[#allocation4 + $0x50] sm:$0xf]
    %v2882 = vld [vmem:[#allocation4 + $0x54] sm:$0xf]
    %v2883 = vld [vmem:[#allocation4 + $0x58] sm:$0xf]
    %v2884 = vld [vmem:[#allocation4 + $0x5c] sm:$0xf]
    %v2885 = vld [vmem:[#allocation4 + $0x60] sm:$0xf]
    %v2886 = vld [vmem:[#allocation4 + $0x64] sm:$0xf]
    %v2887 = vld [vmem:[#allocation4 + $0x68] sm:$0xf]
    %v2888 = vld [vmem:[#allocation4 + $0x6c] sm:$0xf]
    %v2889 = vld [vmem:[#allocation4 + $0x70] sm:$0xf]
    %v2890 = vld [vmem:[#allocation4 + $0x74] sm:$0xf]
    %v2891 = vld [vmem:[#allocation4 + $0x78] sm:$0xf]
    %v2892 = vld [vmem:[#allocation4 + $0x7c] sm:$0xf]
    %v2893 = vld [vmem:[#allocation4 + $0x80] sm:$0xf]
    %v2894 = vld [vmem:[#allocation4 + $0x84] sm:$0xf]
    %v2895 = vld [vmem:[#allocation4 + $0x88] sm:$0xf]
    %v2896 = vld [vmem:[#allocation4 + $0x8c] sm:$0xf]
    %v2897 = vld [vmem:[#allocation4 + $0x90] sm:$0xf]
    %v2898 = vld [vmem:[#allocation4 + $0x94] sm:$0xf]
    %v2899 = vld [vmem:[#allocation4 + $0x98] sm:$0xf]
    %v2900 = vld [vmem:[#allocation4 + $0x9c] sm:$0xf]
    %v2901 = vld [vmem:[#allocation4 + $0xa0] sm:$0xf]
    %v2902 = vld [vmem:[#allocation4 + $0xa4] sm:$0xf]
    %v2903 = vld [vmem:[#allocation4 + $0xa8] sm:$0xf]
    %v2904 = vld [vmem:[#allocation4 + $0xac] sm:$0xf]
    %v2905 = vld [vmem:[#allocation4 + $0xb0] sm:$0xf]
    %v2906 = vld [vmem:[#allocation4 + $0xb4] sm:$0xf]
    %v2907 = vld [vmem:[#allocation4 + $0xb8] sm:$0xf]
    %v2908 = vld [vmem:[#allocation4 + $0xbc] sm:$0xf]
    %v2909 = vld [vmem:[#allocation4 + $0xc0] sm:$0xf]
    %v2910 = vld [vmem:[#allocation4 + $0xc4] sm:$0xf]
    %v2911 = vld [vmem:[#allocation4 + $0xc8] sm:$0xf]
    %v2912 = vld [vmem:[#allocation4 + $0xcc] sm:$0xf]
    %v2913 = vld [vmem:[#allocation4 + $0xd0] sm:$0xf]
    %v2914 = vld [vmem:[#allocation4 + $0xd4] sm:$0xf]
    %v2915 = vld [vmem:[#allocation4 + $0xd8] sm:$0xf]
    %v2916 = vld [vmem:[#allocation4 + $0xdc] sm:$0xf]
    %v2917 = vld [vmem:[#allocation4 + $0xe0] sm:$0xf]
    %v2918 = vld [vmem:[#allocation4 + $0xe4] sm:$0xf]
    %v2919 = vld [vmem:[#allocation4 + $0xe8] sm:$0xf]
    %v2920 = vld [vmem:[#allocation4 + $0xec] sm:$0xf]
    %v2921 = vld [vmem:[#allocation4 + $0xf0] sm:$0xf]
    %v2922 = vld [vmem:[#allocation4 + $0xf4] sm:$0xf]
    %v2923 = vld [vmem:[#allocation4 + $0xf8] sm:$0xf]
    %v2924 = vld [vmem:[#allocation4 + $0xfc] sm:$0xf]
    %v2925 = vld [vmem:[#allocation4 + $0x100] sm:$0xf]
    %v2926 = vld [vmem:[#allocation4 + $0x104] sm:$0xf]
    %v2927 = vld [vmem:[#allocation4 + $0x108] sm:$0xf]
    %v2928 = vld [vmem:[#allocation4 + $0x10c] sm:$0xf]
    %v2929 = vld [vmem:[#allocation4 + $0x110] sm:$0xf]
    %v2930 = vld [vmem:[#allocation4 + $0x114] sm:$0xf]
    %v2931 = vld [vmem:[#allocation4 + $0x118] sm:$0xf]
    %v2932 = vld [vmem:[#allocation4 + $0x11c] sm:$0xf]
    %v2933 = vld [vmem:[#allocation4 + $0x120] sm:$0xf]
    %v2934 = vld [vmem:[#allocation4 + $0x124] sm:$0xf]
    %v2935 = vld [vmem:[#allocation4 + $0x128] sm:$0xf]
    %v2936 = vld [vmem:[#allocation4 + $0x12c] sm:$0xf]
    %v2937 = vld [vmem:[#allocation4 + $0x130] sm:$0xf]
    %v2938 = vld [vmem:[#allocation4 + $0x134] sm:$0xf]
    %v2939 = vld [vmem:[#allocation4 + $0x138] sm:$0xf]
    %v2940 = vld [vmem:[#allocation4 + $0x13c] sm:$0xf]
    %v2941 = vld [vmem:[#allocation4 + $0x140] sm:$0xf]
    %v2942 = vld [vmem:[#allocation4 + $0x144] sm:$0xf]
    %v2943 = vld [vmem:[#allocation4 + $0x148] sm:$0xf]
    %v2944 = vld [vmem:[#allocation4 + $0x14c] sm:$0xf]
    %v2945 = vld [vmem:[#allocation4 + $0x150] sm:$0xf]
    %v2946 = vld [vmem:[#allocation4 + $0x154] sm:$0xf]
    %v2947 = vld [vmem:[#allocation4 + $0x158] sm:$0xf]
    %v2948 = vld [vmem:[#allocation4 + $0x15c] sm:$0xf]
    %v2949 = vld [vmem:[#allocation4 + $0x160] sm:$0xf]
    %v2950 = vld [vmem:[#allocation4 + $0x164] sm:$0xf]
    %v2951 = vld [vmem:[#allocation4 + $0x168] sm:$0xf]
    %v2952 = vld [vmem:[#allocation4 + $0x16c] sm:$0xf]
    %v2953 = vld [vmem:[#allocation4 + $0x170] sm:$0xf]
    %v2954 = vld [vmem:[#allocation4 + $0x174] sm:$0xf]
    %v2955 = vld [vmem:[#allocation4 + $0x178] sm:$0xf]
    %v2956 = vld [vmem:[#allocation4 + $0x17c] sm:$0xf]
    %v2957 = vld [vmem:[#allocation4 + $0x180] sm:$0xf]
    %v2958 = vld [vmem:[#allocation4 + $0x184] sm:$0xf]
    %v2959 = vld [vmem:[#allocation4 + $0x188] sm:$0xf]
    %v2960 = vld [vmem:[#allocation4 + $0x18c] sm:$0xf]
    %v2961 = vld [vmem:[#allocation4 + $0x190] sm:$0xf]
    %v2962 = vld [vmem:[#allocation4 + $0x194] sm:$0xf]
    %v2963 = vld [vmem:[#allocation4 + $0x198] sm:$0xf]
    %v2964 = vld [vmem:[#allocation4 + $0x19c] sm:$0xf]
    %v2965 = vld [vmem:[#allocation4 + $0x1a0] sm:$0xf]
    %v2966 = vld [vmem:[#allocation4 + $0x1a4] sm:$0xf]
    %v2967 = vld [vmem:[#allocation4 + $0x1a8] sm:$0xf]
    %v2968 = vld [vmem:[#allocation4 + $0x1ac] sm:$0xf]
    %v2969 = vld [vmem:[#allocation4 + $0x1b0] sm:$0xf]
    %v2970 = vld [vmem:[#allocation4 + $0x1b4] sm:$0xf]
    %v2971 = vld [vmem:[#allocation4 + $0x1b8] sm:$0xf]
    %v2972 = vld [vmem:[#allocation4 + $0x1bc] sm:$0xf]
    %v2973 = vld [vmem:[#allocation4 + $0x1c0] sm:$0xf]
    %v2974 = vld [vmem:[#allocation4 + $0x1c4] sm:$0xf]
    %v2975 = vld [vmem:[#allocation4 + $0x1c8] sm:$0xf]
    %v2976 = vld [vmem:[#allocation4 + $0x1cc] sm:$0xf]
    %v2977 = vld [vmem:[#allocation4 + $0x1d0] sm:$0xf]
    %v2978 = vld [vmem:[#allocation4 + $0x1d4] sm:$0xf]
    %v2979 = vld [vmem:[#allocation4 + $0x1d8] sm:$0xf]
    %v2980 = vld [vmem:[#allocation4 + $0x1dc] sm:$0xf]
    %v3101 = vunpack.c.l.b16 %v2861
    %v3102 = vunpack.c.l.b16 %v2862
    %v3103 = vunpack.c.l.b16 %v2863
    %v3104 = vunpack.c.l.b16 %v2864
    %v3105 = vunpack.c.l.b16 %v2865
    %v3106 = vunpack.c.l.b16 %v2866
    %v3107 = vunpack.c.l.b16 %v2867
    %v3108 = vunpack.c.l.b16 %v2868
    %v3109 = vunpack.c.l.b16 %v2869
    %v3110 = vunpack.c.l.b16 %v2870
    %v3111 = vunpack.c.l.b16 %v2871
    %v3112 = vunpack.c.l.b16 %v2872
    %v3113 = vunpack.c.l.b16 %v2873
    %v3114 = vunpack.c.l.b16 %v2874
    %v3115 = vunpack.c.l.b16 %v2875
    %v3116 = vunpack.c.l.b16 %v2876
    %v3117 = vunpack.c.l.b16 %v2877
    %v3118 = vunpack.c.l.b16 %v2878
    %v3119 = vunpack.c.l.b16 %v2879
    %v3120 = vunpack.c.l.b16 %v2880
    %v3121 = vunpack.c.l.b16 %v2881
    %v3122 = vunpack.c.l.b16 %v2882
    %v3123 = vunpack.c.l.b16 %v2883
    %v3124 = vunpack.c.l.b16 %v2884
    %v3125 = vunpack.c.l.b16 %v2885
    %v3126 = vunpack.c.l.b16 %v2886
    %v3127 = vunpack.c.l.b16 %v2887
    %v3128 = vunpack.c.l.b16 %v2888
    %v3129 = vunpack.c.l.b16 %v2889
    %v3130 = vunpack.c.l.b16 %v2890
    %v3131 = vunpack.c.l.b16 %v2891
    %v3132 = vunpack.c.l.b16 %v2892
    %v3133 = vunpack.c.l.b16 %v2893
    %v3134 = vunpack.c.l.b16 %v2894
    %v3135 = vunpack.c.l.b16 %v2895
    %v3136 = vunpack.c.l.b16 %v2896
    %v3137 = vunpack.c.l.b16 %v2897
    %v3138 = vunpack.c.l.b16 %v2898
    %v3139 = vunpack.c.l.b16 %v2899
    %v3140 = vunpack.c.l.b16 %v2900
    %v3141 = vunpack.c.l.b16 %v2901
    %v3142 = vunpack.c.l.b16 %v2902
    %v3143 = vunpack.c.l.b16 %v2903
    %v3144 = vunpack.c.l.b16 %v2904
    %v3145 = vunpack.c.l.b16 %v2905
    %v3146 = vunpack.c.l.b16 %v2906
    %v3147 = vunpack.c.l.b16 %v2907
    %v3148 = vunpack.c.l.b16 %v2908
    %v3149 = vunpack.c.l.b16 %v2909
    %v3150 = vunpack.c.l.b16 %v2910
    %v3151 = vunpack.c.l.b16 %v2911
    %v3152 = vunpack.c.l.b16 %v2912
    %v3153 = vunpack.c.l.b16 %v2913
    %v3154 = vunpack.c.l.b16 %v2914
    %v3155 = vunpack.c.l.b16 %v2915
    %v3156 = vunpack.c.l.b16 %v2916
    %v3157 = vunpack.c.l.b16 %v2917
    %v3158 = vunpack.c.l.b16 %v2918
    %v3159 = vunpack.c.l.b16 %v2919
    %v3160 = vunpack.c.l.b16 %v2920
    %v3161 = vunpack.c.l.b16 %v2921
    %v3162 = vunpack.c.l.b16 %v2922
    %v3163 = vunpack.c.l.b16 %v2923
    %v3164 = vunpack.c.l.b16 %v2924
    %v3165 = vunpack.c.l.b16 %v2925
    %v3166 = vunpack.c.l.b16 %v2926
    %v3167 = vunpack.c.l.b16 %v2927
    %v3168 = vunpack.c.l.b16 %v2928
    %v3169 = vunpack.c.l.b16 %v2929
    %v3170 = vunpack.c.l.b16 %v2930
    %v3171 = vunpack.c.l.b16 %v2931
    %v3172 = vunpack.c.l.b16 %v2932
    %v3173 = vunpack.c.l.b16 %v2933
    %v3174 = vunpack.c.l.b16 %v2934
    %v3175 = vunpack.c.l.b16 %v2935
    %v3176 = vunpack.c.l.b16 %v2936
    %v3177 = vunpack.c.l.b16 %v2937
    %v3178 = vunpack.c.l.b16 %v2938
    %v3179 = vunpack.c.l.b16 %v2939
    %v3180 = vunpack.c.l.b16 %v2940
    %v3181 = vunpack.c.l.b16 %v2941
    %v3182 = vunpack.c.l.b16 %v2942
    %v3183 = vunpack.c.l.b16 %v2943
    %v3184 = vunpack.c.l.b16 %v2944
    %v3185 = vunpack.c.l.b16 %v2945
    %v3186 = vunpack.c.l.b16 %v2946
    %v3187 = vunpack.c.l.b16 %v2947
    %v3188 = vunpack.c.l.b16 %v2948
    %v3189 = vunpack.c.l.b16 %v2949
    %v3190 = vunpack.c.l.b16 %v2950
    %v3191 = vunpack.c.l.b16 %v2951
    %v3192 = vunpack.c.l.b16 %v2952
    %v3193 = vunpack.c.l.b16 %v2953
    %v3194 = vunpack.c.l.b16 %v2954
    %v3195 = vunpack.c.l.b16 %v2955
    %v3196 = vunpack.c.l.b16 %v2956
    %v3197 = vunpack.c.l.b16 %v2957
    %v3198 = vunpack.c.l.b16 %v2958
    %v3199 = vunpack.c.l.b16 %v2959
    %v3200 = vunpack.c.l.b16 %v2960
    %v3201 = vunpack.c.l.b16 %v2961
    %v3202 = vunpack.c.l.b16 %v2962
    %v3203 = vunpack.c.l.b16 %v2963
    %v3204 = vunpack.c.l.b16 %v2964
    %v3205 = vunpack.c.l.b16 %v2965
    %v3206 = vunpack.c.l.b16 %v2966
    %v3207 = vunpack.c.l.b16 %v2967
    %v3208 = vunpack.c.l.b16 %v2968
    %v3209 = vunpack.c.l.b16 %v2969
    %v3210 = vunpack.c.l.b16 %v2970
    %v3211 = vunpack.c.l.b16 %v2971
    %v3212 = vunpack.c.l.b16 %v2972
    %v3213 = vunpack.c.l.b16 %v2973
    %v3214 = vunpack.c.l.b16 %v2974
    %v3215 = vunpack.c.l.b16 %v2975
    %v3216 = vunpack.c.l.b16 %v2976
    %v3217 = vunpack.c.l.b16 %v2977
    %v3218 = vunpack.c.l.b16 %v2978
    %v3219 = vunpack.c.l.b16 %v2979
    %v3220 = vunpack.c.l.b16 %v2980
    %v3221 = vpack.c.b16 %v3102, %v3101
    %v3222 = vpack.c.b16 %v3104, %v3103
    %v3223 = vpack.c.b16 %v3106, %v3105
    %v3224 = vpack.c.b16 %v3108, %v3107
    %v3225 = vpack.c.b16 %v3110, %v3109
    %v3226 = vpack.c.b16 %v3112, %v3111
    %v3227 = vpack.c.b16 %v3114, %v3113
    %v3228 = vpack.c.b16 %v3116, %v3115
    %v3229 = vpack.c.b16 %v3118, %v3117
    %v3230 = vpack.c.b16 %v3120, %v3119
    %v3231 = vpack.c.b16 %v3122, %v3121
    %v3232 = vpack.c.b16 %v3124, %v3123
    %v3233 = vpack.c.b16 %v3126, %v3125
    %v3234 = vpack.c.b16 %v3128, %v3127
    %v3235 = vpack.c.b16 %v3130, %v3129
    %v3236 = vpack.c.b16 %v3132, %v3131
    %v3237 = vpack.c.b16 %v3134, %v3133
    %v3238 = vpack.c.b16 %v3136, %v3135
    %v3239 = vpack.c.b16 %v3138, %v3137
    %v3240 = vpack.c.b16 %v3140, %v3139
    %v3241 = vpack.c.b16 %v3142, %v3141
    %v3242 = vpack.c.b16 %v3144, %v3143
    %v3243 = vpack.c.b16 %v3146, %v3145
    %v3244 = vpack.c.b16 %v3148, %v3147
    %v3245 = vpack.c.b16 %v3150, %v3149
    %v3246 = vpack.c.b16 %v3152, %v3151
    %v3247 = vpack.c.b16 %v3154, %v3153
    %v3248 = vpack.c.b16 %v3156, %v3155
    %v3249 = vpack.c.b16 %v3158, %v3157
    %v3250 = vpack.c.b16 %v3160, %v3159
    %v3251 = vpack.c.b16 %v3162, %v3161
    %v3252 = vpack.c.b16 %v3164, %v3163
    %v3253 = vpack.c.b16 %v3166, %v3165
    %v3254 = vpack.c.b16 %v3168, %v3167
    %v3255 = vpack.c.b16 %v3170, %v3169
    %v3256 = vpack.c.b16 %v3172, %v3171
    %v3257 = vpack.c.b16 %v3174, %v3173
    %v3258 = vpack.c.b16 %v3176, %v3175
    %v3259 = vpack.c.b16 %v3178, %v3177
    %v3260 = vpack.c.b16 %v3180, %v3179
    %v3261 = vpack.c.b16 %v3182, %v3181
    %v3262 = vpack.c.b16 %v3184, %v3183
    %v3263 = vpack.c.b16 %v3186, %v3185
    %v3264 = vpack.c.b16 %v3188, %v3187
    %v3265 = vpack.c.b16 %v3190, %v3189
    %v3266 = vpack.c.b16 %v3192, %v3191
    %v3267 = vpack.c.b16 %v3194, %v3193
    %v3268 = vpack.c.b16 %v3196, %v3195
    %v3269 = vpack.c.b16 %v3198, %v3197
    %v3270 = vpack.c.b16 %v3200, %v3199
    %v3271 = vpack.c.b16 %v3202, %v3201
    %v3272 = vpack.c.b16 %v3204, %v3203
    %v3273 = vpack.c.b16 %v3206, %v3205
    %v3274 = vpack.c.b16 %v3208, %v3207
    %v3275 = vpack.c.b16 %v3210, %v3209
    %v3276 = vpack.c.b16 %v3212, %v3211
    %v3277 = vpack.c.b16 %v3214, %v3213
    %v3278 = vpack.c.b16 %v3216, %v3215
    %v3279 = vpack.c.b16 %v3218, %v3217
    %v3280 = vpack.c.b16 %v3220, %v3219
    %3341 = vmatpush.bf16.msra.mxu0 %v3228
    %3342 = vmatpush.bf16.msra.mxu0 %v3227
    %3343 = vmatpush.bf16.msra.mxu0 %v3226
    %3344 = vmatpush.bf16.msra.mxu0 %v3225
    %3345 = vmatpush.bf16.msra.mxu0 %v3224
    %3346 = vmatpush.bf16.msra.mxu0 %v3223
    %3347 = vmatpush.bf16.msra.mxu0 %v3222
    %3348 = vmatpush.bf16.msra.mxu0 %v3221
    %3349 = vmatmul.bf16.gmra.mxu0 %v2071
    %v3350 = vpop.f32.mrf.mxu0
    %v3351 = vadd.f32 0.0, %v3350
    %v3352 = vpop.f32.mrf.mxu0
    %3353 = vdwg.mxu0
    %3354 = vmatpush.bf16.msra.mxu0 %v3236
    %3355 = vmatpush.bf16.msra.mxu0 %v3235
    %3356 = vmatpush.bf16.msra.mxu0 %v3234
    %3357 = vmatpush.bf16.msra.mxu0 %v3233
    %3358 = vmatpush.bf16.msra.mxu0 %v3232
    %3359 = vmatpush.bf16.msra.mxu0 %v3231
    %3360 = vmatpush.bf16.msra.mxu0 %v3230
    %3361 = vmatpush.bf16.msra.mxu0 %v3229
    %3362 = vmatmul.bf16.gmra.mxu0 %v2268
    %v3363 = vpop.f32.mrf.mxu0
    %v3364 = vadd.f32 %v3351, %v3363
    %v3365 = vpop.f32.mrf.mxu0
    %3366 = vdwg.mxu0
    %3367 = vmatpush.bf16.msra.mxu0 %v3244
    %3368 = vmatpush.bf16.msra.mxu0 %v3243
    %3369 = vmatpush.bf16.msra.mxu0 %v3242
    %3370 = vmatpush.bf16.msra.mxu0 %v3241
    %3371 = vmatpush.bf16.msra.mxu0 %v3240
    %3372 = vmatpush.bf16.msra.mxu0 %v3239
    %3373 = vmatpush.bf16.msra.mxu0 %v3238
    %3374 = vmatpush.bf16.msra.mxu0 %v3237
    %3375 = vmatmul.bf16.gmra.mxu0 %v2109
    %v3376 = vpop.f32.mrf.mxu0
    %v3377 = vadd.f32 %v3364, %v3376
    %v3378 = vpop.f32.mrf.mxu0
    %3379 = vdwg.mxu0
    %3380 = vmatpush.bf16.msra.mxu0 %v3252
    %3381 = vmatpush.bf16.msra.mxu0 %v3251
    %3382 = vmatpush.bf16.msra.mxu0 %v3250
    %3383 = vmatpush.bf16.msra.mxu0 %v3249
    %3384 = vmatpush.bf16.msra.mxu0 %v3248
    %3385 = vmatpush.bf16.msra.mxu0 %v3247
    %3386 = vmatpush.bf16.msra.mxu0 %v3246
    %3387 = vmatpush.bf16.msra.mxu0 %v3245
    %3388 = vmatmul.bf16.gmra.mxu0 %v2139
    %v3389 = vpop.f32.mrf.mxu0
    %v3390 = vadd.f32 %v3377, %v3389
    %v3391 = vpop.f32.mrf.mxu0
    %3392 = vdwg.mxu0
    %3393 = vmatpush.bf16.msra.mxu0 %v3260
    %3394 = vmatpush.bf16.msra.mxu0 %v3259
    %3395 = vmatpush.bf16.msra.mxu0 %v3258
    %3396 = vmatpush.bf16.msra.mxu0 %v3257
    %3397 = vmatpush.bf16.msra.mxu0 %v3256
    %3398 = vmatpush.bf16.msra.mxu0 %v3255
    %3399 = vmatpush.bf16.msra.mxu0 %v3254
    %3400 = vmatpush.bf16.msra.mxu0 %v3253
    %3401 = vmatmul.bf16.gmra.mxu0 %v2272
    %v3402 = vpop.f32.mrf.mxu0
    %v3403 = vadd.f32 %v3390, %v3402
    %v3404 = vpop.f32.mrf.mxu0
    %3405 = vdwg.mxu0
    %3406 = vmatpush.bf16.msra.mxu0 %v3268
    %3407 = vmatpush.bf16.msra.mxu0 %v3267
    %3408 = vmatpush.bf16.msra.mxu0 %v3266
    %3409 = vmatpush.bf16.msra.mxu0 %v3265
    %3410 = vmatpush.bf16.msra.mxu0 %v3264
    %3411 = vmatpush.bf16.msra.mxu0 %v3263
    %3412 = vmatpush.bf16.msra.mxu0 %v3262
    %3413 = vmatpush.bf16.msra.mxu0 %v3261
    %3414 = vmatmul.bf16.gmra.mxu0 %v2176
    %v3415 = vpop.f32.mrf.mxu0
    %v3416 = vadd.f32 %v3403, %v3415
    %v3417 = vpop.f32.mrf.mxu0
    %3418 = vdwg.mxu0
    %3419 = vmatpush.bf16.msra.mxu0 %v3276
    %3420 = vmatpush.bf16.msra.mxu0 %v3275
    %3421 = vmatpush.bf16.msra.mxu0 %v3274
    %3422 = vmatpush.bf16.msra.mxu0 %v3273
    %3423 = vmatpush.bf16.msra.mxu0 %v3272
    %3424 = vmatpush.bf16.msra.mxu0 %v3271
    %3425 = vmatpush.bf16.msra.mxu0 %v3270
    %3426 = vmatpush.bf16.msra.mxu0 %v3269
    %3427 = vmatmul.bf16.gmra.mxu0 %v2262
    %v3428 = vpop.f32.mrf.mxu0
    %v3429 = vadd.f32 %v3416, %v3428
    %v3430 = vpop.f32.mrf.mxu0
    %3431 = vdwg.mxu0
    %3432 = vmatpush.bf16.msra.mxu0 0
    %3433 = vmatpush.bf16.msra.mxu0 0
    %3434 = vmatpush.bf16.msra.mxu0 0
    %3435 = vmatpush.bf16.msra.mxu0 0
    %3436 = vmatpush.bf16.msra.mxu0 %v3280
    %3437 = vmatpush.bf16.msra.mxu0 %v3279
    %3438 = vmatpush.bf16.msra.mxu0 %v3278
    %3439 = vmatpush.bf16.msra.mxu0 %v3277
    %3440 = vmatmul.bf16.gmra.mxu0 %v2755
    %v3441 = vpop.f32.mrf.mxu0
    %v3442 = vadd.f32 %v3429, %v3441
    %v3443 = vpop.f32.mrf.mxu0
    %3444 = vdwg.mxu0
    %v3445 = vmax.f32 %v2858, %v3442
    %v3446 = vld [vmem:[%s6] sm:$0x1]
    %v3448 = vperm.slane %v3446, 0
    %v3450 = vadd.f32 %v3445, %v3448
    %v3451 = vmax.f32 %v3450, 0.0
    %v3452 = vsel %vm2043, %v2036, %v2020
    %v3453 = vsel %vm2046, %v2039, %v3452
    %v3454 = vsel %vm2049, %v2042, %v3453
    %v3455 = vsel %vm2052, %v2045, %v3454
    %v3456 = vsel %vm2055, %v2048, %v3455
    %v3457 = vsel %vm2043, %v2057, %v2021
    %v3458 = vsel %vm2046, %v2059, %v3457
    %v3459 = vsel %vm2049, %v2061, %v3458
    %v3460 = vsel %vm2052, %v2063, %v3459
    %v3461 = vsel %vm2055, %v2065, %v3460
    %v3462 = vsel %vm2037, %v2054, %v2051
    %v3463 = vsel %vm2037, %v2069, %v2067
    %v3464 = vpack.c.b16 %v3462, %v3456
    %v3465 = vpack.c.b16 %v3463, %v3461
    %v3466 = vsel %vm2043, %v2075, %v2074
    %v3467 = vsel %vm2046, %v2024, %v3466
    %v3468 = vsel %vm2049, %v2078, %v3467
    %v3469 = vsel %vm2052, %v2080, %v3468
    %v3470 = vsel %vm2055, %v2082, %v3469
    %v3471 = vsel %vm2043, %v2089, %v2088
    %v3472 = vsel %vm2046, %v2025, %v3471
    %v3473 = vsel %vm2049, %v2092, %v3472
    %v3474 = vsel %vm2052, %v2094, %v3473
    %v3475 = vsel %vm2055, %v2096, %v3474
    %v3476 = vsel %vm2037, %v2086, %v2084
    %v3477 = vsel %vm2037, %v2100, %v2098
    %v3478 = vpack.c.b16 %v3476, %v3470
    %v3479 = vpack.c.b16 %v3477, %v3475
    %3480 = vrot.lane.b32.xlu0 %v3478, 64
    %v3481 = vpop.permute.xlu0 %3480
    %3482 = vrot.lane.b32.xlu0 %v3479, 64
    %v3483 = vpop.permute.xlu0 %3482
    %v3484 = vsel %vm2108, %v3481, %v3483
    %v3485 = vsel %vm2043, %v2112, %v2111
    %v3486 = vsel %vm2046, %v2114, %v3485
    %v3487 = vsel %vm2049, %v2116, %v3486
    %v3488 = vsel %vm2052, %v2028, %v3487
    %v3489 = vsel %vm2055, %v2119, %v3488
    %v3490 = vsel %vm2043, %v2126, %v2125
    %v3491 = vsel %vm2046, %v2128, %v3490
    %v3492 = vsel %vm2049, %v2130, %v3491
    %v3493 = vsel %vm2052, %v2029, %v3492
    %v3494 = vsel %vm2055, %v2133, %v3493
    %v3495 = vsel %vm2037, %v2123, %v2121
    %v3496 = vsel %vm2037, %v2137, %v2135
    %v3497 = vpack.c.b16 %v3495, %v3489
    %v3498 = vpack.c.b16 %v3496, %v3494
    %v3499 = vrot.slane %v2218, 6
    %v3500 = vrot.slane %v2220, 5
    %v3501 = vsel %vm2043, %v3500, %v3499
    %v3502 = vrot.slane %v2222, 4
    %v3503 = vsel %vm2046, %v3502, %v3501
    %v3504 = vrot.slane %v2224, 3
    %v3505 = vsel %vm2049, %v3504, %v3503
    %v3506 = vrot.slane %v2226, 2
    %v3507 = vsel %vm2052, %v3506, %v3505
    %v3508 = vrot.slane %v2228, 1
    %v3509 = vsel %vm2055, %v3508, %v3507
    %v3510 = vrot.slane %v2219, 6
    %v3511 = vrot.slane %v2221, 5
    %v3512 = vsel %vm2043, %v3511, %v3510
    %v3513 = vrot.slane %v2223, 4
    %v3514 = vsel %vm2046, %v3513, %v3512
    %v3515 = vrot.slane %v2225, 3
    %v3516 = vsel %vm2049, %v3515, %v3514
    %v3517 = vrot.slane %v2227, 2
    %v3518 = vsel %vm2052, %v3517, %v3516
    %v3519 = vrot.slane %v2229, 1
    %v3520 = vsel %vm2055, %v3519, %v3518
    %v3521 = vrot.slane %v2232, 7
    %v3522 = vsel %vm2037, %v3521, %v2230
    %v3523 = vrot.slane %v2233, 7
    %v3524 = vsel %vm2037, %v3523, %v2231
    %v3525 = vpack.c.b16 %v3522, %v3509
    %v3526 = vpack.c.b16 %v3524, %v3520
    %3527 = vrot.lane.b32.xlu0 %v3525, 64
    %v3528 = vpop.permute.xlu0 %3527
    %3529 = vrot.lane.b32.xlu0 %v3526, 64
    %v3530 = vpop.permute.xlu0 %3529
    %v3531 = vsel %vm2108, %v3528, %v3530
    %v3532 = vsel %vm2043, %v2234, %v2218
    %v3533 = vsel %vm2046, %v2236, %v3532
    %v3534 = vsel %vm2049, %v2238, %v3533
    %v3535 = vsel %vm2052, %v2240, %v3534
    %v3536 = vsel %vm2055, %v2242, %v3535
    %v3537 = vsel %vm2043, %v2248, %v2219
    %v3538 = vsel %vm2046, %v2250, %v3537
    %v3539 = vsel %vm2049, %v2252, %v3538
    %v3540 = vsel %vm2052, %v2254, %v3539
    %v3541 = vsel %vm2055, %v2256, %v3540
    %v3542 = vsel %vm2037, %v2246, %v2244
    %v3543 = vsel %vm2037, %v2260, %v2258
    %v3544 = vpack.c.b16 %v3542, %v3536
    %v3545 = vpack.c.b16 %v3543, %v3541
    %v3548 = vsel %vm2265, %v3465, %v3481
    %v3551 = vsel %vm2265, %v3498, %v3528
    %v3554 = vrot.slane %v3464, 1
    %v3555 = vrot.slane %v3548, 1
    %v3556 = vrot.slane %v3484, 1
    %v3557 = vrot.slane %v3497, 1
    %v3558 = vrot.slane %v3551, 1
    %v3559 = vrot.slane %v3531, 1
    %v3560 = vrot.slane %v3544, 1
    %v3561 = vrot.slane %v3545, 1
    %v3570 = vsel %vm2265, %v3561, 0
    %3572 = vmatpush.bf16.msra.mxu0 %v2641
    %3573 = vmatpush.bf16.msra.mxu0 %v2640
    %3574 = vmatpush.bf16.msra.mxu0 %v2639
    %3575 = vmatpush.bf16.msra.mxu0 %v2638
    %3576 = vmatpush.bf16.msra.mxu0 %v2637
    %3577 = vmatpush.bf16.msra.mxu0 %v2636
    %3578 = vmatpush.bf16.msra.mxu0 %v2635
    %3579 = vmatpush.bf16.msra.mxu0 %v2634
    %3580 = vmatmul.bf16.gmra.mxu0 %v3554
    %v3581 = vpop.f32.mrf.mxu0
    %v3582 = vadd.f32 0.0, %v3581
    %v3583 = vpop.f32.mrf.mxu0
    %3584 = vdwg.mxu0
    %3585 = vmatpush.bf16.msra.mxu0 %v2649
    %3586 = vmatpush.bf16.msra.mxu0 %v2648
    %3587 = vmatpush.bf16.msra.mxu0 %v2647
    %3588 = vmatpush.bf16.msra.mxu0 %v2646
    %3589 = vmatpush.bf16.msra.mxu0 %v2645
    %3590 = vmatpush.bf16.msra.mxu0 %v2644
    %3591 = vmatpush.bf16.msra.mxu0 %v2643
    %3592 = vmatpush.bf16.msra.mxu0 %v2642
    %3593 = vmatmul.bf16.gmra.mxu0 %v3555
    %v3594 = vpop.f32.mrf.mxu0
    %v3595 = vadd.f32 %v3582, %v3594
    %v3596 = vpop.f32.mrf.mxu0
    %3597 = vdwg.mxu0
    %3598 = vmatpush.bf16.msra.mxu0 %v2657
    %3599 = vmatpush.bf16.msra.mxu0 %v2656
    %3600 = vmatpush.bf16.msra.mxu0 %v2655
    %3601 = vmatpush.bf16.msra.mxu0 %v2654
    %3602 = vmatpush.bf16.msra.mxu0 %v2653
    %3603 = vmatpush.bf16.msra.mxu0 %v2652
    %3604 = vmatpush.bf16.msra.mxu0 %v2651
    %3605 = vmatpush.bf16.msra.mxu0 %v2650
    %3606 = vmatmul.bf16.gmra.mxu0 %v3556
    %v3607 = vpop.f32.mrf.mxu0
    %v3608 = vadd.f32 %v3595, %v3607
    %v3609 = vpop.f32.mrf.mxu0
    %3610 = vdwg.mxu0
    %3611 = vmatpush.bf16.msra.mxu0 %v2665
    %3612 = vmatpush.bf16.msra.mxu0 %v2664
    %3613 = vmatpush.bf16.msra.mxu0 %v2663
    %3614 = vmatpush.bf16.msra.mxu0 %v2662
    %3615 = vmatpush.bf16.msra.mxu0 %v2661
    %3616 = vmatpush.bf16.msra.mxu0 %v2660
    %3617 = vmatpush.bf16.msra.mxu0 %v2659
    %3618 = vmatpush.bf16.msra.mxu0 %v2658
    %3619 = vmatmul.bf16.gmra.mxu0 %v3557
    %v3620 = vpop.f32.mrf.mxu0
    %v3621 = vadd.f32 %v3608, %v3620
    %v3622 = vpop.f32.mrf.mxu0
    %3623 = vdwg.mxu0
    %3624 = vmatpush.bf16.msra.mxu0 %v2673
    %3625 = vmatpush.bf16.msra.mxu0 %v2672
    %3626 = vmatpush.bf16.msra.mxu0 %v2671
    %3627 = vmatpush.bf16.msra.mxu0 %v2670
    %3628 = vmatpush.bf16.msra.mxu0 %v2669
    %3629 = vmatpush.bf16.msra.mxu0 %v2668
    %3630 = vmatpush.bf16.msra.mxu0 %v2667
    %3631 = vmatpush.bf16.msra.mxu0 %v2666
    %3632 = vmatmul.bf16.gmra.mxu0 %v3558
    %v3633 = vpop.f32.mrf.mxu0
    %v3634 = vadd.f32 %v3621, %v3633
    %v3635 = vpop.f32.mrf.mxu0
    %3636 = vdwg.mxu0
    %3637 = vmatpush.bf16.msra.mxu0 %v2681
    %3638 = vmatpush.bf16.msra.mxu0 %v2680
    %3639 = vmatpush.bf16.msra.mxu0 %v2679
    %3640 = vmatpush.bf16.msra.mxu0 %v2678
    %3641 = vmatpush.bf16.msra.mxu0 %v2677
    %3642 = vmatpush.bf16.msra.mxu0 %v2676
    %3643 = vmatpush.bf16.msra.mxu0 %v2675
    %3644 = vmatpush.bf16.msra.mxu0 %v2674
    %3645 = vmatmul.bf16.gmra.mxu0 %v3559
    %v3646 = vpop.f32.mrf.mxu0
    %v3647 = vadd.f32 %v3634, %v3646
    %v3648 = vpop.f32.mrf.mxu0
    %3649 = vdwg.mxu0
    %3650 = vmatpush.bf16.msra.mxu0 %v2689
    %3651 = vmatpush.bf16.msra.mxu0 %v2688
    %3652 = vmatpush.bf16.msra.mxu0 %v2687
    %3653 = vmatpush.bf16.msra.mxu0 %v2686
    %3654 = vmatpush.bf16.msra.mxu0 %v2685
    %3655 = vmatpush.bf16.msra.mxu0 %v2684
    %3656 = vmatpush.bf16.msra.mxu0 %v2683
    %3657 = vmatpush.bf16.msra.mxu0 %v2682
    %3658 = vmatmul.bf16.gmra.mxu0 %v3560
    %v3659 = vpop.f32.mrf.mxu0
    %v3660 = vadd.f32 %v3647, %v3659
    %v3661 = vpop.f32.mrf.mxu0
    %3662 = vdwg.mxu0
    %3663 = vmatpush.bf16.msra.mxu0 0
    %3664 = vmatpush.bf16.msra.mxu0 0
    %3665 = vmatpush.bf16.msra.mxu0 0
    %3666 = vmatpush.bf16.msra.mxu0 0
    %3667 = vmatpush.bf16.msra.mxu0 %v2693
    %3668 = vmatpush.bf16.msra.mxu0 %v2692
    %3669 = vmatpush.bf16.msra.mxu0 %v2691
    %3670 = vmatpush.bf16.msra.mxu0 %v2690
    %3671 = vmatmul.bf16.gmra.mxu0 %v3570
    %v3672 = vpop.f32.mrf.mxu0
    %v3673 = vadd.f32 %v3660, %v3672
    %v3674 = vpop.f32.mrf.mxu0
    %3675 = vdwg.mxu0
    %3676 = vmatpush.bf16.msra.mxu0 %v3228
    %3677 = vmatpush.bf16.msra.mxu0 %v3227
    %3678 = vmatpush.bf16.msra.mxu0 %v3226
    %3679 = vmatpush.bf16.msra.mxu0 %v3225
    %3680 = vmatpush.bf16.msra.mxu0 %v3224
    %3681 = vmatpush.bf16.msra.mxu0 %v3223
    %3682 = vmatpush.bf16.msra.mxu0 %v3222
    %3683 = vmatpush.bf16.msra.mxu0 %v3221
    %3684 = vmatmul.bf16.gmra.mxu0 %v3554
    %v3685 = vpop.f32.mrf.mxu0
    %v3686 = vadd.f32 0.0, %v3685
    %v3687 = vpop.f32.mrf.mxu0
    %3688 = vdwg.mxu0
    %3689 = vmatpush.bf16.msra.mxu0 %v3236
    %3690 = vmatpush.bf16.msra.mxu0 %v3235
    %3691 = vmatpush.bf16.msra.mxu0 %v3234
    %3692 = vmatpush.bf16.msra.mxu0 %v3233
    %3693 = vmatpush.bf16.msra.mxu0 %v3232
    %3694 = vmatpush.bf16.msra.mxu0 %v3231
    %3695 = vmatpush.bf16.msra.mxu0 %v3230
    %3696 = vmatpush.bf16.msra.mxu0 %v3229
    %3697 = vmatmul.bf16.gmra.mxu0 %v3555
    %v3698 = vpop.f32.mrf.mxu0
    %v3699 = vadd.f32 %v3686, %v3698
    %v3700 = vpop.f32.mrf.mxu0
    %3701 = vdwg.mxu0
    %3702 = vmatpush.bf16.msra.mxu0 %v3244
    %3703 = vmatpush.bf16.msra.mxu0 %v3243
    %3704 = vmatpush.bf16.msra.mxu0 %v3242
    %3705 = vmatpush.bf16.msra.mxu0 %v3241
    %3706 = vmatpush.bf16.msra.mxu0 %v3240
    %3707 = vmatpush.bf16.msra.mxu0 %v3239
    %3708 = vmatpush.bf16.msra.mxu0 %v3238
    %3709 = vmatpush.bf16.msra.mxu0 %v3237
    %3710 = vmatmul.bf16.gmra.mxu0 %v3556
    %v3711 = vpop.f32.mrf.mxu0
    %v3712 = vadd.f32 %v3699, %v3711
    %v3713 = vpop.f32.mrf.mxu0
    %3714 = vdwg.mxu0
    %3715 = vmatpush.bf16.msra.mxu0 %v3252
    %3716 = vmatpush.bf16.msra.mxu0 %v3251
    %3717 = vmatpush.bf16.msra.mxu0 %v3250
    %3718 = vmatpush.bf16.msra.mxu0 %v3249
    %3719 = vmatpush.bf16.msra.mxu0 %v3248
    %3720 = vmatpush.bf16.msra.mxu0 %v3247
    %3721 = vmatpush.bf16.msra.mxu0 %v3246
    %3722 = vmatpush.bf16.msra.mxu0 %v3245
    %3723 = vmatmul.bf16.gmra.mxu0 %v3557
    %v3724 = vpop.f32.mrf.mxu0
    %v3725 = vadd.f32 %v3712, %v3724
    %v3726 = vpop.f32.mrf.mxu0
    %3727 = vdwg.mxu0
    %3728 = vmatpush.bf16.msra.mxu0 %v3260
    %3729 = vmatpush.bf16.msra.mxu0 %v3259
    %3730 = vmatpush.bf16.msra.mxu0 %v3258
    %3731 = vmatpush.bf16.msra.mxu0 %v3257
    %3732 = vmatpush.bf16.msra.mxu0 %v3256
    %3733 = vmatpush.bf16.msra.mxu0 %v3255
    %3734 = vmatpush.bf16.msra.mxu0 %v3254
    %3735 = vmatpush.bf16.msra.mxu0 %v3253
    %3736 = vmatmul.bf16.gmra.mxu0 %v3558
    %v3737 = vpop.f32.mrf.mxu0
    %v3738 = vadd.f32 %v3725, %v3737
    %v3739 = vpop.f32.mrf.mxu0
    %3740 = vdwg.mxu0
    %3741 = vmatpush.bf16.msra.mxu0 %v3268
    %3742 = vmatpush.bf16.msra.mxu0 %v3267
    %3743 = vmatpush.bf16.msra.mxu0 %v3266
    %3744 = vmatpush.bf16.msra.mxu0 %v3265
    %3745 = vmatpush.bf16.msra.mxu0 %v3264
    %3746 = vmatpush.bf16.msra.mxu0 %v3263
    %3747 = vmatpush.bf16.msra.mxu0 %v3262
    %3748 = vmatpush.bf16.msra.mxu0 %v3261
    %3749 = vmatmul.bf16.gmra.mxu0 %v3559
    %v3750 = vpop.f32.mrf.mxu0
    %v3751 = vadd.f32 %v3738, %v3750
    %v3752 = vpop.f32.mrf.mxu0
    %3753 = vdwg.mxu0
    %3754 = vmatpush.bf16.msra.mxu0 %v3276
    %3755 = vmatpush.bf16.msra.mxu0 %v3275
    %3756 = vmatpush.bf16.msra.mxu0 %v3274
    %3757 = vmatpush.bf16.msra.mxu0 %v3273
    %3758 = vmatpush.bf16.msra.mxu0 %v3272
    %3759 = vmatpush.bf16.msra.mxu0 %v3271
    %3760 = vmatpush.bf16.msra.mxu0 %v3270
    %3761 = vmatpush.bf16.msra.mxu0 %v3269
    %3762 = vmatmul.bf16.gmra.mxu0 %v3560
    %v3763 = vpop.f32.mrf.mxu0
    %v3764 = vadd.f32 %v3751, %v3763
    %v3765 = vpop.f32.mrf.mxu0
    %3766 = vdwg.mxu0
    %3767 = vmatpush.bf16.msra.mxu0 0
    %3768 = vmatpush.bf16.msra.mxu0 0
    %3769 = vmatpush.bf16.msra.mxu0 0
    %3770 = vmatpush.bf16.msra.mxu0 0
    %3771 = vmatpush.bf16.msra.mxu0 %v3280
    %3772 = vmatpush.bf16.msra.mxu0 %v3279
    %3773 = vmatpush.bf16.msra.mxu0 %v3278
    %3774 = vmatpush.bf16.msra.mxu0 %v3277
    %3775 = vmatmul.bf16.gmra.mxu0 %v3570
    %v3776 = vpop.f32.mrf.mxu0
    %v3777 = vadd.f32 %v3764, %v3776
    %v3778 = vpop.f32.mrf.mxu0
    %3779 = vdwg.mxu0
    %v3780 = vmax.f32 %v3673, %v3777
    %v3781 = vadd.f32 %v3780, %v3448
    %v3782 = vmax.f32 %v3781, 0.0
    %v3783 = vsel %vm2049, %v2036, %v2020
    %v3784 = vsel %vm2052, %v2039, %v3783
    %v3785 = vsel %vm2055, %v2042, %v3784
    %v3786 = vsel %vm2049, %v2057, %v2021
    %v3787 = vsel %vm2052, %v2059, %v3786
    %v3788 = vsel %vm2055, %v2061, %v3787
    %v3789 = vsel %vm2037, %v2048, %v2045
    %v3790 = vsel %vm2040, %v2051, %v3789
    %v3791 = vsel %vm2043, %v2054, %v3790
    %v3792 = vsel %vm2037, %v2065, %v2063
    %v3793 = vsel %vm2040, %v2067, %v3792
    %v3794 = vsel %vm2043, %v2069, %v3793
    %v3795 = vpack.c.b16 %v3791, %v3785
    %v3796 = vpack.c.b16 %v3794, %v3788
    %v3797 = vsel %vm2049, %v2075, %v2074
    %v3798 = vsel %vm2052, %v2024, %v3797
    %v3799 = vsel %vm2055, %v2078, %v3798
    %v3800 = vsel %vm2049, %v2089, %v2088
    %v3801 = vsel %vm2052, %v2025, %v3800
    %v3802 = vsel %vm2055, %v2092, %v3801
    %v3803 = vsel %vm2037, %v2082, %v2080
    %v3804 = vsel %vm2040, %v2084, %v3803
    %v3805 = vsel %vm2043, %v2086, %v3804
    %v3806 = vsel %vm2037, %v2096, %v2094
    %v3807 = vsel %vm2040, %v2098, %v3806
    %v3808 = vsel %vm2043, %v2100, %v3807
    %v3809 = vpack.c.b16 %v3805, %v3799
    %v3810 = vpack.c.b16 %v3808, %v3802
    %3811 = vrot.lane.b32.xlu0 %v3809, 64
    %v3812 = vpop.permute.xlu0 %3811
    %3813 = vrot.lane.b32.xlu0 %v3810, 64
    %v3814 = vpop.permute.xlu0 %3813
    %v3815 = vsel %vm2108, %v3812, %v3814
    %v3816 = vrot.slane %v2218, 4
    %v3817 = vrot.slane %v2220, 3
    %v3818 = vsel %vm2049, %v3817, %v3816
    %v3819 = vrot.slane %v2222, 2
    %v3820 = vsel %vm2052, %v3819, %v3818
    %v3821 = vrot.slane %v2224, 1
    %v3822 = vsel %vm2055, %v3821, %v3820
    %v3823 = vrot.slane %v2219, 4
    %v3824 = vrot.slane %v2221, 3
    %v3825 = vsel %vm2049, %v3824, %v3823
    %v3826 = vrot.slane %v2223, 2
    %v3827 = vsel %vm2052, %v3826, %v3825
    %v3828 = vrot.slane %v2225, 1
    %v3829 = vsel %vm2055, %v3828, %v3827
    %v3830 = vrot.slane %v2228, 7
    %v3831 = vsel %vm2037, %v3830, %v2226
    %v3832 = vrot.slane %v2230, 6
    %v3833 = vsel %vm2040, %v3832, %v3831
    %v3834 = vrot.slane %v2232, 5
    %v3835 = vsel %vm2043, %v3834, %v3833
    %v3836 = vrot.slane %v2229, 7
    %v3837 = vsel %vm2037, %v3836, %v2227
    %v3838 = vrot.slane %v2231, 6
    %v3839 = vsel %vm2040, %v3838, %v3837
    %v3840 = vrot.slane %v2233, 5
    %v3841 = vsel %vm2043, %v3840, %v3839
    %v3842 = vpack.c.b16 %v3835, %v3822
    %v3843 = vpack.c.b16 %v3841, %v3829
    %v3844 = vsel %vm2049, %v3500, %v3499
    %v3845 = vsel %vm2052, %v3502, %v3844
    %v3846 = vsel %vm2055, %v3504, %v3845
    %v3847 = vsel %vm2049, %v3511, %v3510
    %v3848 = vsel %vm2052, %v3513, %v3847
    %v3849 = vsel %vm2055, %v3515, %v3848
    %v3850 = vsel %vm2037, %v3508, %v3506
    %v3851 = vsel %vm2040, %v2230, %v3850
    %v3852 = vsel %vm2043, %v3521, %v3851
    %v3853 = vsel %vm2037, %v3519, %v3517
    %v3854 = vsel %vm2040, %v2231, %v3853
    %v3855 = vsel %vm2043, %v3523, %v3854
    %v3856 = vpack.c.b16 %v3852, %v3846
    %v3857 = vpack.c.b16 %v3855, %v3849
    %3858 = vrot.lane.b32.xlu0 %v3856, 64
    %v3859 = vpop.permute.xlu0 %3858
    %3860 = vrot.lane.b32.xlu0 %v3857, 64
    %v3861 = vpop.permute.xlu0 %3860
    %v3862 = vsel %vm2108, %v3859, %v3861
    %v3863 = vsel %vm2049, %v2234, %v2218
    %v3864 = vsel %vm2052, %v2236, %v3863
    %v3865 = vsel %vm2055, %v2238, %v3864
    %v3866 = vsel %vm2049, %v2248, %v2219
    %v3867 = vsel %vm2052, %v2250, %v3866
    %v3868 = vsel %vm2055, %v2252, %v3867
    %v3869 = vsel %vm2037, %v2242, %v2240
    %v3870 = vsel %vm2040, %v2244, %v3869
    %v3871 = vsel %vm2043, %v2246, %v3870
    %v3872 = vsel %vm2037, %v2256, %v2254
    %v3873 = vsel %vm2040, %v2258, %v3872
    %v3874 = vsel %vm2043, %v2260, %v3873
    %v3875 = vpack.c.b16 %v3871, %v3865
    %v3876 = vpack.c.b16 %v3874, %v3868
    %v3879 = vsel %vm2265, %v3796, %v3812
    %v3882 = vsel %vm2265, %v3843, %v3859
    %v3885 = vrot.slane %v3795, 2
    %v3886 = vrot.slane %v3879, 2
    %v3887 = vrot.slane %v3815, 2
    %v3888 = vrot.slane %v3842, 2
    %v3889 = vrot.slane %v3882, 2
    %v3890 = vrot.slane %v3862, 2
    %v3891 = vrot.slane %v3875, 2
    %v3892 = vrot.slane %v3876, 2
    %v3901 = vsel %vm2265, %v3892, 0
    %3903 = vmatpush.bf16.msra.mxu0 %v2641
    %3904 = vmatpush.bf16.msra.mxu0 %v2640
    %3905 = vmatpush.bf16.msra.mxu0 %v2639
    %3906 = vmatpush.bf16.msra.mxu0 %v2638
    %3907 = vmatpush.bf16.msra.mxu0 %v2637
    %3908 = vmatpush.bf16.msra.mxu0 %v2636
    %3909 = vmatpush.bf16.msra.mxu0 %v2635
    %3910 = vmatpush.bf16.msra.mxu0 %v2634
    %3911 = vmatmul.bf16.gmra.mxu0 %v3885
    %v3912 = vpop.f32.mrf.mxu0
    %v3913 = vadd.f32 0.0, %v3912
    %v3914 = vpop.f32.mrf.mxu0
    %3915 = vdwg.mxu0
    %3916 = vmatpush.bf16.msra.mxu0 %v2649
    %3917 = vmatpush.bf16.msra.mxu0 %v2648
    %3918 = vmatpush.bf16.msra.mxu0 %v2647
    %3919 = vmatpush.bf16.msra.mxu0 %v2646
    %3920 = vmatpush.bf16.msra.mxu0 %v2645
    %3921 = vmatpush.bf16.msra.mxu0 %v2644
    %3922 = vmatpush.bf16.msra.mxu0 %v2643
    %3923 = vmatpush.bf16.msra.mxu0 %v2642
    %3924 = vmatmul.bf16.gmra.mxu0 %v3886
    %v3925 = vpop.f32.mrf.mxu0
    %v3926 = vadd.f32 %v3913, %v3925
    %v3927 = vpop.f32.mrf.mxu0
    %3928 = vdwg.mxu0
    %3929 = vmatpush.bf16.msra.mxu0 %v2657
    %3930 = vmatpush.bf16.msra.mxu0 %v2656
    %3931 = vmatpush.bf16.msra.mxu0 %v2655
    %3932 = vmatpush.bf16.msra.mxu0 %v2654
    %3933 = vmatpush.bf16.msra.mxu0 %v2653
    %3934 = vmatpush.bf16.msra.mxu0 %v2652
    %3935 = vmatpush.bf16.msra.mxu0 %v2651
    %3936 = vmatpush.bf16.msra.mxu0 %v2650
    %3937 = vmatmul.bf16.gmra.mxu0 %v3887
    %v3938 = vpop.f32.mrf.mxu0
    %v3939 = vadd.f32 %v3926, %v3938
    %v3940 = vpop.f32.mrf.mxu0
    %3941 = vdwg.mxu0
    %3942 = vmatpush.bf16.msra.mxu0 %v2665
    %3943 = vmatpush.bf16.msra.mxu0 %v2664
    %3944 = vmatpush.bf16.msra.mxu0 %v2663
    %3945 = vmatpush.bf16.msra.mxu0 %v2662
    %3946 = vmatpush.bf16.msra.mxu0 %v2661
    %3947 = vmatpush.bf16.msra.mxu0 %v2660
    %3948 = vmatpush.bf16.msra.mxu0 %v2659
    %3949 = vmatpush.bf16.msra.mxu0 %v2658
    %3950 = vmatmul.bf16.gmra.mxu0 %v3888
    %v3951 = vpop.f32.mrf.mxu0
    %v3952 = vadd.f32 %v3939, %v3951
    %v3953 = vpop.f32.mrf.mxu0
    %3954 = vdwg.mxu0
    %3955 = vmatpush.bf16.msra.mxu0 %v2673
    %3956 = vmatpush.bf16.msra.mxu0 %v2672
    %3957 = vmatpush.bf16.msra.mxu0 %v2671
    %3958 = vmatpush.bf16.msra.mxu0 %v2670
    %3959 = vmatpush.bf16.msra.mxu0 %v2669
    %3960 = vmatpush.bf16.msra.mxu0 %v2668
    %3961 = vmatpush.bf16.msra.mxu0 %v2667
    %3962 = vmatpush.bf16.msra.mxu0 %v2666
    %3963 = vmatmul.bf16.gmra.mxu0 %v3889
    %v3964 = vpop.f32.mrf.mxu0
    %v3965 = vadd.f32 %v3952, %v3964
    %v3966 = vpop.f32.mrf.mxu0
    %3967 = vdwg.mxu0
    %3968 = vmatpush.bf16.msra.mxu0 %v2681
    %3969 = vmatpush.bf16.msra.mxu0 %v2680
    %3970 = vmatpush.bf16.msra.mxu0 %v2679
    %3971 = vmatpush.bf16.msra.mxu0 %v2678
    %3972 = vmatpush.bf16.msra.mxu0 %v2677
    %3973 = vmatpush.bf16.msra.mxu0 %v2676
    %3974 = vmatpush.bf16.msra.mxu0 %v2675
    %3975 = vmatpush.bf16.msra.mxu0 %v2674
    %3976 = vmatmul.bf16.gmra.mxu0 %v3890
    %v3977 = vpop.f32.mrf.mxu0
    %v3978 = vadd.f32 %v3965, %v3977
    %v3979 = vpop.f32.mrf.mxu0
    %3980 = vdwg.mxu0
    %3981 = vmatpush.bf16.msra.mxu0 %v2689
    %3982 = vmatpush.bf16.msra.mxu0 %v2688
    %3983 = vmatpush.bf16.msra.mxu0 %v2687
    %3984 = vmatpush.bf16.msra.mxu0 %v2686
    %3985 = vmatpush.bf16.msra.mxu0 %v2685
    %3986 = vmatpush.bf16.msra.mxu0 %v2684
    %3987 = vmatpush.bf16.msra.mxu0 %v2683
    %3988 = vmatpush.bf16.msra.mxu0 %v2682
    %3989 = vmatmul.bf16.gmra.mxu0 %v3891
    %v3990 = vpop.f32.mrf.mxu0
    %v3991 = vadd.f32 %v3978, %v3990
    %v3992 = vpop.f32.mrf.mxu0
    %3993 = vdwg.mxu0
    %3994 = vmatpush.bf16.msra.mxu0 0
    %3995 = vmatpush.bf16.msra.mxu0 0
    %3996 = vmatpush.bf16.msra.mxu0 0
    %3997 = vmatpush.bf16.msra.mxu0 0
    %3998 = vmatpush.bf16.msra.mxu0 %v2693
    %3999 = vmatpush.bf16.msra.mxu0 %v2692
    %4000 = vmatpush.bf16.msra.mxu0 %v2691
    %4001 = vmatpush.bf16.msra.mxu0 %v2690
    %4002 = vmatmul.bf16.gmra.mxu0 %v3901
    %v4003 = vpop.f32.mrf.mxu0
    %v4004 = vadd.f32 %v3991, %v4003
    %v4005 = vpop.f32.mrf.mxu0
    %4006 = vdwg.mxu0
    %4007 = vmatpush.bf16.msra.mxu0 %v3228
    %4008 = vmatpush.bf16.msra.mxu0 %v3227
    %4009 = vmatpush.bf16.msra.mxu0 %v3226
    %4010 = vmatpush.bf16.msra.mxu0 %v3225
    %4011 = vmatpush.bf16.msra.mxu0 %v3224
    %4012 = vmatpush.bf16.msra.mxu0 %v3223
    %4013 = vmatpush.bf16.msra.mxu0 %v3222
    %4014 = vmatpush.bf16.msra.mxu0 %v3221
    %4015 = vmatmul.bf16.gmra.mxu0 %v3885
    %v4016 = vpop.f32.mrf.mxu0
    %v4017 = vadd.f32 0.0, %v4016
    %v4018 = vpop.f32.mrf.mxu0
    %4019 = vdwg.mxu0
    %4020 = vmatpush.bf16.msra.mxu0 %v3236
    %4021 = vmatpush.bf16.msra.mxu0 %v3235
    %4022 = vmatpush.bf16.msra.mxu0 %v3234
    %4023 = vmatpush.bf16.msra.mxu0 %v3233
    %4024 = vmatpush.bf16.msra.mxu0 %v3232
    %4025 = vmatpush.bf16.msra.mxu0 %v3231
    %4026 = vmatpush.bf16.msra.mxu0 %v3230
    %4027 = vmatpush.bf16.msra.mxu0 %v3229
    %4028 = vmatmul.bf16.gmra.mxu0 %v3886
    %v4029 = vpop.f32.mrf.mxu0
    %v4030 = vadd.f32 %v4017, %v4029
    %v4031 = vpop.f32.mrf.mxu0
    %4032 = vdwg.mxu0
    %4033 = vmatpush.bf16.msra.mxu0 %v3244
    %4034 = vmatpush.bf16.msra.mxu0 %v3243
    %4035 = vmatpush.bf16.msra.mxu0 %v3242
    %4036 = vmatpush.bf16.msra.mxu0 %v3241
    %4037 = vmatpush.bf16.msra.mxu0 %v3240
    %4038 = vmatpush.bf16.msra.mxu0 %v3239
    %4039 = vmatpush.bf16.msra.mxu0 %v3238
    %4040 = vmatpush.bf16.msra.mxu0 %v3237
    %4041 = vmatmul.bf16.gmra.mxu0 %v3887
    %v4042 = vpop.f32.mrf.mxu0
    %v4043 = vadd.f32 %v4030, %v4042
    %v4044 = vpop.f32.mrf.mxu0
    %4045 = vdwg.mxu0
    %4046 = vmatpush.bf16.msra.mxu0 %v3252
    %4047 = vmatpush.bf16.msra.mxu0 %v3251
    %4048 = vmatpush.bf16.msra.mxu0 %v3250
    %4049 = vmatpush.bf16.msra.mxu0 %v3249
    %4050 = vmatpush.bf16.msra.mxu0 %v3248
    %4051 = vmatpush.bf16.msra.mxu0 %v3247
    %4052 = vmatpush.bf16.msra.mxu0 %v3246
    %4053 = vmatpush.bf16.msra.mxu0 %v3245
    %4054 = vmatmul.bf16.gmra.mxu0 %v3888
    %v4055 = vpop.f32.mrf.mxu0
    %v4056 = vadd.f32 %v4043, %v4055
    %v4057 = vpop.f32.mrf.mxu0
    %4058 = vdwg.mxu0
    %4059 = vmatpush.bf16.msra.mxu0 %v3260
    %4060 = vmatpush.bf16.msra.mxu0 %v3259
    %4061 = vmatpush.bf16.msra.mxu0 %v3258
    %4062 = vmatpush.bf16.msra.mxu0 %v3257
    %4063 = vmatpush.bf16.msra.mxu0 %v3256
    %4064 = vmatpush.bf16.msra.mxu0 %v3255
    %4065 = vmatpush.bf16.msra.mxu0 %v3254
    %4066 = vmatpush.bf16.msra.mxu0 %v3253
    %4067 = vmatmul.bf16.gmra.mxu0 %v3889
    %v4068 = vpop.f32.mrf.mxu0
    %v4069 = vadd.f32 %v4056, %v4068
    %v4070 = vpop.f32.mrf.mxu0
    %4071 = vdwg.mxu0
    %4072 = vmatpush.bf16.msra.mxu0 %v3268
    %4073 = vmatpush.bf16.msra.mxu0 %v3267
    %4074 = vmatpush.bf16.msra.mxu0 %v3266
    %4075 = vmatpush.bf16.msra.mxu0 %v3265
    %4076 = vmatpush.bf16.msra.mxu0 %v3264
    %4077 = vmatpush.bf16.msra.mxu0 %v3263
    %4078 = vmatpush.bf16.msra.mxu0 %v3262
    %4079 = vmatpush.bf16.msra.mxu0 %v3261
    %4080 = vmatmul.bf16.gmra.mxu0 %v3890
    %v4081 = vpop.f32.mrf.mxu0
    %v4082 = vadd.f32 %v4069, %v4081
    %v4083 = vpop.f32.mrf.mxu0
    %4084 = vdwg.mxu0
    %4085 = vmatpush.bf16.msra.mxu0 %v3276
    %4086 = vmatpush.bf16.msra.mxu0 %v3275
    %4087 = vmatpush.bf16.msra.mxu0 %v3274
    %4088 = vmatpush.bf16.msra.mxu0 %v3273
    %4089 = vmatpush.bf16.msra.mxu0 %v3272
    %4090 = vmatpush.bf16.msra.mxu0 %v3271
    %4091 = vmatpush.bf16.msra.mxu0 %v3270
    %4092 = vmatpush.bf16.msra.mxu0 %v3269
    %4093 = vmatmul.bf16.gmra.mxu0 %v3891
    %v4094 = vpop.f32.mrf.mxu0
    %v4095 = vadd.f32 %v4082, %v4094
    %v4096 = vpop.f32.mrf.mxu0
    %4097 = vdwg.mxu0
    %4098 = vmatpush.bf16.msra.mxu0 0
    %4099 = vmatpush.bf16.msra.mxu0 0
    %4100 = vmatpush.bf16.msra.mxu0 0
    %4101 = vmatpush.bf16.msra.mxu0 0
    %4102 = vmatpush.bf16.msra.mxu0 %v3280
    %4103 = vmatpush.bf16.msra.mxu0 %v3279
    %4104 = vmatpush.bf16.msra.mxu0 %v3278
    %4105 = vmatpush.bf16.msra.mxu0 %v3277
    %4106 = vmatmul.bf16.gmra.mxu0 %v3901
    %v4107 = vpop.f32.mrf.mxu0
    %v4108 = vadd.f32 %v4095, %v4107
    %v4109 = vpop.f32.mrf.mxu0
    %4110 = vdwg.mxu0
    %v4111 = vmax.f32 %v4004, %v4108
    %v4112 = vadd.f32 %v4111, %v3448
    %v4113 = vmax.f32 %v4112, 0.0
    %v4114 = vsel %vm2055, %v2036, %v2020
    %v4115 = vsel %vm2055, %v2057, %v2021
    %v4116 = vsel %vm2037, %v2042, %v2039
    %v4117 = vsel %vm2040, %v2045, %v4116
    %v4118 = vsel %vm2043, %v2048, %v4117
    %v4119 = vsel %vm2046, %v2051, %v4118
    %v4120 = vsel %vm2049, %v2054, %v4119
    %v4121 = vsel %vm2037, %v2061, %v2059
    %v4122 = vsel %vm2040, %v2063, %v4121
    %v4123 = vsel %vm2043, %v2065, %v4122
    %v4124 = vsel %vm2046, %v2067, %v4123
    %v4125 = vsel %vm2049, %v2069, %v4124
    %v4126 = vpack.c.b16 %v4120, %v4114
    %v4127 = vpack.c.b16 %v4125, %v4115
    %v4128 = vrot.slane %v2218, 2
    %v4129 = vrot.slane %v2220, 1
    %v4130 = vsel %vm2055, %v4129, %v4128
    %v4131 = vrot.slane %v2219, 2
    %v4132 = vrot.slane %v2221, 1
    %v4133 = vsel %vm2055, %v4132, %v4131
    %v4134 = vrot.slane %v2224, 7
    %v4135 = vsel %vm2037, %v4134, %v2222
    %v4136 = vrot.slane %v2226, 6
    %v4137 = vsel %vm2040, %v4136, %v4135
    %v4138 = vrot.slane %v2228, 5
    %v4139 = vsel %vm2043, %v4138, %v4137
    %v4140 = vrot.slane %v2230, 4
    %v4141 = vsel %vm2046, %v4140, %v4139
    %v4142 = vrot.slane %v2232, 3
    %v4143 = vsel %vm2049, %v4142, %v4141
    %v4144 = vrot.slane %v2225, 7
    %v4145 = vsel %vm2037, %v4144, %v2223
    %v4146 = vrot.slane %v2227, 6
    %v4147 = vsel %vm2040, %v4146, %v4145
    %v4148 = vrot.slane %v2229, 5
    %v4149 = vsel %vm2043, %v4148, %v4147
    %v4150 = vrot.slane %v2231, 4
    %v4151 = vsel %vm2046, %v4150, %v4149
    %v4152 = vrot.slane %v2233, 3
    %v4153 = vsel %vm2049, %v4152, %v4151
    %v4154 = vpack.c.b16 %v4143, %v4130
    %v4155 = vpack.c.b16 %v4153, %v4133
    %4156 = vrot.lane.b32.xlu0 %v4154, 64
    %v4157 = vpop.permute.xlu0 %4156
    %4158 = vrot.lane.b32.xlu0 %v4155, 64
    %v4159 = vpop.permute.xlu0 %4158
    %v4160 = vsel %vm2108, %v4157, %v4159
    %v4161 = vsel %vm2055, %v3817, %v3816
    %v4162 = vsel %vm2055, %v3824, %v3823
    %v4163 = vsel %vm2037, %v3821, %v3819
    %v4164 = vsel %vm2040, %v2226, %v4163
    %v4165 = vsel %vm2043, %v3830, %v4164
    %v4166 = vsel %vm2046, %v3832, %v4165
    %v4167 = vsel %vm2049, %v3834, %v4166
    %v4168 = vsel %vm2037, %v3828, %v3826
    %v4169 = vsel %vm2040, %v2227, %v4168
    %v4170 = vsel %vm2043, %v3836, %v4169
    %v4171 = vsel %vm2046, %v3838, %v4170
    %v4172 = vsel %vm2049, %v3840, %v4171
    %v4173 = vpack.c.b16 %v4167, %v4161
    %v4174 = vpack.c.b16 %v4172, %v4162
    %v4175 = vsel %vm2055, %v3500, %v3499
    %v4176 = vsel %vm2055, %v3511, %v3510
    %v4177 = vsel %vm2037, %v3504, %v3502
    %v4178 = vsel %vm2040, %v3506, %v4177
    %v4179 = vsel %vm2043, %v3508, %v4178
    %v4180 = vsel %vm2046, %v2230, %v4179
    %v4181 = vsel %vm2049, %v3521, %v4180
    %v4182 = vsel %vm2037, %v3515, %v3513
    %v4183 = vsel %vm2040, %v3517, %v4182
    %v4184 = vsel %vm2043, %v3519, %v4183
    %v4185 = vsel %vm2046, %v2231, %v4184
    %v4186 = vsel %vm2049, %v3523, %v4185
    %v4187 = vpack.c.b16 %v4181, %v4175
    %v4188 = vpack.c.b16 %v4186, %v4176
    %4189 = vrot.lane.b32.xlu0 %v4187, 64
    %v4190 = vpop.permute.xlu0 %4189
    %4191 = vrot.lane.b32.xlu0 %v4188, 64
    %v4192 = vpop.permute.xlu0 %4191
    %v4193 = vsel %vm2108, %v4190, %v4192
    %v4194 = vsel %vm2055, %v2234, %v2218
    %v4195 = vsel %vm2055, %v2248, %v2219
    %v4196 = vsel %vm2037, %v2238, %v2236
    %v4197 = vsel %vm2040, %v2240, %v4196
    %v4198 = vsel %vm2043, %v2242, %v4197
    %v4199 = vsel %vm2046, %v2244, %v4198
    %v4200 = vsel %vm2049, %v2246, %v4199
    %v4201 = vsel %vm2037, %v2252, %v2250
    %v4202 = vsel %vm2040, %v2254, %v4201
    %v4203 = vsel %vm2043, %v2256, %v4202
    %v4204 = vsel %vm2046, %v2258, %v4203
    %v4205 = vsel %vm2049, %v2260, %v4204
    %v4206 = vpack.c.b16 %v4200, %v4194
    %v4207 = vpack.c.b16 %v4205, %v4195
    %v4210 = vsel %vm2265, %v4127, %v4157
    %v4213 = vsel %vm2265, %v4174, %v4190
    %v4216 = vrot.slane %v4126, 3
    %v4217 = vrot.slane %v4210, 3
    %v4218 = vrot.slane %v4160, 3
    %v4219 = vrot.slane %v4173, 3
    %v4220 = vrot.slane %v4213, 3
    %v4221 = vrot.slane %v4193, 3
    %v4222 = vrot.slane %v4206, 3
    %v4223 = vrot.slane %v4207, 3
    %v4232 = vsel %vm2265, %v4223, 0
    %4234 = vmatpush.bf16.msra.mxu0 %v2641
    %4235 = vmatpush.bf16.msra.mxu0 %v2640
    %4236 = vmatpush.bf16.msra.mxu0 %v2639
    %4237 = vmatpush.bf16.msra.mxu0 %v2638
    %4238 = vmatpush.bf16.msra.mxu0 %v2637
    %4239 = vmatpush.bf16.msra.mxu0 %v2636
    %4240 = vmatpush.bf16.msra.mxu0 %v2635
    %4241 = vmatpush.bf16.msra.mxu0 %v2634
    %4242 = vmatmul.bf16.gmra.mxu0 %v4216
    %v4243 = vpop.f32.mrf.mxu0
    %v4244 = vadd.f32 0.0, %v4243
    %v4245 = vpop.f32.mrf.mxu0
    %4246 = vdwg.mxu0
    %4247 = vmatpush.bf16.msra.mxu0 %v2649
    %4248 = vmatpush.bf16.msra.mxu0 %v2648
    %4249 = vmatpush.bf16.msra.mxu0 %v2647
    %4250 = vmatpush.bf16.msra.mxu0 %v2646
    %4251 = vmatpush.bf16.msra.mxu0 %v2645
    %4252 = vmatpush.bf16.msra.mxu0 %v2644
    %4253 = vmatpush.bf16.msra.mxu0 %v2643
    %4254 = vmatpush.bf16.msra.mxu0 %v2642
    %4255 = vmatmul.bf16.gmra.mxu0 %v4217
    %v4256 = vpop.f32.mrf.mxu0
    %v4257 = vadd.f32 %v4244, %v4256
    %v4258 = vpop.f32.mrf.mxu0
    %4259 = vdwg.mxu0
    %4260 = vmatpush.bf16.msra.mxu0 %v2657
    %4261 = vmatpush.bf16.msra.mxu0 %v2656
    %4262 = vmatpush.bf16.msra.mxu0 %v2655
    %4263 = vmatpush.bf16.msra.mxu0 %v2654
    %4264 = vmatpush.bf16.msra.mxu0 %v2653
    %4265 = vmatpush.bf16.msra.mxu0 %v2652
    %4266 = vmatpush.bf16.msra.mxu0 %v2651
    %4267 = vmatpush.bf16.msra.mxu0 %v2650
    %4268 = vmatmul.bf16.gmra.mxu0 %v4218
    %v4269 = vpop.f32.mrf.mxu0
    %v4270 = vadd.f32 %v4257, %v4269
    %v4271 = vpop.f32.mrf.mxu0
    %4272 = vdwg.mxu0
    %4273 = vmatpush.bf16.msra.mxu0 %v2665
    %4274 = vmatpush.bf16.msra.mxu0 %v2664
    %4275 = vmatpush.bf16.msra.mxu0 %v2663
    %4276 = vmatpush.bf16.msra.mxu0 %v2662
    %4277 = vmatpush.bf16.msra.mxu0 %v2661
    %4278 = vmatpush.bf16.msra.mxu0 %v2660
    %4279 = vmatpush.bf16.msra.mxu0 %v2659
    %4280 = vmatpush.bf16.msra.mxu0 %v2658
    %4281 = vmatmul.bf16.gmra.mxu0 %v4219
    %v4282 = vpop.f32.mrf.mxu0
    %v4283 = vadd.f32 %v4270, %v4282
    %v4284 = vpop.f32.mrf.mxu0
    %4285 = vdwg.mxu0
    %4286 = vmatpush.bf16.msra.mxu0 %v2673
    %4287 = vmatpush.bf16.msra.mxu0 %v2672
    %4288 = vmatpush.bf16.msra.mxu0 %v2671
    %4289 = vmatpush.bf16.msra.mxu0 %v2670
    %4290 = vmatpush.bf16.msra.mxu0 %v2669
    %4291 = vmatpush.bf16.msra.mxu0 %v2668
    %4292 = vmatpush.bf16.msra.mxu0 %v2667
    %4293 = vmatpush.bf16.msra.mxu0 %v2666
    %4294 = vmatmul.bf16.gmra.mxu0 %v4220
    %v4295 = vpop.f32.mrf.mxu0
    %v4296 = vadd.f32 %v4283, %v4295
    %v4297 = vpop.f32.mrf.mxu0
    %4298 = vdwg.mxu0
    %4299 = vmatpush.bf16.msra.mxu0 %v2681
    %4300 = vmatpush.bf16.msra.mxu0 %v2680
    %4301 = vmatpush.bf16.msra.mxu0 %v2679
    %4302 = vmatpush.bf16.msra.mxu0 %v2678
    %4303 = vmatpush.bf16.msra.mxu0 %v2677
    %4304 = vmatpush.bf16.msra.mxu0 %v2676
    %4305 = vmatpush.bf16.msra.mxu0 %v2675
    %4306 = vmatpush.bf16.msra.mxu0 %v2674
    %4307 = vmatmul.bf16.gmra.mxu0 %v4221
    %v4308 = vpop.f32.mrf.mxu0
    %v4309 = vadd.f32 %v4296, %v4308
    %v4310 = vpop.f32.mrf.mxu0
    %4311 = vdwg.mxu0
    %4312 = vmatpush.bf16.msra.mxu0 %v2689
    %4313 = vmatpush.bf16.msra.mxu0 %v2688
    %4314 = vmatpush.bf16.msra.mxu0 %v2687
    %4315 = vmatpush.bf16.msra.mxu0 %v2686
    %4316 = vmatpush.bf16.msra.mxu0 %v2685
    %4317 = vmatpush.bf16.msra.mxu0 %v2684
    %4318 = vmatpush.bf16.msra.mxu0 %v2683
    %4319 = vmatpush.bf16.msra.mxu0 %v2682
    %4320 = vmatmul.bf16.gmra.mxu0 %v4222
    %v4321 = vpop.f32.mrf.mxu0
    %v4322 = vadd.f32 %v4309, %v4321
    %v4323 = vpop.f32.mrf.mxu0
    %4324 = vdwg.mxu0
    %4325 = vmatpush.bf16.msra.mxu0 0
    %4326 = vmatpush.bf16.msra.mxu0 0
    %4327 = vmatpush.bf16.msra.mxu0 0
    %4328 = vmatpush.bf16.msra.mxu0 0
    %4329 = vmatpush.bf16.msra.mxu0 %v2693
    %4330 = vmatpush.bf16.msra.mxu0 %v2692
    %4331 = vmatpush.bf16.msra.mxu0 %v2691
    %4332 = vmatpush.bf16.msra.mxu0 %v2690
    %4333 = vmatmul.bf16.gmra.mxu0 %v4232
    %v4334 = vpop.f32.mrf.mxu0
    %v4335 = vadd.f32 %v4322, %v4334
    %v4336 = vpop.f32.mrf.mxu0
    %4337 = vdwg.mxu0
    %4338 = vmatpush.bf16.msra.mxu0 %v3228
    %4339 = vmatpush.bf16.msra.mxu0 %v3227
    %4340 = vmatpush.bf16.msra.mxu0 %v3226
    %4341 = vmatpush.bf16.msra.mxu0 %v3225
    %4342 = vmatpush.bf16.msra.mxu0 %v3224
    %4343 = vmatpush.bf16.msra.mxu0 %v3223
    %4344 = vmatpush.bf16.msra.mxu0 %v3222
    %4345 = vmatpush.bf16.msra.mxu0 %v3221
    %4346 = vmatmul.bf16.gmra.mxu0 %v4216
    %v4347 = vpop.f32.mrf.mxu0
    %v4348 = vadd.f32 0.0, %v4347
    %v4349 = vpop.f32.mrf.mxu0
    %4350 = vdwg.mxu0
    %4351 = vmatpush.bf16.msra.mxu0 %v3236
    %4352 = vmatpush.bf16.msra.mxu0 %v3235
    %4353 = vmatpush.bf16.msra.mxu0 %v3234
    %4354 = vmatpush.bf16.msra.mxu0 %v3233
    %4355 = vmatpush.bf16.msra.mxu0 %v3232
    %4356 = vmatpush.bf16.msra.mxu0 %v3231
    %4357 = vmatpush.bf16.msra.mxu0 %v3230
    %4358 = vmatpush.bf16.msra.mxu0 %v3229
    %4359 = vmatmul.bf16.gmra.mxu0 %v4217
    %v4360 = vpop.f32.mrf.mxu0
    %v4361 = vadd.f32 %v4348, %v4360
    %v4362 = vpop.f32.mrf.mxu0
    %4363 = vdwg.mxu0
    %4364 = vmatpush.bf16.msra.mxu0 %v3244
    %4365 = vmatpush.bf16.msra.mxu0 %v3243
    %4366 = vmatpush.bf16.msra.mxu0 %v3242
    %4367 = vmatpush.bf16.msra.mxu0 %v3241
    %4368 = vmatpush.bf16.msra.mxu0 %v3240
    %4369 = vmatpush.bf16.msra.mxu0 %v3239
    %4370 = vmatpush.bf16.msra.mxu0 %v3238
    %4371 = vmatpush.bf16.msra.mxu0 %v3237
    %4372 = vmatmul.bf16.gmra.mxu0 %v4218
    %v4373 = vpop.f32.mrf.mxu0
    %v4374 = vadd.f32 %v4361, %v4373
    %v4375 = vpop.f32.mrf.mxu0
    %4376 = vdwg.mxu0
    %4377 = vmatpush.bf16.msra.mxu0 %v3252
    %4378 = vmatpush.bf16.msra.mxu0 %v3251
    %4379 = vmatpush.bf16.msra.mxu0 %v3250
    %4380 = vmatpush.bf16.msra.mxu0 %v3249
    %4381 = vmatpush.bf16.msra.mxu0 %v3248
    %4382 = vmatpush.bf16.msra.mxu0 %v3247
    %4383 = vmatpush.bf16.msra.mxu0 %v3246
    %4384 = vmatpush.bf16.msra.mxu0 %v3245
    %4385 = vmatmul.bf16.gmra.mxu0 %v4219
    %v4386 = vpop.f32.mrf.mxu0
    %v4387 = vadd.f32 %v4374, %v4386
    %v4388 = vpop.f32.mrf.mxu0
    %4389 = vdwg.mxu0
    %4390 = vmatpush.bf16.msra.mxu0 %v3260
    %4391 = vmatpush.bf16.msra.mxu0 %v3259
    %4392 = vmatpush.bf16.msra.mxu0 %v3258
    %4393 = vmatpush.bf16.msra.mxu0 %v3257
    %4394 = vmatpush.bf16.msra.mxu0 %v3256
    %4395 = vmatpush.bf16.msra.mxu0 %v3255
    %4396 = vmatpush.bf16.msra.mxu0 %v3254
    %4397 = vmatpush.bf16.msra.mxu0 %v3253
    %4398 = vmatmul.bf16.gmra.mxu0 %v4220
    %v4399 = vpop.f32.mrf.mxu0
    %v4400 = vadd.f32 %v4387, %v4399
    %v4401 = vpop.f32.mrf.mxu0
    %4402 = vdwg.mxu0
    %4403 = vmatpush.bf16.msra.mxu0 %v3268
    %4404 = vmatpush.bf16.msra.mxu0 %v3267
    %4405 = vmatpush.bf16.msra.mxu0 %v3266
    %4406 = vmatpush.bf16.msra.mxu0 %v3265
    %4407 = vmatpush.bf16.msra.mxu0 %v3264
    %4408 = vmatpush.bf16.msra.mxu0 %v3263
    %4409 = vmatpush.bf16.msra.mxu0 %v3262
    %4410 = vmatpush.bf16.msra.mxu0 %v3261
    %4411 = vmatmul.bf16.gmra.mxu0 %v4221
    %v4412 = vpop.f32.mrf.mxu0
    %v4413 = vadd.f32 %v4400, %v4412
    %v4414 = vpop.f32.mrf.mxu0
    %4415 = vdwg.mxu0
    %4416 = vmatpush.bf16.msra.mxu0 %v3276
    %4417 = vmatpush.bf16.msra.mxu0 %v3275
    %4418 = vmatpush.bf16.msra.mxu0 %v3274
    %4419 = vmatpush.bf16.msra.mxu0 %v3273
    %4420 = vmatpush.bf16.msra.mxu0 %v3272
    %4421 = vmatpush.bf16.msra.mxu0 %v3271
    %4422 = vmatpush.bf16.msra.mxu0 %v3270
    %4423 = vmatpush.bf16.msra.mxu0 %v3269
    %4424 = vmatmul.bf16.gmra.mxu0 %v4222
    %v4425 = vpop.f32.mrf.mxu0
    %v4426 = vadd.f32 %v4413, %v4425
    %v4427 = vpop.f32.mrf.mxu0
    %4428 = vdwg.mxu0
    %4429 = vmatpush.bf16.msra.mxu0 0
    %4430 = vmatpush.bf16.msra.mxu0 0
    %4431 = vmatpush.bf16.msra.mxu0 0
    %4432 = vmatpush.bf16.msra.mxu0 0
    %4433 = vmatpush.bf16.msra.mxu0 %v3280
    %4434 = vmatpush.bf16.msra.mxu0 %v3279
    %4435 = vmatpush.bf16.msra.mxu0 %v3278
    %4436 = vmatpush.bf16.msra.mxu0 %v3277
    %4437 = vmatmul.bf16.gmra.mxu0 %v4232
    %v4438 = vpop.f32.mrf.mxu0
    %v4439 = vadd.f32 %v4426, %v4438
    %v4440 = vpop.f32.mrf.mxu0
    %4441 = vdwg.mxu0
    %v4442 = vmax.f32 %v4335, %v4439
    %v4443 = vadd.f32 %v4442, %v3448
    %v4444 = vmax.f32 %v4443, 0.0
    %v4445 = vsel %vm2037, %v4129, %v4128
    %v4446 = vsel %vm2040, %v2222, %v4445
    %v4447 = vsel %vm2043, %v4134, %v4446
    %v4448 = vsel %vm2046, %v4136, %v4447
    %v4449 = vsel %vm2049, %v4138, %v4448
    %v4450 = vsel %vm2052, %v4140, %v4449
    %v4451 = vsel %vm2055, %v4142, %v4450
    %v4452 = vsel %vm2037, %v4132, %v4131
    %v4453 = vsel %vm2040, %v2223, %v4452
    %v4454 = vsel %vm2043, %v4144, %v4453
    %v4455 = vsel %vm2046, %v4146, %v4454
    %v4456 = vsel %vm2049, %v4148, %v4455
    %v4457 = vsel %vm2052, %v4150, %v4456
    %v4458 = vsel %vm2055, %v4152, %v4457
    %v4459 = vpack.c.b16 %v4451, %v4451
    %v4460 = vpack.c.b16 %v4458, %v4458
    %4461 = vrot.lane.b32.xlu0 %v4459, 64
    %v4462 = vpop.permute.xlu0 %4461
    %4463 = vrot.lane.b32.xlu0 %v4460, 64
    %v4464 = vpop.permute.xlu0 %4463
    %v4465 = vsel %vm2108, %v4462, %v4464
    %v4467 = vsel %vm2037, %v3817, %v3816
    %v4468 = vsel %vm2040, %v3819, %v4467
    %v4469 = vsel %vm2043, %v3821, %v4468
    %v4470 = vsel %vm2046, %v2226, %v4469
    %v4471 = vsel %vm2049, %v3830, %v4470
    %v4472 = vsel %vm2052, %v3832, %v4471
    %v4473 = vsel %vm2055, %v3834, %v4472
    %v4474 = vsel %vm2037, %v3824, %v3823
    %v4475 = vsel %vm2040, %v3826, %v4474
    %v4476 = vsel %vm2043, %v3828, %v4475
    %v4477 = vsel %vm2046, %v2227, %v4476
    %v4478 = vsel %vm2049, %v3836, %v4477
    %v4479 = vsel %vm2052, %v3838, %v4478
    %v4480 = vsel %vm2055, %v3840, %v4479
    %v4481 = vpack.c.b16 %v4473, %v4473
    %v4482 = vpack.c.b16 %v4480, %v4480
    %v4484 = vsel %vm2037, %v3500, %v3499
    %v4485 = vsel %vm2040, %v3502, %v4484
    %v4486 = vsel %vm2043, %v3504, %v4485
    %v4487 = vsel %vm2046, %v3506, %v4486
    %v4488 = vsel %vm2049, %v3508, %v4487
    %v4489 = vsel %vm2052, %v2230, %v4488
    %v4490 = vsel %vm2055, %v3521, %v4489
    %v4491 = vsel %vm2037, %v3511, %v3510
    %v4492 = vsel %vm2040, %v3513, %v4491
    %v4493 = vsel %vm2043, %v3515, %v4492
    %v4494 = vsel %vm2046, %v3517, %v4493
    %v4495 = vsel %vm2049, %v3519, %v4494
    %v4496 = vsel %vm2052, %v2231, %v4495
    %v4497 = vsel %vm2055, %v3523, %v4496
    %v4498 = vpack.c.b16 %v4490, %v4490
    %v4499 = vpack.c.b16 %v4497, %v4497
    %4500 = vrot.lane.b32.xlu0 %v4498, 64
    %v4501 = vpop.permute.xlu0 %4500
    %4502 = vrot.lane.b32.xlu0 %v4499, 64
    %v4503 = vpop.permute.xlu0 %4502
    %v4504 = vsel %vm2108, %v4501, %v4503
    %v4514 = vunpack.c.l.b16 %v1972
    %v4515 = vunpack.c.h.b16 %v1972
    %v4516 = vunpack.c.l.b16 %v1973
    %v4517 = vunpack.c.h.b16 %v1973
    %v4518 = vunpack.c.l.b16 %v1974
    %v4519 = vunpack.c.h.b16 %v1974
    %v4520 = vunpack.c.l.b16 %v1975
    %v4521 = vunpack.c.h.b16 %v1975
    %v4522 = vunpack.c.l.b16 %v1976
    %v4523 = vunpack.c.h.b16 %v1976
    %v4524 = vunpack.c.l.b16 %v1977
    %v4525 = vunpack.c.h.b16 %v1977
    %v4526 = vunpack.c.l.b16 %v1978
    %v4527 = vunpack.c.h.b16 %v1978
    %v4528 = vunpack.c.l.b16 %v1979
    %v4529 = vunpack.c.h.b16 %v1979
    %v4530 = vpack.c.b16 %v4514, %v4514
    %v4531 = vpack.c.b16 %v4515, %v4515
    %v4532 = vpack.c.b16 %v4516, %v4516
    %v4533 = vpack.c.b16 %v4517, %v4517
    %v4534 = vpack.c.b16 %v4518, %v4518
    %v4535 = vpack.c.b16 %v4519, %v4519
    %v4536 = vpack.c.b16 %v4520, %v4520
    %v4537 = vpack.c.b16 %v4521, %v4521
    %v4538 = vpack.c.b16 %v4522, %v4522
    %v4539 = vpack.c.b16 %v4523, %v4523
    %v4540 = vpack.c.b16 %v4524, %v4524
    %v4541 = vpack.c.b16 %v4525, %v4525
    %v4542 = vpack.c.b16 %v4526, %v4526
    %v4543 = vpack.c.b16 %v4527, %v4527
    %v4544 = vpack.c.b16 %v4528, %v4528
    %v4545 = vpack.c.b16 %v4529, %v4529
    %v4546 = vunpack.c.l.b16 %v4530
    %v4547 = vunpack.c.l.b16 %v4531
    %v4548 = vunpack.c.l.b16 %v4532
    %v4549 = vunpack.c.l.b16 %v4533
    %v4550 = vunpack.c.l.b16 %v4534
    %v4551 = vunpack.c.l.b16 %v4535
    %v4552 = vunpack.c.l.b16 %v4536
    %v4553 = vunpack.c.l.b16 %v4537
    %v4554 = vunpack.c.l.b16 %v4538
    %v4555 = vunpack.c.l.b16 %v4539
    %v4556 = vunpack.c.l.b16 %v4540
    %v4557 = vunpack.c.l.b16 %v4541
    %v4558 = vunpack.c.l.b16 %v4542
    %v4559 = vunpack.c.l.b16 %v4543
    %v4560 = vunpack.c.l.b16 %v4544
    %v4561 = vunpack.c.l.b16 %v4545
    %v4562 = vrot.slane %v4548, 7
    %v4563 = vsel %vm2037, %v4562, %v4546
    %v4564 = vrot.slane %v4550, 6
    %v4565 = vsel %vm2040, %v4564, %v4563
    %v4566 = vrot.slane %v4552, 5
    %v4567 = vsel %vm2043, %v4566, %v4565
    %v4568 = vrot.slane %v4554, 4
    %v4569 = vsel %vm2046, %v4568, %v4567
    %v4570 = vrot.slane %v4556, 3
    %v4571 = vsel %vm2049, %v4570, %v4569
    %v4572 = vrot.slane %v4558, 2
    %v4573 = vsel %vm2052, %v4572, %v4571
    %v4574 = vrot.slane %v4560, 1
    %v4575 = vsel %vm2055, %v4574, %v4573
    %v4576 = vrot.slane %v4549, 7
    %v4577 = vsel %vm2037, %v4576, %v4547
    %v4578 = vrot.slane %v4551, 6
    %v4579 = vsel %vm2040, %v4578, %v4577
    %v4580 = vrot.slane %v4553, 5
    %v4581 = vsel %vm2043, %v4580, %v4579
    %v4582 = vrot.slane %v4555, 4
    %v4583 = vsel %vm2046, %v4582, %v4581
    %v4584 = vrot.slane %v4557, 3
    %v4585 = vsel %vm2049, %v4584, %v4583
    %v4586 = vrot.slane %v4559, 2
    %v4587 = vsel %vm2052, %v4586, %v4585
    %v4588 = vrot.slane %v4561, 1
    %v4589 = vsel %vm2055, %v4588, %v4587
    %v4590 = vpack.c.b16 %v4575, %v4575
    %v4591 = vpack.c.b16 %v4589, %v4589
    %v4594 = vsel %vm2265, %v2263, %v4462
    %v4598 = vsel %vm2265, %v4482, %v4501
    %v4601 = vsel %vm2265, %v4591, 0
    %4603 = vmatpush.bf16.msra.mxu0 %v2641
    %4604 = vmatpush.bf16.msra.mxu0 %v2640
    %4605 = vmatpush.bf16.msra.mxu0 %v2639
    %4606 = vmatpush.bf16.msra.mxu0 %v2638
    %4607 = vmatpush.bf16.msra.mxu0 %v2637
    %4608 = vmatpush.bf16.msra.mxu0 %v2636
    %4609 = vmatpush.bf16.msra.mxu0 %v2635
    %4610 = vmatpush.bf16.msra.mxu0 %v2634
    %4611 = vmatmul.bf16.gmra.mxu0 %v2262
    %v4612 = vpop.f32.mrf.mxu0
    %v4613 = vadd.f32 0.0, %v4612
    %v4614 = vpop.f32.mrf.mxu0
    %4615 = vdwg.mxu0
    %4616 = vmatpush.bf16.msra.mxu0 %v2649
    %4617 = vmatpush.bf16.msra.mxu0 %v2648
    %4618 = vmatpush.bf16.msra.mxu0 %v2647
    %4619 = vmatpush.bf16.msra.mxu0 %v2646
    %4620 = vmatpush.bf16.msra.mxu0 %v2645
    %4621 = vmatpush.bf16.msra.mxu0 %v2644
    %4622 = vmatpush.bf16.msra.mxu0 %v2643
    %4623 = vmatpush.bf16.msra.mxu0 %v2642
    %4624 = vmatmul.bf16.gmra.mxu0 %v4594
    %v4625 = vpop.f32.mrf.mxu0
    %v4626 = vadd.f32 %v4613, %v4625
    %v4627 = vpop.f32.mrf.mxu0
    %4628 = vdwg.mxu0
    %4629 = vmatpush.bf16.msra.mxu0 %v2657
    %4630 = vmatpush.bf16.msra.mxu0 %v2656
    %4631 = vmatpush.bf16.msra.mxu0 %v2655
    %4632 = vmatpush.bf16.msra.mxu0 %v2654
    %4633 = vmatpush.bf16.msra.mxu0 %v2653
    %4634 = vmatpush.bf16.msra.mxu0 %v2652
    %4635 = vmatpush.bf16.msra.mxu0 %v2651
    %4636 = vmatpush.bf16.msra.mxu0 %v2650
    %4637 = vmatmul.bf16.gmra.mxu0 %v4465
    %v4638 = vpop.f32.mrf.mxu0
    %v4639 = vadd.f32 %v4626, %v4638
    %v4640 = vpop.f32.mrf.mxu0
    %4641 = vdwg.mxu0
    %4642 = vmatpush.bf16.msra.mxu0 %v2665
    %4643 = vmatpush.bf16.msra.mxu0 %v2664
    %4644 = vmatpush.bf16.msra.mxu0 %v2663
    %4645 = vmatpush.bf16.msra.mxu0 %v2662
    %4646 = vmatpush.bf16.msra.mxu0 %v2661
    %4647 = vmatpush.bf16.msra.mxu0 %v2660
    %4648 = vmatpush.bf16.msra.mxu0 %v2659
    %4649 = vmatpush.bf16.msra.mxu0 %v2658
    %4650 = vmatmul.bf16.gmra.mxu0 %v4481
    %v4651 = vpop.f32.mrf.mxu0
    %v4652 = vadd.f32 %v4639, %v4651
    %v4653 = vpop.f32.mrf.mxu0
    %4654 = vdwg.mxu0
    %4655 = vmatpush.bf16.msra.mxu0 %v2673
    %4656 = vmatpush.bf16.msra.mxu0 %v2672
    %4657 = vmatpush.bf16.msra.mxu0 %v2671
    %4658 = vmatpush.bf16.msra.mxu0 %v2670
    %4659 = vmatpush.bf16.msra.mxu0 %v2669
    %4660 = vmatpush.bf16.msra.mxu0 %v2668
    %4661 = vmatpush.bf16.msra.mxu0 %v2667
    %4662 = vmatpush.bf16.msra.mxu0 %v2666
    %4663 = vmatmul.bf16.gmra.mxu0 %v4598
    %v4664 = vpop.f32.mrf.mxu0
    %v4665 = vadd.f32 %v4652, %v4664
    %v4666 = vpop.f32.mrf.mxu0
    %4667 = vdwg.mxu0
    %4668 = vmatpush.bf16.msra.mxu0 %v2681
    %4669 = vmatpush.bf16.msra.mxu0 %v2680
    %4670 = vmatpush.bf16.msra.mxu0 %v2679
    %4671 = vmatpush.bf16.msra.mxu0 %v2678
    %4672 = vmatpush.bf16.msra.mxu0 %v2677
    %4673 = vmatpush.bf16.msra.mxu0 %v2676
    %4674 = vmatpush.bf16.msra.mxu0 %v2675
    %4675 = vmatpush.bf16.msra.mxu0 %v2674
    %4676 = vmatmul.bf16.gmra.mxu0 %v4504
    %v4677 = vpop.f32.mrf.mxu0
    %v4678 = vadd.f32 %v4665, %v4677
    %v4679 = vpop.f32.mrf.mxu0
    %4680 = vdwg.mxu0
    %4681 = vmatpush.bf16.msra.mxu0 %v2689
    %4682 = vmatpush.bf16.msra.mxu0 %v2688
    %4683 = vmatpush.bf16.msra.mxu0 %v2687
    %4684 = vmatpush.bf16.msra.mxu0 %v2686
    %4685 = vmatpush.bf16.msra.mxu0 %v2685
    %4686 = vmatpush.bf16.msra.mxu0 %v2684
    %4687 = vmatpush.bf16.msra.mxu0 %v2683
    %4688 = vmatpush.bf16.msra.mxu0 %v2682
    %4689 = vmatmul.bf16.gmra.mxu0 %v4590
    %v4690 = vpop.f32.mrf.mxu0
    %v4691 = vadd.f32 %v4678, %v4690
    %v4692 = vpop.f32.mrf.mxu0
    %4693 = vdwg.mxu0
    %4694 = vmatpush.bf16.msra.mxu0 0
    %4695 = vmatpush.bf16.msra.mxu0 0
    %4696 = vmatpush.bf16.msra.mxu0 0
    %4697 = vmatpush.bf16.msra.mxu0 0
    %4698 = vmatpush.bf16.msra.mxu0 %v2693
    %4699 = vmatpush.bf16.msra.mxu0 %v2692
    %4700 = vmatpush.bf16.msra.mxu0 %v2691
    %4701 = vmatpush.bf16.msra.mxu0 %v2690
    %4702 = vmatmul.bf16.gmra.mxu0 %v4601
    %v4703 = vpop.f32.mrf.mxu0
    %v4704 = vadd.f32 %v4691, %v4703
    %v4705 = vpop.f32.mrf.mxu0
    %4706 = vdwg.mxu0
    %4707 = vmatpush.bf16.msra.mxu0 %v3228
    %4708 = vmatpush.bf16.msra.mxu0 %v3227
    %4709 = vmatpush.bf16.msra.mxu0 %v3226
    %4710 = vmatpush.bf16.msra.mxu0 %v3225
    %4711 = vmatpush.bf16.msra.mxu0 %v3224
    %4712 = vmatpush.bf16.msra.mxu0 %v3223
    %4713 = vmatpush.bf16.msra.mxu0 %v3222
    %4714 = vmatpush.bf16.msra.mxu0 %v3221
    %4715 = vmatmul.bf16.gmra.mxu0 %v2262
    %v4716 = vpop.f32.mrf.mxu0
    %v4717 = vadd.f32 0.0, %v4716
    %v4718 = vpop.f32.mrf.mxu0
    %4719 = vdwg.mxu0
    %4720 = vmatpush.bf16.msra.mxu0 %v3236
    %4721 = vmatpush.bf16.msra.mxu0 %v3235
    %4722 = vmatpush.bf16.msra.mxu0 %v3234
    %4723 = vmatpush.bf16.msra.mxu0 %v3233
    %4724 = vmatpush.bf16.msra.mxu0 %v3232
    %4725 = vmatpush.bf16.msra.mxu0 %v3231
    %4726 = vmatpush.bf16.msra.mxu0 %v3230
    %4727 = vmatpush.bf16.msra.mxu0 %v3229
    %4728 = vmatmul.bf16.gmra.mxu0 %v4594
    %v4729 = vpop.f32.mrf.mxu0
    %v4730 = vadd.f32 %v4717, %v4729
    %v4731 = vpop.f32.mrf.mxu0
    %4732 = vdwg.mxu0
    %4733 = vmatpush.bf16.msra.mxu0 %v3244
    %4734 = vmatpush.bf16.msra.mxu0 %v3243
    %4735 = vmatpush.bf16.msra.mxu0 %v3242
    %4736 = vmatpush.bf16.msra.mxu0 %v3241
    %4737 = vmatpush.bf16.msra.mxu0 %v3240
    %4738 = vmatpush.bf16.msra.mxu0 %v3239
    %4739 = vmatpush.bf16.msra.mxu0 %v3238
    %4740 = vmatpush.bf16.msra.mxu0 %v3237
    %4741 = vmatmul.bf16.gmra.mxu0 %v4465
    %v4742 = vpop.f32.mrf.mxu0
    %v4743 = vadd.f32 %v4730, %v4742
    %v4744 = vpop.f32.mrf.mxu0
    %4745 = vdwg.mxu0
    %4746 = vmatpush.bf16.msra.mxu0 %v3252
    %4747 = vmatpush.bf16.msra.mxu0 %v3251
    %4748 = vmatpush.bf16.msra.mxu0 %v3250
    %4749 = vmatpush.bf16.msra.mxu0 %v3249
    %4750 = vmatpush.bf16.msra.mxu0 %v3248
    %4751 = vmatpush.bf16.msra.mxu0 %v3247
    %4752 = vmatpush.bf16.msra.mxu0 %v3246
    %4753 = vmatpush.bf16.msra.mxu0 %v3245
    %4754 = vmatmul.bf16.gmra.mxu0 %v4481
    %v4755 = vpop.f32.mrf.mxu0
    %v4756 = vadd.f32 %v4743, %v4755
    %v4757 = vpop.f32.mrf.mxu0
    %4758 = vdwg.mxu0
    %4759 = vmatpush.bf16.msra.mxu0 %v3260
    %4760 = vmatpush.bf16.msra.mxu0 %v3259
    %4761 = vmatpush.bf16.msra.mxu0 %v3258
    %4762 = vmatpush.bf16.msra.mxu0 %v3257
    %4763 = vmatpush.bf16.msra.mxu0 %v3256
    %4764 = vmatpush.bf16.msra.mxu0 %v3255
    %4765 = vmatpush.bf16.msra.mxu0 %v3254
    %4766 = vmatpush.bf16.msra.mxu0 %v3253
    %4767 = vmatmul.bf16.gmra.mxu0 %v4598
    %v4768 = vpop.f32.mrf.mxu0
    %v4769 = vadd.f32 %v4756, %v4768
    %v4770 = vpop.f32.mrf.mxu0
    %4771 = vdwg.mxu0
    %4772 = vmatpush.bf16.msra.mxu0 %v3268
    %4773 = vmatpush.bf16.msra.mxu0 %v3267
    %4774 = vmatpush.bf16.msra.mxu0 %v3266
    %4775 = vmatpush.bf16.msra.mxu0 %v3265
    %4776 = vmatpush.bf16.msra.mxu0 %v3264
    %4777 = vmatpush.bf16.msra.mxu0 %v3263
    %4778 = vmatpush.bf16.msra.mxu0 %v3262
    %4779 = vmatpush.bf16.msra.mxu0 %v3261
    %4780 = vmatmul.bf16.gmra.mxu0 %v4504
    %v4781 = vpop.f32.mrf.mxu0
    %v4782 = vadd.f32 %v4769, %v4781
    %v4783 = vpop.f32.mrf.mxu0
    %4784 = vdwg.mxu0
    %4785 = vmatpush.bf16.msra.mxu0 %v3276
    %4786 = vmatpush.bf16.msra.mxu0 %v3275
    %4787 = vmatpush.bf16.msra.mxu0 %v3274
    %4788 = vmatpush.bf16.msra.mxu0 %v3273
    %4789 = vmatpush.bf16.msra.mxu0 %v3272
    %4790 = vmatpush.bf16.msra.mxu0 %v3271
    %4791 = vmatpush.bf16.msra.mxu0 %v3270
    %4792 = vmatpush.bf16.msra.mxu0 %v3269
    %4793 = vmatmul.bf16.gmra.mxu0 %v4590
    %v4794 = vpop.f32.mrf.mxu0
    %v4795 = vadd.f32 %v4782, %v4794
    %v4796 = vpop.f32.mrf.mxu0
    %4797 = vdwg.mxu0
    %4798 = vmatpush.bf16.msra.mxu0 0
    %4799 = vmatpush.bf16.msra.mxu0 0
    %4800 = vmatpush.bf16.msra.mxu0 0
    %4801 = vmatpush.bf16.msra.mxu0 0
    %4802 = vmatpush.bf16.msra.mxu0 %v3280
    %4803 = vmatpush.bf16.msra.mxu0 %v3279
    %4804 = vmatpush.bf16.msra.mxu0 %v3278
    %4805 = vmatpush.bf16.msra.mxu0 %v3277
    %4806 = vmatmul.bf16.gmra.mxu0 %v4601
    %v4807 = vpop.f32.mrf.mxu0
    %v4808 = vadd.f32 %v4795, %v4807
    %v4809 = vpop.f32.mrf.mxu0
    %4810 = vdwg.mxu0
    %v4811 = vmax.f32 %v4704, %v4808
    %v4812 = vadd.f32 %v4811, %v3448
    %v4813 = vmax.f32 %v4812, 0.0
    %v4814 = vsel %vm2043, %v4129, %v4128
    %v4815 = vsel %vm2046, %v2222, %v4814
    %v4816 = vsel %vm2049, %v4134, %v4815
    %v4817 = vsel %vm2052, %v4136, %v4816
    %v4818 = vsel %vm2055, %v4138, %v4817
    %v4819 = vsel %vm2043, %v4132, %v4131
    %v4820 = vsel %vm2046, %v2223, %v4819
    %v4821 = vsel %vm2049, %v4144, %v4820
    %v4822 = vsel %vm2052, %v4146, %v4821
    %v4823 = vsel %vm2055, %v4148, %v4822
    %v4824 = vsel %vm2037, %v4142, %v4140
    %v4825 = vsel %vm2037, %v4152, %v4150
    %v4826 = vpack.c.b16 %v4824, %v4818
    %v4827 = vpack.c.b16 %v4825, %v4823
    %4828 = vrot.lane.b32.xlu0 %v4826, 64
    %v4829 = vpop.permute.xlu0 %4828
    %4830 = vrot.lane.b32.xlu0 %v4827, 64
    %v4831 = vpop.permute.xlu0 %4830
    %v4832 = vsel %vm2108, %v4829, %v4831
    %v4833 = vsel %vm2043, %v3817, %v3816
    %v4834 = vsel %vm2046, %v3819, %v4833
    %v4835 = vsel %vm2049, %v3821, %v4834
    %v4836 = vsel %vm2052, %v2226, %v4835
    %v4837 = vsel %vm2055, %v3830, %v4836
    %v4838 = vsel %vm2043, %v3824, %v3823
    %v4839 = vsel %vm2046, %v3826, %v4838
    %v4840 = vsel %vm2049, %v3828, %v4839
    %v4841 = vsel %vm2052, %v2227, %v4840
    %v4842 = vsel %vm2055, %v3836, %v4841
    %v4843 = vsel %vm2037, %v3834, %v3832
    %v4844 = vsel %vm2037, %v3840, %v3838
    %v4845 = vpack.c.b16 %v4843, %v4837
    %v4846 = vpack.c.b16 %v4844, %v4842
    %v4847 = vrot.slane %v4546, 6
    %v4848 = vrot.slane %v4548, 5
    %v4849 = vsel %vm2043, %v4848, %v4847
    %v4850 = vrot.slane %v4550, 4
    %v4851 = vsel %vm2046, %v4850, %v4849
    %v4852 = vrot.slane %v4552, 3
    %v4853 = vsel %vm2049, %v4852, %v4851
    %v4854 = vrot.slane %v4554, 2
    %v4855 = vsel %vm2052, %v4854, %v4853
    %v4856 = vrot.slane %v4556, 1
    %v4857 = vsel %vm2055, %v4856, %v4855
    %v4858 = vrot.slane %v4547, 6
    %v4859 = vrot.slane %v4549, 5
    %v4860 = vsel %vm2043, %v4859, %v4858
    %v4861 = vrot.slane %v4551, 4
    %v4862 = vsel %vm2046, %v4861, %v4860
    %v4863 = vrot.slane %v4553, 3
    %v4864 = vsel %vm2049, %v4863, %v4862
    %v4865 = vrot.slane %v4555, 2
    %v4866 = vsel %vm2052, %v4865, %v4864
    %v4867 = vrot.slane %v4557, 1
    %v4868 = vsel %vm2055, %v4867, %v4866
    %v4869 = vrot.slane %v4560, 7
    %v4870 = vsel %vm2037, %v4869, %v4558
    %v4871 = vrot.slane %v4561, 7
    %v4872 = vsel %vm2037, %v4871, %v4559
    %v4873 = vpack.c.b16 %v4870, %v4857
    %v4874 = vpack.c.b16 %v4872, %v4868
    %4875 = vrot.lane.b32.xlu0 %v4873, 64
    %v4876 = vpop.permute.xlu0 %4875
    %4877 = vrot.lane.b32.xlu0 %v4874, 64
    %v4878 = vpop.permute.xlu0 %4877
    %v4879 = vsel %vm2108, %v4876, %v4878
    %v4880 = vsel %vm2043, %v4562, %v4546
    %v4881 = vsel %vm2046, %v4564, %v4880
    %v4882 = vsel %vm2049, %v4566, %v4881
    %v4883 = vsel %vm2052, %v4568, %v4882
    %v4884 = vsel %vm2055, %v4570, %v4883
    %v4885 = vsel %vm2043, %v4576, %v4547
    %v4886 = vsel %vm2046, %v4578, %v4885
    %v4887 = vsel %vm2049, %v4580, %v4886
    %v4888 = vsel %vm2052, %v4582, %v4887
    %v4889 = vsel %vm2055, %v4584, %v4888
    %v4890 = vsel %vm2037, %v4574, %v4572
    %v4891 = vsel %vm2037, %v4588, %v4586
    %v4892 = vpack.c.b16 %v4890, %v4884
    %v4893 = vpack.c.b16 %v4891, %v4889
    %v4896 = vsel %vm2265, %v3545, %v4829
    %v4899 = vsel %vm2265, %v4846, %v4876
    %v4902 = vrot.slane %v4896, 1
    %v4903 = vrot.slane %v4832, 1
    %v4904 = vrot.slane %v4845, 1
    %v4905 = vrot.slane %v4899, 1
    %v4906 = vrot.slane %v4879, 1
    %v4907 = vrot.slane %v4892, 1
    %v4908 = vrot.slane %v4893, 1
    %v4916 = vsel %vm2265, %v4908, 0
    %4918 = vmatpush.bf16.msra.mxu0 %v2641
    %4919 = vmatpush.bf16.msra.mxu0 %v2640
    %4920 = vmatpush.bf16.msra.mxu0 %v2639
    %4921 = vmatpush.bf16.msra.mxu0 %v2638
    %4922 = vmatpush.bf16.msra.mxu0 %v2637
    %4923 = vmatpush.bf16.msra.mxu0 %v2636
    %4924 = vmatpush.bf16.msra.mxu0 %v2635
    %4925 = vmatpush.bf16.msra.mxu0 %v2634
    %4926 = vmatmul.bf16.gmra.mxu0 %v3560
    %v4927 = vpop.f32.mrf.mxu0
    %v4928 = vadd.f32 0.0, %v4927
    %v4929 = vpop.f32.mrf.mxu0
    %4930 = vdwg.mxu0
    %4931 = vmatpush.bf16.msra.mxu0 %v2649
    %4932 = vmatpush.bf16.msra.mxu0 %v2648
    %4933 = vmatpush.bf16.msra.mxu0 %v2647
    %4934 = vmatpush.bf16.msra.mxu0 %v2646
    %4935 = vmatpush.bf16.msra.mxu0 %v2645
    %4936 = vmatpush.bf16.msra.mxu0 %v2644
    %4937 = vmatpush.bf16.msra.mxu0 %v2643
    %4938 = vmatpush.bf16.msra.mxu0 %v2642
    %4939 = vmatmul.bf16.gmra.mxu0 %v4902
    %v4940 = vpop.f32.mrf.mxu0
    %v4941 = vadd.f32 %v4928, %v4940
    %v4942 = vpop.f32.mrf.mxu0
    %4943 = vdwg.mxu0
    %4944 = vmatpush.bf16.msra.mxu0 %v2657
    %4945 = vmatpush.bf16.msra.mxu0 %v2656
    %4946 = vmatpush.bf16.msra.mxu0 %v2655
    %4947 = vmatpush.bf16.msra.mxu0 %v2654
    %4948 = vmatpush.bf16.msra.mxu0 %v2653
    %4949 = vmatpush.bf16.msra.mxu0 %v2652
    %4950 = vmatpush.bf16.msra.mxu0 %v2651
    %4951 = vmatpush.bf16.msra.mxu0 %v2650
    %4952 = vmatmul.bf16.gmra.mxu0 %v4903
    %v4953 = vpop.f32.mrf.mxu0
    %v4954 = vadd.f32 %v4941, %v4953
    %v4955 = vpop.f32.mrf.mxu0
    %4956 = vdwg.mxu0
    %4957 = vmatpush.bf16.msra.mxu0 %v2665
    %4958 = vmatpush.bf16.msra.mxu0 %v2664
    %4959 = vmatpush.bf16.msra.mxu0 %v2663
    %4960 = vmatpush.bf16.msra.mxu0 %v2662
    %4961 = vmatpush.bf16.msra.mxu0 %v2661
    %4962 = vmatpush.bf16.msra.mxu0 %v2660
    %4963 = vmatpush.bf16.msra.mxu0 %v2659
    %4964 = vmatpush.bf16.msra.mxu0 %v2658
    %4965 = vmatmul.bf16.gmra.mxu0 %v4904
    %v4966 = vpop.f32.mrf.mxu0
    %v4967 = vadd.f32 %v4954, %v4966
    %v4968 = vpop.f32.mrf.mxu0
    %4969 = vdwg.mxu0
    %4970 = vmatpush.bf16.msra.mxu0 %v2673
    %4971 = vmatpush.bf16.msra.mxu0 %v2672
    %4972 = vmatpush.bf16.msra.mxu0 %v2671
    %4973 = vmatpush.bf16.msra.mxu0 %v2670
    %4974 = vmatpush.bf16.msra.mxu0 %v2669
    %4975 = vmatpush.bf16.msra.mxu0 %v2668
    %4976 = vmatpush.bf16.msra.mxu0 %v2667
    %4977 = vmatpush.bf16.msra.mxu0 %v2666
    %4978 = vmatmul.bf16.gmra.mxu0 %v4905
    %v4979 = vpop.f32.mrf.mxu0
    %v4980 = vadd.f32 %v4967, %v4979
    %v4981 = vpop.f32.mrf.mxu0
    %4982 = vdwg.mxu0
    %4983 = vmatpush.bf16.msra.mxu0 %v2681
    %4984 = vmatpush.bf16.msra.mxu0 %v2680
    %4985 = vmatpush.bf16.msra.mxu0 %v2679
    %4986 = vmatpush.bf16.msra.mxu0 %v2678
    %4987 = vmatpush.bf16.msra.mxu0 %v2677
    %4988 = vmatpush.bf16.msra.mxu0 %v2676
    %4989 = vmatpush.bf16.msra.mxu0 %v2675
    %4990 = vmatpush.bf16.msra.mxu0 %v2674
    %4991 = vmatmul.bf16.gmra.mxu0 %v4906
    %v4992 = vpop.f32.mrf.mxu0
    %v4993 = vadd.f32 %v4980, %v4992
    %v4994 = vpop.f32.mrf.mxu0
    %4995 = vdwg.mxu0
    %4996 = vmatpush.bf16.msra.mxu0 %v2689
    %4997 = vmatpush.bf16.msra.mxu0 %v2688
    %4998 = vmatpush.bf16.msra.mxu0 %v2687
    %4999 = vmatpush.bf16.msra.mxu0 %v2686
    %5000 = vmatpush.bf16.msra.mxu0 %v2685
    %5001 = vmatpush.bf16.msra.mxu0 %v2684
    %5002 = vmatpush.bf16.msra.mxu0 %v2683
    %5003 = vmatpush.bf16.msra.mxu0 %v2682
    %5004 = vmatmul.bf16.gmra.mxu0 %v4907
    %v5005 = vpop.f32.mrf.mxu0
    %v5006 = vadd.f32 %v4993, %v5005
    %v5007 = vpop.f32.mrf.mxu0
    %5008 = vdwg.mxu0
    %5009 = vmatpush.bf16.msra.mxu0 0
    %5010 = vmatpush.bf16.msra.mxu0 0
    %5011 = vmatpush.bf16.msra.mxu0 0
    %5012 = vmatpush.bf16.msra.mxu0 0
    %5013 = vmatpush.bf16.msra.mxu0 %v2693
    %5014 = vmatpush.bf16.msra.mxu0 %v2692
    %5015 = vmatpush.bf16.msra.mxu0 %v2691
    %5016 = vmatpush.bf16.msra.mxu0 %v2690
    %5017 = vmatmul.bf16.gmra.mxu0 %v4916
    %v5018 = vpop.f32.mrf.mxu0
    %v5019 = vadd.f32 %v5006, %v5018
    %v5020 = vpop.f32.mrf.mxu0
    %5021 = vdwg.mxu0
    %5022 = vmatpush.bf16.msra.mxu0 %v3228
    %5023 = vmatpush.bf16.msra.mxu0 %v3227
    %5024 = vmatpush.bf16.msra.mxu0 %v3226
    %5025 = vmatpush.bf16.msra.mxu0 %v3225
    %5026 = vmatpush.bf16.msra.mxu0 %v3224
    %5027 = vmatpush.bf16.msra.mxu0 %v3223
    %5028 = vmatpush.bf16.msra.mxu0 %v3222
    %5029 = vmatpush.bf16.msra.mxu0 %v3221
    %5030 = vmatmul.bf16.gmra.mxu0 %v3560
    %v5031 = vpop.f32.mrf.mxu0
    %v5032 = vadd.f32 0.0, %v5031
    %v5033 = vpop.f32.mrf.mxu0
    %5034 = vdwg.mxu0
    %5035 = vmatpush.bf16.msra.mxu0 %v3236
    %5036 = vmatpush.bf16.msra.mxu0 %v3235
    %5037 = vmatpush.bf16.msra.mxu0 %v3234
    %5038 = vmatpush.bf16.msra.mxu0 %v3233
    %5039 = vmatpush.bf16.msra.mxu0 %v3232
    %5040 = vmatpush.bf16.msra.mxu0 %v3231
    %5041 = vmatpush.bf16.msra.mxu0 %v3230
    %5042 = vmatpush.bf16.msra.mxu0 %v3229
    %5043 = vmatmul.bf16.gmra.mxu0 %v4902
    %v5044 = vpop.f32.mrf.mxu0
    %v5045 = vadd.f32 %v5032, %v5044
    %v5046 = vpop.f32.mrf.mxu0
    %5047 = vdwg.mxu0
    %5048 = vmatpush.bf16.msra.mxu0 %v3244
    %5049 = vmatpush.bf16.msra.mxu0 %v3243
    %5050 = vmatpush.bf16.msra.mxu0 %v3242
    %5051 = vmatpush.bf16.msra.mxu0 %v3241
    %5052 = vmatpush.bf16.msra.mxu0 %v3240
    %5053 = vmatpush.bf16.msra.mxu0 %v3239
    %5054 = vmatpush.bf16.msra.mxu0 %v3238
    %5055 = vmatpush.bf16.msra.mxu0 %v3237
    %5056 = vmatmul.bf16.gmra.mxu0 %v4903
    %v5057 = vpop.f32.mrf.mxu0
    %v5058 = vadd.f32 %v5045, %v5057
    %v5059 = vpop.f32.mrf.mxu0
    %5060 = vdwg.mxu0
    %5061 = vmatpush.bf16.msra.mxu0 %v3252
    %5062 = vmatpush.bf16.msra.mxu0 %v3251
    %5063 = vmatpush.bf16.msra.mxu0 %v3250
    %5064 = vmatpush.bf16.msra.mxu0 %v3249
    %5065 = vmatpush.bf16.msra.mxu0 %v3248
    %5066 = vmatpush.bf16.msra.mxu0 %v3247
    %5067 = vmatpush.bf16.msra.mxu0 %v3246
    %5068 = vmatpush.bf16.msra.mxu0 %v3245
    %5069 = vmatmul.bf16.gmra.mxu0 %v4904
    %v5070 = vpop.f32.mrf.mxu0
    %v5071 = vadd.f32 %v5058, %v5070
    %v5072 = vpop.f32.mrf.mxu0
    %5073 = vdwg.mxu0
    %5074 = vmatpush.bf16.msra.mxu0 %v3260
    %5075 = vmatpush.bf16.msra.mxu0 %v3259
    %5076 = vmatpush.bf16.msra.mxu0 %v3258
    %5077 = vmatpush.bf16.msra.mxu0 %v3257
    %5078 = vmatpush.bf16.msra.mxu0 %v3256
    %5079 = vmatpush.bf16.msra.mxu0 %v3255
    %5080 = vmatpush.bf16.msra.mxu0 %v3254
    %5081 = vmatpush.bf16.msra.mxu0 %v3253
    %5082 = vmatmul.bf16.gmra.mxu0 %v4905
    %v5083 = vpop.f32.mrf.mxu0
    %v5084 = vadd.f32 %v5071, %v5083
    %v5085 = vpop.f32.mrf.mxu0
    %5086 = vdwg.mxu0
    %5087 = vmatpush.bf16.msra.mxu0 %v3268
    %5088 = vmatpush.bf16.msra.mxu0 %v3267
    %5089 = vmatpush.bf16.msra.mxu0 %v3266
    %5090 = vmatpush.bf16.msra.mxu0 %v3265
    %5091 = vmatpush.bf16.msra.mxu0 %v3264
    %5092 = vmatpush.bf16.msra.mxu0 %v3263
    %5093 = vmatpush.bf16.msra.mxu0 %v3262
    %5094 = vmatpush.bf16.msra.mxu0 %v3261
    %5095 = vmatmul.bf16.gmra.mxu0 %v4906
    %v5096 = vpop.f32.mrf.mxu0
    %v5097 = vadd.f32 %v5084, %v5096
    %v5098 = vpop.f32.mrf.mxu0
    %5099 = vdwg.mxu0
    %5100 = vmatpush.bf16.msra.mxu0 %v3276
    %5101 = vmatpush.bf16.msra.mxu0 %v3275
    %5102 = vmatpush.bf16.msra.mxu0 %v3274
    %5103 = vmatpush.bf16.msra.mxu0 %v3273
    %5104 = vmatpush.bf16.msra.mxu0 %v3272
    %5105 = vmatpush.bf16.msra.mxu0 %v3271
    %5106 = vmatpush.bf16.msra.mxu0 %v3270
    %5107 = vmatpush.bf16.msra.mxu0 %v3269
    %5108 = vmatmul.bf16.gmra.mxu0 %v4907
    %v5109 = vpop.f32.mrf.mxu0
    %v5110 = vadd.f32 %v5097, %v5109
    %v5111 = vpop.f32.mrf.mxu0
    %5112 = vdwg.mxu0
    %5113 = vmatpush.bf16.msra.mxu0 0
    %5114 = vmatpush.bf16.msra.mxu0 0
    %5115 = vmatpush.bf16.msra.mxu0 0
    %5116 = vmatpush.bf16.msra.mxu0 0
    %5117 = vmatpush.bf16.msra.mxu0 %v3280
    %5118 = vmatpush.bf16.msra.mxu0 %v3279
    %5119 = vmatpush.bf16.msra.mxu0 %v3278
    %5120 = vmatpush.bf16.msra.mxu0 %v3277
    %5121 = vmatmul.bf16.gmra.mxu0 %v4916
    %v5122 = vpop.f32.mrf.mxu0
    %v5123 = vadd.f32 %v5110, %v5122
    %v5124 = vpop.f32.mrf.mxu0
    %5125 = vdwg.mxu0
    %v5126 = vmax.f32 %v5019, %v5123
    %v5127 = vadd.f32 %v5126, %v3448
    %v5128 = vmax.f32 %v5127, 0.0
    %v5129 = vsel %vm2049, %v4129, %v4128
    %v5130 = vsel %vm2052, %v2222, %v5129
    %v5131 = vsel %vm2055, %v4134, %v5130
    %v5132 = vsel %vm2049, %v4132, %v4131
    %v5133 = vsel %vm2052, %v2223, %v5132
    %v5134 = vsel %vm2055, %v4144, %v5133
    %v5135 = vsel %vm2037, %v4138, %v4136
    %v5136 = vsel %vm2040, %v4140, %v5135
    %v5137 = vsel %vm2043, %v4142, %v5136
    %v5138 = vsel %vm2037, %v4148, %v4146
    %v5139 = vsel %vm2040, %v4150, %v5138
    %v5140 = vsel %vm2043, %v4152, %v5139
    %v5141 = vpack.c.b16 %v5137, %v5131
    %v5142 = vpack.c.b16 %v5140, %v5134
    %5143 = vrot.lane.b32.xlu0 %v5141, 64
    %v5144 = vpop.permute.xlu0 %5143
    %5145 = vrot.lane.b32.xlu0 %v5142, 64
    %v5146 = vpop.permute.xlu0 %5145
    %v5147 = vsel %vm2108, %v5144, %v5146
    %v5148 = vrot.slane %v4546, 4
    %v5149 = vrot.slane %v4548, 3
    %v5150 = vsel %vm2049, %v5149, %v5148
    %v5151 = vrot.slane %v4550, 2
    %v5152 = vsel %vm2052, %v5151, %v5150
    %v5153 = vrot.slane %v4552, 1
    %v5154 = vsel %vm2055, %v5153, %v5152
    %v5155 = vrot.slane %v4547, 4
    %v5156 = vrot.slane %v4549, 3
    %v5157 = vsel %vm2049, %v5156, %v5155
    %v5158 = vrot.slane %v4551, 2
    %v5159 = vsel %vm2052, %v5158, %v5157
    %v5160 = vrot.slane %v4553, 1
    %v5161 = vsel %vm2055, %v5160, %v5159
    %v5162 = vrot.slane %v4556, 7
    %v5163 = vsel %vm2037, %v5162, %v4554
    %v5164 = vrot.slane %v4558, 6
    %v5165 = vsel %vm2040, %v5164, %v5163
    %v5166 = vrot.slane %v4560, 5
    %v5167 = vsel %vm2043, %v5166, %v5165
    %v5168 = vrot.slane %v4557, 7
    %v5169 = vsel %vm2037, %v5168, %v4555
    %v5170 = vrot.slane %v4559, 6
    %v5171 = vsel %vm2040, %v5170, %v5169
    %v5172 = vrot.slane %v4561, 5
    %v5173 = vsel %vm2043, %v5172, %v5171
    %v5174 = vpack.c.b16 %v5167, %v5154
    %v5175 = vpack.c.b16 %v5173, %v5161
    %v5176 = vsel %vm2049, %v4848, %v4847
    %v5177 = vsel %vm2052, %v4850, %v5176
    %v5178 = vsel %vm2055, %v4852, %v5177
    %v5179 = vsel %vm2049, %v4859, %v4858
    %v5180 = vsel %vm2052, %v4861, %v5179
    %v5181 = vsel %vm2055, %v4863, %v5180
    %v5182 = vsel %vm2037, %v4856, %v4854
    %v5183 = vsel %vm2040, %v4558, %v5182
    %v5184 = vsel %vm2043, %v4869, %v5183
    %v5185 = vsel %vm2037, %v4867, %v4865
    %v5186 = vsel %vm2040, %v4559, %v5185
    %v5187 = vsel %vm2043, %v4871, %v5186
    %v5188 = vpack.c.b16 %v5184, %v5178
    %v5189 = vpack.c.b16 %v5187, %v5181
    %5190 = vrot.lane.b32.xlu0 %v5188, 64
    %v5191 = vpop.permute.xlu0 %5190
    %5192 = vrot.lane.b32.xlu0 %v5189, 64
    %v5193 = vpop.permute.xlu0 %5192
    %v5194 = vsel %vm2108, %v5191, %v5193
    %v5195 = vsel %vm2049, %v4562, %v4546
    %v5196 = vsel %vm2052, %v4564, %v5195
    %v5197 = vsel %vm2055, %v4566, %v5196
    %v5198 = vsel %vm2049, %v4576, %v4547
    %v5199 = vsel %vm2052, %v4578, %v5198
    %v5200 = vsel %vm2055, %v4580, %v5199
    %v5201 = vsel %vm2037, %v4570, %v4568
    %v5202 = vsel %vm2040, %v4572, %v5201
    %v5203 = vsel %vm2043, %v4574, %v5202
    %v5204 = vsel %vm2037, %v4584, %v4582
    %v5205 = vsel %vm2040, %v4586, %v5204
    %v5206 = vsel %vm2043, %v4588, %v5205
    %v5207 = vpack.c.b16 %v5203, %v5197
    %v5208 = vpack.c.b16 %v5206, %v5200
    %v5211 = vsel %vm2265, %v3876, %v5144
    %v5214 = vsel %vm2265, %v5175, %v5191
    %v5217 = vrot.slane %v5211, 2
    %v5218 = vrot.slane %v5147, 2
    %v5219 = vrot.slane %v5174, 2
    %v5220 = vrot.slane %v5214, 2
    %v5221 = vrot.slane %v5194, 2
    %v5222 = vrot.slane %v5207, 2
    %v5223 = vrot.slane %v5208, 2
    %v5231 = vsel %vm2265, %v5223, 0
    %5233 = vmatpush.bf16.msra.mxu0 %v2641
    %5234 = vmatpush.bf16.msra.mxu0 %v2640
    %5235 = vmatpush.bf16.msra.mxu0 %v2639
    %5236 = vmatpush.bf16.msra.mxu0 %v2638
    %5237 = vmatpush.bf16.msra.mxu0 %v2637
    %5238 = vmatpush.bf16.msra.mxu0 %v2636
    %5239 = vmatpush.bf16.msra.mxu0 %v2635
    %5240 = vmatpush.bf16.msra.mxu0 %v2634
    %5241 = vmatmul.bf16.gmra.mxu0 %v3891
    %v5242 = vpop.f32.mrf.mxu0
    %v5243 = vadd.f32 0.0, %v5242
    %v5244 = vpop.f32.mrf.mxu0
    %5245 = vdwg.mxu0
    %5246 = vmatpush.bf16.msra.mxu0 %v2649
    %5247 = vmatpush.bf16.msra.mxu0 %v2648
    %5248 = vmatpush.bf16.msra.mxu0 %v2647
    %5249 = vmatpush.bf16.msra.mxu0 %v2646
    %5250 = vmatpush.bf16.msra.mxu0 %v2645
    %5251 = vmatpush.bf16.msra.mxu0 %v2644
    %5252 = vmatpush.bf16.msra.mxu0 %v2643
    %5253 = vmatpush.bf16.msra.mxu0 %v2642
    %5254 = vmatmul.bf16.gmra.mxu0 %v5217
    %v5255 = vpop.f32.mrf.mxu0
    %v5256 = vadd.f32 %v5243, %v5255
    %v5257 = vpop.f32.mrf.mxu0
    %5258 = vdwg.mxu0
    %5259 = vmatpush.bf16.msra.mxu0 %v2657
    %5260 = vmatpush.bf16.msra.mxu0 %v2656
    %5261 = vmatpush.bf16.msra.mxu0 %v2655
    %5262 = vmatpush.bf16.msra.mxu0 %v2654
    %5263 = vmatpush.bf16.msra.mxu0 %v2653
    %5264 = vmatpush.bf16.msra.mxu0 %v2652
    %5265 = vmatpush.bf16.msra.mxu0 %v2651
    %5266 = vmatpush.bf16.msra.mxu0 %v2650
    %5267 = vmatmul.bf16.gmra.mxu0 %v5218
    %v5268 = vpop.f32.mrf.mxu0
    %v5269 = vadd.f32 %v5256, %v5268
    %v5270 = vpop.f32.mrf.mxu0
    %5271 = vdwg.mxu0
    %5272 = vmatpush.bf16.msra.mxu0 %v2665
    %5273 = vmatpush.bf16.msra.mxu0 %v2664
    %5274 = vmatpush.bf16.msra.mxu0 %v2663
    %5275 = vmatpush.bf16.msra.mxu0 %v2662
    %5276 = vmatpush.bf16.msra.mxu0 %v2661
    %5277 = vmatpush.bf16.msra.mxu0 %v2660
    %5278 = vmatpush.bf16.msra.mxu0 %v2659
    %5279 = vmatpush.bf16.msra.mxu0 %v2658
    %5280 = vmatmul.bf16.gmra.mxu0 %v5219
    %v5281 = vpop.f32.mrf.mxu0
    %v5282 = vadd.f32 %v5269, %v5281
    %v5283 = vpop.f32.mrf.mxu0
    %5284 = vdwg.mxu0
    %5285 = vmatpush.bf16.msra.mxu0 %v2673
    %5286 = vmatpush.bf16.msra.mxu0 %v2672
    %5287 = vmatpush.bf16.msra.mxu0 %v2671
    %5288 = vmatpush.bf16.msra.mxu0 %v2670
    %5289 = vmatpush.bf16.msra.mxu0 %v2669
    %5290 = vmatpush.bf16.msra.mxu0 %v2668
    %5291 = vmatpush.bf16.msra.mxu0 %v2667
    %5292 = vmatpush.bf16.msra.mxu0 %v2666
    %5293 = vmatmul.bf16.gmra.mxu0 %v5220
    %v5294 = vpop.f32.mrf.mxu0
    %v5295 = vadd.f32 %v5282, %v5294
    %v5296 = vpop.f32.mrf.mxu0
    %5297 = vdwg.mxu0
    %5298 = vmatpush.bf16.msra.mxu0 %v2681
    %5299 = vmatpush.bf16.msra.mxu0 %v2680
    %5300 = vmatpush.bf16.msra.mxu0 %v2679
    %5301 = vmatpush.bf16.msra.mxu0 %v2678
    %5302 = vmatpush.bf16.msra.mxu0 %v2677
    %5303 = vmatpush.bf16.msra.mxu0 %v2676
    %5304 = vmatpush.bf16.msra.mxu0 %v2675
    %5305 = vmatpush.bf16.msra.mxu0 %v2674
    %5306 = vmatmul.bf16.gmra.mxu0 %v5221
    %v5307 = vpop.f32.mrf.mxu0
    %v5308 = vadd.f32 %v5295, %v5307
    %v5309 = vpop.f32.mrf.mxu0
    %5310 = vdwg.mxu0
    %5311 = vmatpush.bf16.msra.mxu0 %v2689
    %5312 = vmatpush.bf16.msra.mxu0 %v2688
    %5313 = vmatpush.bf16.msra.mxu0 %v2687
    %5314 = vmatpush.bf16.msra.mxu0 %v2686
    %5315 = vmatpush.bf16.msra.mxu0 %v2685
    %5316 = vmatpush.bf16.msra.mxu0 %v2684
    %5317 = vmatpush.bf16.msra.mxu0 %v2683
    %5318 = vmatpush.bf16.msra.mxu0 %v2682
    %5319 = vmatmul.bf16.gmra.mxu0 %v5222
    %v5320 = vpop.f32.mrf.mxu0
    %v5321 = vadd.f32 %v5308, %v5320
    %v5322 = vpop.f32.mrf.mxu0
    %5323 = vdwg.mxu0
    %5324 = vmatpush.bf16.msra.mxu0 0
    %5325 = vmatpush.bf16.msra.mxu0 0
    %5326 = vmatpush.bf16.msra.mxu0 0
    %5327 = vmatpush.bf16.msra.mxu0 0
    %5328 = vmatpush.bf16.msra.mxu0 %v2693
    %5329 = vmatpush.bf16.msra.mxu0 %v2692
    %5330 = vmatpush.bf16.msra.mxu0 %v2691
    %5331 = vmatpush.bf16.msra.mxu0 %v2690
    %5332 = vmatmul.bf16.gmra.mxu0 %v5231
    %v5333 = vpop.f32.mrf.mxu0
    %v5334 = vadd.f32 %v5321, %v5333
    %v5335 = vpop.f32.mrf.mxu0
    %5336 = vdwg.mxu0
    %5337 = vmatpush.bf16.msra.mxu0 %v3228
    %5338 = vmatpush.bf16.msra.mxu0 %v3227
    %5339 = vmatpush.bf16.msra.mxu0 %v3226
    %5340 = vmatpush.bf16.msra.mxu0 %v3225
    %5341 = vmatpush.bf16.msra.mxu0 %v3224
    %5342 = vmatpush.bf16.msra.mxu0 %v3223
    %5343 = vmatpush.bf16.msra.mxu0 %v3222
    %5344 = vmatpush.bf16.msra.mxu0 %v3221
    %5345 = vmatmul.bf16.gmra.mxu0 %v3891
    %v5346 = vpop.f32.mrf.mxu0
    %v5347 = vadd.f32 0.0, %v5346
    %v5348 = vpop.f32.mrf.mxu0
    %5349 = vdwg.mxu0
    %5350 = vmatpush.bf16.msra.mxu0 %v3236
    %5351 = vmatpush.bf16.msra.mxu0 %v3235
    %5352 = vmatpush.bf16.msra.mxu0 %v3234
    %5353 = vmatpush.bf16.msra.mxu0 %v3233
    %5354 = vmatpush.bf16.msra.mxu0 %v3232
    %5355 = vmatpush.bf16.msra.mxu0 %v3231
    %5356 = vmatpush.bf16.msra.mxu0 %v3230
    %5357 = vmatpush.bf16.msra.mxu0 %v3229
    %5358 = vmatmul.bf16.gmra.mxu0 %v5217
    %v5359 = vpop.f32.mrf.mxu0
    %v5360 = vadd.f32 %v5347, %v5359
    %v5361 = vpop.f32.mrf.mxu0
    %5362 = vdwg.mxu0
    %5363 = vmatpush.bf16.msra.mxu0 %v3244
    %5364 = vmatpush.bf16.msra.mxu0 %v3243
    %5365 = vmatpush.bf16.msra.mxu0 %v3242
    %5366 = vmatpush.bf16.msra.mxu0 %v3241
    %5367 = vmatpush.bf16.msra.mxu0 %v3240
    %5368 = vmatpush.bf16.msra.mxu0 %v3239
    %5369 = vmatpush.bf16.msra.mxu0 %v3238
    %5370 = vmatpush.bf16.msra.mxu0 %v3237
    %5371 = vmatmul.bf16.gmra.mxu0 %v5218
    %v5372 = vpop.f32.mrf.mxu0
    %v5373 = vadd.f32 %v5360, %v5372
    %v5374 = vpop.f32.mrf.mxu0
    %5375 = vdwg.mxu0
    %5376 = vmatpush.bf16.msra.mxu0 %v3252
    %5377 = vmatpush.bf16.msra.mxu0 %v3251
    %5378 = vmatpush.bf16.msra.mxu0 %v3250
    %5379 = vmatpush.bf16.msra.mxu0 %v3249
    %5380 = vmatpush.bf16.msra.mxu0 %v3248
    %5381 = vmatpush.bf16.msra.mxu0 %v3247
    %5382 = vmatpush.bf16.msra.mxu0 %v3246
    %5383 = vmatpush.bf16.msra.mxu0 %v3245
    %5384 = vmatmul.bf16.gmra.mxu0 %v5219
    %v5385 = vpop.f32.mrf.mxu0
    %v5386 = vadd.f32 %v5373, %v5385
    %v5387 = vpop.f32.mrf.mxu0
    %5388 = vdwg.mxu0
    %5389 = vmatpush.bf16.msra.mxu0 %v3260
    %5390 = vmatpush.bf16.msra.mxu0 %v3259
    %5391 = vmatpush.bf16.msra.mxu0 %v3258
    %5392 = vmatpush.bf16.msra.mxu0 %v3257
    %5393 = vmatpush.bf16.msra.mxu0 %v3256
    %5394 = vmatpush.bf16.msra.mxu0 %v3255
    %5395 = vmatpush.bf16.msra.mxu0 %v3254
    %5396 = vmatpush.bf16.msra.mxu0 %v3253
    %5397 = vmatmul.bf16.gmra.mxu0 %v5220
    %v5398 = vpop.f32.mrf.mxu0
    %v5399 = vadd.f32 %v5386, %v5398
    %v5400 = vpop.f32.mrf.mxu0
    %5401 = vdwg.mxu0
    %5402 = vmatpush.bf16.msra.mxu0 %v3268
    %5403 = vmatpush.bf16.msra.mxu0 %v3267
    %5404 = vmatpush.bf16.msra.mxu0 %v3266
    %5405 = vmatpush.bf16.msra.mxu0 %v3265
    %5406 = vmatpush.bf16.msra.mxu0 %v3264
    %5407 = vmatpush.bf16.msra.mxu0 %v3263
    %5408 = vmatpush.bf16.msra.mxu0 %v3262
    %5409 = vmatpush.bf16.msra.mxu0 %v3261
    %5410 = vmatmul.bf16.gmra.mxu0 %v5221
    %v5411 = vpop.f32.mrf.mxu0
    %v5412 = vadd.f32 %v5399, %v5411
    %v5413 = vpop.f32.mrf.mxu0
    %5414 = vdwg.mxu0
    %5415 = vmatpush.bf16.msra.mxu0 %v3276
    %5416 = vmatpush.bf16.msra.mxu0 %v3275
    %5417 = vmatpush.bf16.msra.mxu0 %v3274
    %5418 = vmatpush.bf16.msra.mxu0 %v3273
    %5419 = vmatpush.bf16.msra.mxu0 %v3272
    %5420 = vmatpush.bf16.msra.mxu0 %v3271
    %5421 = vmatpush.bf16.msra.mxu0 %v3270
    %5422 = vmatpush.bf16.msra.mxu0 %v3269
    %5423 = vmatmul.bf16.gmra.mxu0 %v5222
    %v5424 = vpop.f32.mrf.mxu0
    %v5425 = vadd.f32 %v5412, %v5424
    %v5426 = vpop.f32.mrf.mxu0
    %5427 = vdwg.mxu0
    %5428 = vmatpush.bf16.msra.mxu0 0
    %5429 = vmatpush.bf16.msra.mxu0 0
    %5430 = vmatpush.bf16.msra.mxu0 0
    %5431 = vmatpush.bf16.msra.mxu0 0
    %5432 = vmatpush.bf16.msra.mxu0 %v3280
    %5433 = vmatpush.bf16.msra.mxu0 %v3279
    %5434 = vmatpush.bf16.msra.mxu0 %v3278
    %5435 = vmatpush.bf16.msra.mxu0 %v3277
    %5436 = vmatmul.bf16.gmra.mxu0 %v5231
    %v5437 = vpop.f32.mrf.mxu0
    %v5438 = vadd.f32 %v5425, %v5437
    %v5439 = vpop.f32.mrf.mxu0
    %5440 = vdwg.mxu0
    %v5441 = vmax.f32 %v5334, %v5438
    %v5442 = vadd.f32 %v5441, %v3448
    %v5443 = vmax.f32 %v5442, 0.0
    %v5444 = vrot.slane %v4546, 2
    %v5445 = vrot.slane %v4548, 1
    %v5446 = vsel %vm2055, %v5445, %v5444
    %v5447 = vrot.slane %v4547, 2
    %v5448 = vrot.slane %v4549, 1
    %v5449 = vsel %vm2055, %v5448, %v5447
    %v5450 = vrot.slane %v4552, 7
    %v5451 = vsel %vm2037, %v5450, %v4550
    %v5452 = vrot.slane %v4554, 6
    %v5453 = vsel %vm2040, %v5452, %v5451
    %v5454 = vrot.slane %v4556, 5
    %v5455 = vsel %vm2043, %v5454, %v5453
    %v5456 = vrot.slane %v4558, 4
    %v5457 = vsel %vm2046, %v5456, %v5455
    %v5458 = vrot.slane %v4560, 3
    %v5459 = vsel %vm2049, %v5458, %v5457
    %v5460 = vrot.slane %v4553, 7
    %v5461 = vsel %vm2037, %v5460, %v4551
    %v5462 = vrot.slane %v4555, 6
    %v5463 = vsel %vm2040, %v5462, %v5461
    %v5464 = vrot.slane %v4557, 5
    %v5465 = vsel %vm2043, %v5464, %v5463
    %v5466 = vrot.slane %v4559, 4
    %v5467 = vsel %vm2046, %v5466, %v5465
    %v5468 = vrot.slane %v4561, 3
    %v5469 = vsel %vm2049, %v5468, %v5467
    %v5470 = vpack.c.b16 %v5459, %v5446
    %v5471 = vpack.c.b16 %v5469, %v5449
    %5472 = vrot.lane.b32.xlu0 %v5470, 64
    %v5473 = vpop.permute.xlu0 %5472
    %5474 = vrot.lane.b32.xlu0 %v5471, 64
    %v5475 = vpop.permute.xlu0 %5474
    %v5476 = vsel %vm2108, %v5473, %v5475
    %v5477 = vsel %vm2055, %v5149, %v5148
    %v5478 = vsel %vm2055, %v5156, %v5155
    %v5479 = vsel %vm2037, %v5153, %v5151
    %v5480 = vsel %vm2040, %v4554, %v5479
    %v5481 = vsel %vm2043, %v5162, %v5480
    %v5482 = vsel %vm2046, %v5164, %v5481
    %v5483 = vsel %vm2049, %v5166, %v5482
    %v5484 = vsel %vm2037, %v5160, %v5158
    %v5485 = vsel %vm2040, %v4555, %v5484
    %v5486 = vsel %vm2043, %v5168, %v5485
    %v5487 = vsel %vm2046, %v5170, %v5486
    %v5488 = vsel %vm2049, %v5172, %v5487
    %v5489 = vpack.c.b16 %v5483, %v5477
    %v5490 = vpack.c.b16 %v5488, %v5478
    %v5491 = vsel %vm2055, %v4848, %v4847
    %v5492 = vsel %vm2055, %v4859, %v4858
    %v5493 = vsel %vm2037, %v4852, %v4850
    %v5494 = vsel %vm2040, %v4854, %v5493
    %v5495 = vsel %vm2043, %v4856, %v5494
    %v5496 = vsel %vm2046, %v4558, %v5495
    %v5497 = vsel %vm2049, %v4869, %v5496
    %v5498 = vsel %vm2037, %v4863, %v4861
    %v5499 = vsel %vm2040, %v4865, %v5498
    %v5500 = vsel %vm2043, %v4867, %v5499
    %v5501 = vsel %vm2046, %v4559, %v5500
    %v5502 = vsel %vm2049, %v4871, %v5501
    %v5503 = vpack.c.b16 %v5497, %v5491
    %v5504 = vpack.c.b16 %v5502, %v5492
    %5505 = vrot.lane.b32.xlu0 %v5503, 64
    %v5506 = vpop.permute.xlu0 %5505
    %5507 = vrot.lane.b32.xlu0 %v5504, 64
    %v5508 = vpop.permute.xlu0 %5507
    %v5509 = vsel %vm2108, %v5506, %v5508
    %v5510 = vsel %vm2055, %v4562, %v4546
    %v5511 = vsel %vm2055, %v4576, %v4547
    %v5512 = vsel %vm2037, %v4566, %v4564
    %v5513 = vsel %vm2040, %v4568, %v5512
    %v5514 = vsel %vm2043, %v4570, %v5513
    %v5515 = vsel %vm2046, %v4572, %v5514
    %v5516 = vsel %vm2049, %v4574, %v5515
    %v5517 = vsel %vm2037, %v4580, %v4578
    %v5518 = vsel %vm2040, %v4582, %v5517
    %v5519 = vsel %vm2043, %v4584, %v5518
    %v5520 = vsel %vm2046, %v4586, %v5519
    %v5521 = vsel %vm2049, %v4588, %v5520
    %v5522 = vpack.c.b16 %v5516, %v5510
    %v5523 = vpack.c.b16 %v5521, %v5511
    %v5526 = vsel %vm2265, %v4207, %v5473
    %v5529 = vsel %vm2265, %v5490, %v5506
    %v5532 = vrot.slane %v5526, 3
    %v5533 = vrot.slane %v5476, 3
    %v5534 = vrot.slane %v5489, 3
    %v5535 = vrot.slane %v5529, 3
    %v5536 = vrot.slane %v5509, 3
    %v5537 = vrot.slane %v5522, 3
    %v5538 = vrot.slane %v5523, 3
    %v5546 = vsel %vm2265, %v5538, 0
    %5548 = vmatpush.bf16.msra.mxu0 %v2641
    %5549 = vmatpush.bf16.msra.mxu0 %v2640
    %5550 = vmatpush.bf16.msra.mxu0 %v2639
    %5551 = vmatpush.bf16.msra.mxu0 %v2638
    %5552 = vmatpush.bf16.msra.mxu0 %v2637
    %5553 = vmatpush.bf16.msra.mxu0 %v2636
    %5554 = vmatpush.bf16.msra.mxu0 %v2635
    %5555 = vmatpush.bf16.msra.mxu0 %v2634
    %5556 = vmatmul.bf16.gmra.mxu0 %v4222
    %v5557 = vpop.f32.mrf.mxu0
    %v5558 = vadd.f32 0.0, %v5557
    %v5559 = vpop.f32.mrf.mxu0
    %5560 = vdwg.mxu0
    %5561 = vmatpush.bf16.msra.mxu0 %v2649
    %5562 = vmatpush.bf16.msra.mxu0 %v2648
    %5563 = vmatpush.bf16.msra.mxu0 %v2647
    %5564 = vmatpush.bf16.msra.mxu0 %v2646
    %5565 = vmatpush.bf16.msra.mxu0 %v2645
    %5566 = vmatpush.bf16.msra.mxu0 %v2644
    %5567 = vmatpush.bf16.msra.mxu0 %v2643
    %5568 = vmatpush.bf16.msra.mxu0 %v2642
    %5569 = vmatmul.bf16.gmra.mxu0 %v5532
    %v5570 = vpop.f32.mrf.mxu0
    %v5571 = vadd.f32 %v5558, %v5570
    %v5572 = vpop.f32.mrf.mxu0
    %5573 = vdwg.mxu0
    %5574 = vmatpush.bf16.msra.mxu0 %v2657
    %5575 = vmatpush.bf16.msra.mxu0 %v2656
    %5576 = vmatpush.bf16.msra.mxu0 %v2655
    %5577 = vmatpush.bf16.msra.mxu0 %v2654
    %5578 = vmatpush.bf16.msra.mxu0 %v2653
    %5579 = vmatpush.bf16.msra.mxu0 %v2652
    %5580 = vmatpush.bf16.msra.mxu0 %v2651
    %5581 = vmatpush.bf16.msra.mxu0 %v2650
    %5582 = vmatmul.bf16.gmra.mxu0 %v5533
    %v5583 = vpop.f32.mrf.mxu0
    %v5584 = vadd.f32 %v5571, %v5583
    %v5585 = vpop.f32.mrf.mxu0
    %5586 = vdwg.mxu0
    %5587 = vmatpush.bf16.msra.mxu0 %v2665
    %5588 = vmatpush.bf16.msra.mxu0 %v2664
    %5589 = vmatpush.bf16.msra.mxu0 %v2663
    %5590 = vmatpush.bf16.msra.mxu0 %v2662
    %5591 = vmatpush.bf16.msra.mxu0 %v2661
    %5592 = vmatpush.bf16.msra.mxu0 %v2660
    %5593 = vmatpush.bf16.msra.mxu0 %v2659
    %5594 = vmatpush.bf16.msra.mxu0 %v2658
    %5595 = vmatmul.bf16.gmra.mxu0 %v5534
    %v5596 = vpop.f32.mrf.mxu0
    %v5597 = vadd.f32 %v5584, %v5596
    %v5598 = vpop.f32.mrf.mxu0
    %5599 = vdwg.mxu0
    %5600 = vmatpush.bf16.msra.mxu0 %v2673
    %5601 = vmatpush.bf16.msra.mxu0 %v2672
    %5602 = vmatpush.bf16.msra.mxu0 %v2671
    %5603 = vmatpush.bf16.msra.mxu0 %v2670
    %5604 = vmatpush.bf16.msra.mxu0 %v2669
    %5605 = vmatpush.bf16.msra.mxu0 %v2668
    %5606 = vmatpush.bf16.msra.mxu0 %v2667
    %5607 = vmatpush.bf16.msra.mxu0 %v2666
    %5608 = vmatmul.bf16.gmra.mxu0 %v5535
    %v5609 = vpop.f32.mrf.mxu0
    %v5610 = vadd.f32 %v5597, %v5609
    %v5611 = vpop.f32.mrf.mxu0
    %5612 = vdwg.mxu0
    %5613 = vmatpush.bf16.msra.mxu0 %v2681
    %5614 = vmatpush.bf16.msra.mxu0 %v2680
    %5615 = vmatpush.bf16.msra.mxu0 %v2679
    %5616 = vmatpush.bf16.msra.mxu0 %v2678
    %5617 = vmatpush.bf16.msra.mxu0 %v2677
    %5618 = vmatpush.bf16.msra.mxu0 %v2676
    %5619 = vmatpush.bf16.msra.mxu0 %v2675
    %5620 = vmatpush.bf16.msra.mxu0 %v2674
    %5621 = vmatmul.bf16.gmra.mxu0 %v5536
    %v5622 = vpop.f32.mrf.mxu0
    %v5623 = vadd.f32 %v5610, %v5622
    %v5624 = vpop.f32.mrf.mxu0
    %5625 = vdwg.mxu0
    %5626 = vmatpush.bf16.msra.mxu0 %v2689
    %5627 = vmatpush.bf16.msra.mxu0 %v2688
    %5628 = vmatpush.bf16.msra.mxu0 %v2687
    %5629 = vmatpush.bf16.msra.mxu0 %v2686
    %5630 = vmatpush.bf16.msra.mxu0 %v2685
    %5631 = vmatpush.bf16.msra.mxu0 %v2684
    %5632 = vmatpush.bf16.msra.mxu0 %v2683
    %5633 = vmatpush.bf16.msra.mxu0 %v2682
    %5634 = vmatmul.bf16.gmra.mxu0 %v5537
    %v5635 = vpop.f32.mrf.mxu0
    %v5636 = vadd.f32 %v5623, %v5635
    %v5637 = vpop.f32.mrf.mxu0
    %5638 = vdwg.mxu0
    %5639 = vmatpush.bf16.msra.mxu0 0
    %5640 = vmatpush.bf16.msra.mxu0 0
    %5641 = vmatpush.bf16.msra.mxu0 0
    %5642 = vmatpush.bf16.msra.mxu0 0
    %5643 = vmatpush.bf16.msra.mxu0 %v2693
    %5644 = vmatpush.bf16.msra.mxu0 %v2692
    %5645 = vmatpush.bf16.msra.mxu0 %v2691
    %5646 = vmatpush.bf16.msra.mxu0 %v2690
    %5647 = vmatmul.bf16.gmra.mxu0 %v5546
    %v5648 = vpop.f32.mrf.mxu0
    %v5649 = vadd.f32 %v5636, %v5648
    %v5650 = vpop.f32.mrf.mxu0
    %5651 = vdwg.mxu0
    %5652 = vmatpush.bf16.msra.mxu0 %v3228
    %5653 = vmatpush.bf16.msra.mxu0 %v3227
    %5654 = vmatpush.bf16.msra.mxu0 %v3226
    %5655 = vmatpush.bf16.msra.mxu0 %v3225
    %5656 = vmatpush.bf16.msra.mxu0 %v3224
    %5657 = vmatpush.bf16.msra.mxu0 %v3223
    %5658 = vmatpush.bf16.msra.mxu0 %v3222
    %5659 = vmatpush.bf16.msra.mxu0 %v3221
    %5660 = vmatmul.bf16.gmra.mxu0 %v4222
    %v5661 = vpop.f32.mrf.mxu0
    %v5662 = vadd.f32 0.0, %v5661
    %v5663 = vpop.f32.mrf.mxu0
    %5664 = vdwg.mxu0
    %5665 = vmatpush.bf16.msra.mxu0 %v3236
    %5666 = vmatpush.bf16.msra.mxu0 %v3235
    %5667 = vmatpush.bf16.msra.mxu0 %v3234
    %5668 = vmatpush.bf16.msra.mxu0 %v3233
    %5669 = vmatpush.bf16.msra.mxu0 %v3232
    %5670 = vmatpush.bf16.msra.mxu0 %v3231
    %5671 = vmatpush.bf16.msra.mxu0 %v3230
    %5672 = vmatpush.bf16.msra.mxu0 %v3229
    %5673 = vmatmul.bf16.gmra.mxu0 %v5532
    %v5674 = vpop.f32.mrf.mxu0
    %v5675 = vadd.f32 %v5662, %v5674
    %v5676 = vpop.f32.mrf.mxu0
    %5677 = vdwg.mxu0
    %5678 = vmatpush.bf16.msra.mxu0 %v3244
    %5679 = vmatpush.bf16.msra.mxu0 %v3243
    %5680 = vmatpush.bf16.msra.mxu0 %v3242
    %5681 = vmatpush.bf16.msra.mxu0 %v3241
    %5682 = vmatpush.bf16.msra.mxu0 %v3240
    %5683 = vmatpush.bf16.msra.mxu0 %v3239
    %5684 = vmatpush.bf16.msra.mxu0 %v3238
    %5685 = vmatpush.bf16.msra.mxu0 %v3237
    %5686 = vmatmul.bf16.gmra.mxu0 %v5533
    %v5687 = vpop.f32.mrf.mxu0
    %v5688 = vadd.f32 %v5675, %v5687
    %v5689 = vpop.f32.mrf.mxu0
    %5690 = vdwg.mxu0
    %5691 = vmatpush.bf16.msra.mxu0 %v3252
    %5692 = vmatpush.bf16.msra.mxu0 %v3251
    %5693 = vmatpush.bf16.msra.mxu0 %v3250
    %5694 = vmatpush.bf16.msra.mxu0 %v3249
    %5695 = vmatpush.bf16.msra.mxu0 %v3248
    %5696 = vmatpush.bf16.msra.mxu0 %v3247
    %5697 = vmatpush.bf16.msra.mxu0 %v3246
    %5698 = vmatpush.bf16.msra.mxu0 %v3245
    %5699 = vmatmul.bf16.gmra.mxu0 %v5534
    %v5700 = vpop.f32.mrf.mxu0
    %v5701 = vadd.f32 %v5688, %v5700
    %v5702 = vpop.f32.mrf.mxu0
    %5703 = vdwg.mxu0
    %5704 = vmatpush.bf16.msra.mxu0 %v3260
    %5705 = vmatpush.bf16.msra.mxu0 %v3259
    %5706 = vmatpush.bf16.msra.mxu0 %v3258
    %5707 = vmatpush.bf16.msra.mxu0 %v3257
    %5708 = vmatpush.bf16.msra.mxu0 %v3256
    %5709 = vmatpush.bf16.msra.mxu0 %v3255
    %5710 = vmatpush.bf16.msra.mxu0 %v3254
    %5711 = vmatpush.bf16.msra.mxu0 %v3253
    %5712 = vmatmul.bf16.gmra.mxu0 %v5535
    %v5713 = vpop.f32.mrf.mxu0
    %v5714 = vadd.f32 %v5701, %v5713
    %v5715 = vpop.f32.mrf.mxu0
    %5716 = vdwg.mxu0
    %5717 = vmatpush.bf16.msra.mxu0 %v3268
    %5718 = vmatpush.bf16.msra.mxu0 %v3267
    %5719 = vmatpush.bf16.msra.mxu0 %v3266
    %5720 = vmatpush.bf16.msra.mxu0 %v3265
    %5721 = vmatpush.bf16.msra.mxu0 %v3264
    %5722 = vmatpush.bf16.msra.mxu0 %v3263
    %5723 = vmatpush.bf16.msra.mxu0 %v3262
    %5724 = vmatpush.bf16.msra.mxu0 %v3261
    %5725 = vmatmul.bf16.gmra.mxu0 %v5536
    %v5726 = vpop.f32.mrf.mxu0
    %v5727 = vadd.f32 %v5714, %v5726
    %v5728 = vpop.f32.mrf.mxu0
    %5729 = vdwg.mxu0
    %5730 = vmatpush.bf16.msra.mxu0 %v3276
    %5731 = vmatpush.bf16.msra.mxu0 %v3275
    %5732 = vmatpush.bf16.msra.mxu0 %v3274
    %5733 = vmatpush.bf16.msra.mxu0 %v3273
    %5734 = vmatpush.bf16.msra.mxu0 %v3272
    %5735 = vmatpush.bf16.msra.mxu0 %v3271
    %5736 = vmatpush.bf16.msra.mxu0 %v3270
    %5737 = vmatpush.bf16.msra.mxu0 %v3269
    %5738 = vmatmul.bf16.gmra.mxu0 %v5537
    %v5739 = vpop.f32.mrf.mxu0
    %v5740 = vadd.f32 %v5727, %v5739
    %v5741 = vpop.f32.mrf.mxu0
    %5742 = vdwg.mxu0
    %5743 = vmatpush.bf16.msra.mxu0 0
    %5744 = vmatpush.bf16.msra.mxu0 0
    %5745 = vmatpush.bf16.msra.mxu0 0
    %5746 = vmatpush.bf16.msra.mxu0 0
    %5747 = vmatpush.bf16.msra.mxu0 %v3280
    %5748 = vmatpush.bf16.msra.mxu0 %v3279
    %5749 = vmatpush.bf16.msra.mxu0 %v3278
    %5750 = vmatpush.bf16.msra.mxu0 %v3277
    %5751 = vmatmul.bf16.gmra.mxu0 %v5546
    %v5752 = vpop.f32.mrf.mxu0
    %v5753 = vadd.f32 %v5740, %v5752
    %v5754 = vpop.f32.mrf.mxu0
    %5755 = vdwg.mxu0
    %v5756 = vmax.f32 %v5649, %v5753
    %v5757 = vadd.f32 %v5756, %v3448
    %v5758 = vmax.f32 %v5757, 0.0
    %v5759 = vmax.f32 %v3451, %v3782
    %v5760 = vpack.c.bf16 %v5759, %v5759
    %v5761 = vmax.f32 %v4113, %v4444
    %v5762 = vpack.c.bf16 %v5761, %v5761
    %v5763 = vmax.f32 %v4813, %v5128
    %v5764 = vpack.c.bf16 %v5763, %v5763
    %v5765 = vmax.f32 %v5443, %v5758
    %v5766 = vpack.c.bf16 %v5765, %v5765
    %v5767 = vld [vmem:[%s7] sm:$0xf]
    %v5768 = vld [vmem:[%s7 + $0x4] sm:$0xf]
    %v5769 = vld [vmem:[%s7 + $0x8] sm:$0xf]
    %v5770 = vld [vmem:[%s7 + $0xc] sm:$0xf]
    %v5771 = vld [vmem:[%s7 + $0x10] sm:$0xf]
    %v5772 = vld [vmem:[%s7 + $0x14] sm:$0xf]
    %v5773 = vld [vmem:[%s7 + $0x18] sm:$0xf]
    %v5774 = vld [vmem:[%s7 + $0x1c] sm:$0xf]
    %v5775 = vld [vmem:[%s7 + $0x20] sm:$0xf]
    %v5776 = vld [vmem:[%s7 + $0x24] sm:$0xf]
    %v5777 = vld [vmem:[%s7 + $0x28] sm:$0xf]
    %v5778 = vld [vmem:[%s7 + $0x2c] sm:$0xf]
    %v5779 = vld [vmem:[%s7 + $0x30] sm:$0xf]
    %v5780 = vld [vmem:[%s7 + $0x34] sm:$0xf]
    %v5781 = vld [vmem:[%s7 + $0x38] sm:$0xf]
    %v5782 = vld [vmem:[%s7 + $0x3c] sm:$0xf]
    %v5783 = vld [vmem:[%s7 + $0x40] sm:$0xf]
    %v5784 = vld [vmem:[%s7 + $0x44] sm:$0xf]
    %v5785 = vld [vmem:[%s7 + $0x48] sm:$0xf]
    %v5786 = vld [vmem:[%s7 + $0x4c] sm:$0xf]
    %v5787 = vld [vmem:[%s7 + $0x50] sm:$0xf]
    %v5788 = vld [vmem:[%s7 + $0x54] sm:$0xf]
    %v5789 = vld [vmem:[%s7 + $0x58] sm:$0xf]
    %v5790 = vld [vmem:[%s7 + $0x5c] sm:$0xf]
    %v5791 = vld [vmem:[%s7 + $0x60] sm:$0xf]
    %v5792 = vld [vmem:[%s7 + $0x64] sm:$0xf]
    %v5793 = vld [vmem:[%s7 + $0x68] sm:$0xf]
    %v5794 = vld [vmem:[%s7 + $0x6c] sm:$0xf]
    %v5795 = vld [vmem:[%s7 + $0x70] sm:$0xf]
    %v5796 = vld [vmem:[%s7 + $0x74] sm:$0xf]
    %v5797 = vld [vmem:[%s7 + $0x78] sm:$0xf]
    %v5798 = vld [vmem:[%s7 + $0x7c] sm:$0xf]
    %v5799 = vld [vmem:[%s7 + $0x80] sm:$0xf]
    %v5800 = vld [vmem:[%s7 + $0x84] sm:$0xf]
    %v5801 = vld [vmem:[%s7 + $0x88] sm:$0xf]
    %v5802 = vld [vmem:[%s7 + $0x8c] sm:$0xf]
    %v5803 = vld [vmem:[%s7 + $0x90] sm:$0xf]
    %v5804 = vld [vmem:[%s7 + $0x94] sm:$0xf]
    %v5805 = vld [vmem:[%s7 + $0x98] sm:$0xf]
    %v5806 = vld [vmem:[%s7 + $0x9c] sm:$0xf]
    %v5807 = vld [vmem:[%s7 + $0xa0] sm:$0xf]
    %v5808 = vld [vmem:[%s7 + $0xa4] sm:$0xf]
    %v5809 = vld [vmem:[%s7 + $0xa8] sm:$0xf]
    %v5810 = vld [vmem:[%s7 + $0xac] sm:$0xf]
    %v5811 = vld [vmem:[%s7 + $0xb0] sm:$0xf]
    %v5812 = vld [vmem:[%s7 + $0xb4] sm:$0xf]
    %v5813 = vld [vmem:[%s7 + $0xb8] sm:$0xf]
    %v5814 = vld [vmem:[%s7 + $0xbc] sm:$0xf]
    %v5815 = vld [vmem:[%s7 + $0xc0] sm:$0xf]
    %v5816 = vld [vmem:[%s7 + $0xc4] sm:$0xf]
    %v5817 = vld [vmem:[%s7 + $0xc8] sm:$0xf]
    %v5818 = vld [vmem:[%s7 + $0xcc] sm:$0xf]
    %v5819 = vld [vmem:[%s7 + $0xd0] sm:$0xf]
    %v5820 = vld [vmem:[%s7 + $0xd4] sm:$0xf]
    %v5821 = vld [vmem:[%s7 + $0xd8] sm:$0xf]
    %v5822 = vld [vmem:[%s7 + $0xdc] sm:$0xf]
    %v5823 = vld [vmem:[%s7 + $0xe0] sm:$0xf]
    %v5824 = vld [vmem:[%s7 + $0xe4] sm:$0xf]
    %v5825 = vld [vmem:[%s7 + $0xe8] sm:$0xf]
    %v5826 = vld [vmem:[%s7 + $0xec] sm:$0xf]
    %v5827 = vld [vmem:[%s7 + $0xf0] sm:$0xf]
    %v5828 = vld [vmem:[%s7 + $0xf4] sm:$0xf]
    %v5829 = vld [vmem:[%s7 + $0xf8] sm:$0xf]
    %v5830 = vld [vmem:[%s7 + $0xfc] sm:$0xf]
    %v5831 = vld [vmem:[%s8] sm:$0x1]
    %v5833 = vperm.slane %v5831, 0
    %v5899 = vunpack.c.l.b16 %v5767
    %v5900 = vunpack.c.l.b16 %v5768
    %v5901 = vunpack.c.l.b16 %v5769
    %v5902 = vunpack.c.l.b16 %v5770
    %v5903 = vunpack.c.l.b16 %v5771
    %v5904 = vunpack.c.l.b16 %v5772
    %v5905 = vunpack.c.l.b16 %v5773
    %v5906 = vunpack.c.l.b16 %v5774
    %v5907 = vunpack.c.l.b16 %v5775
    %v5908 = vunpack.c.l.b16 %v5776
    %v5909 = vunpack.c.l.b16 %v5777
    %v5910 = vunpack.c.l.b16 %v5778
    %v5911 = vunpack.c.l.b16 %v5779
    %v5912 = vunpack.c.l.b16 %v5780
    %v5913 = vunpack.c.l.b16 %v5781
    %v5914 = vunpack.c.l.b16 %v5782
    %v5915 = vunpack.c.l.b16 %v5783
    %v5916 = vunpack.c.l.b16 %v5784
    %v5917 = vunpack.c.l.b16 %v5785
    %v5918 = vunpack.c.l.b16 %v5786
    %v5919 = vunpack.c.l.b16 %v5787
    %v5920 = vunpack.c.l.b16 %v5788
    %v5921 = vunpack.c.l.b16 %v5789
    %v5922 = vunpack.c.l.b16 %v5790
    %v5923 = vunpack.c.l.b16 %v5791
    %v5924 = vunpack.c.l.b16 %v5792
    %v5925 = vunpack.c.l.b16 %v5793
    %v5926 = vunpack.c.l.b16 %v5794
    %v5927 = vunpack.c.l.b16 %v5795
    %v5928 = vunpack.c.l.b16 %v5796
    %v5929 = vunpack.c.l.b16 %v5797
    %v5930 = vunpack.c.l.b16 %v5798
    %v5931 = vunpack.c.l.b16 %v5799
    %v5932 = vunpack.c.l.b16 %v5800
    %v5933 = vunpack.c.l.b16 %v5801
    %v5934 = vunpack.c.l.b16 %v5802
    %v5935 = vunpack.c.l.b16 %v5803
    %v5936 = vunpack.c.l.b16 %v5804
    %v5937 = vunpack.c.l.b16 %v5805
    %v5938 = vunpack.c.l.b16 %v5806
    %v5939 = vunpack.c.l.b16 %v5807
    %v5940 = vunpack.c.l.b16 %v5808
    %v5941 = vunpack.c.l.b16 %v5809
    %v5942 = vunpack.c.l.b16 %v5810
    %v5943 = vunpack.c.l.b16 %v5811
    %v5944 = vunpack.c.l.b16 %v5812
    %v5945 = vunpack.c.l.b16 %v5813
    %v5946 = vunpack.c.l.b16 %v5814
    %v5947 = vunpack.c.l.b16 %v5815
    %v5948 = vunpack.c.l.b16 %v5816
    %v5949 = vunpack.c.l.b16 %v5817
    %v5950 = vunpack.c.l.b16 %v5818
    %v5951 = vunpack.c.l.b16 %v5819
    %v5952 = vunpack.c.l.b16 %v5820
    %v5953 = vunpack.c.l.b16 %v5821
    %v5954 = vunpack.c.l.b16 %v5822
    %v5955 = vunpack.c.l.b16 %v5823
    %v5956 = vunpack.c.l.b16 %v5824
    %v5957 = vunpack.c.l.b16 %v5825
    %v5958 = vunpack.c.l.b16 %v5826
    %v5959 = vunpack.c.l.b16 %v5827
    %v5960 = vunpack.c.l.b16 %v5828
    %v5961 = vunpack.c.l.b16 %v5829
    %v5962 = vunpack.c.l.b16 %v5830
    %v5963 = vpack.c.b16 %v5900, %v5899
    %v5964 = vpack.c.b16 %v5902, %v5901
    %v5965 = vpack.c.b16 %v5904, %v5903
    %v5966 = vpack.c.b16 %v5906, %v5905
    %v5967 = vpack.c.b16 %v5908, %v5907
    %v5968 = vpack.c.b16 %v5910, %v5909
    %v5969 = vpack.c.b16 %v5912, %v5911
    %v5970 = vpack.c.b16 %v5914, %v5913
    %v5971 = vpack.c.b16 %v5916, %v5915
    %v5972 = vpack.c.b16 %v5918, %v5917
    %v5973 = vpack.c.b16 %v5920, %v5919
    %v5974 = vpack.c.b16 %v5922, %v5921
    %v5975 = vpack.c.b16 %v5924, %v5923
    %v5976 = vpack.c.b16 %v5926, %v5925
    %v5977 = vpack.c.b16 %v5928, %v5927
    %v5978 = vpack.c.b16 %v5930, %v5929
    %v5979 = vpack.c.b16 %v5932, %v5931
    %v5980 = vpack.c.b16 %v5934, %v5933
    %v5981 = vpack.c.b16 %v5936, %v5935
    %v5982 = vpack.c.b16 %v5938, %v5937
    %v5983 = vpack.c.b16 %v5940, %v5939
    %v5984 = vpack.c.b16 %v5942, %v5941
    %v5985 = vpack.c.b16 %v5944, %v5943
    %v5986 = vpack.c.b16 %v5946, %v5945
    %v5987 = vpack.c.b16 %v5948, %v5947
    %v5988 = vpack.c.b16 %v5950, %v5949
    %v5989 = vpack.c.b16 %v5952, %v5951
    %v5990 = vpack.c.b16 %v5954, %v5953
    %v5991 = vpack.c.b16 %v5956, %v5955
    %v5992 = vpack.c.b16 %v5958, %v5957
    %v5993 = vpack.c.b16 %v5960, %v5959
    %v5994 = vpack.c.b16 %v5962, %v5961
    %6027 = vmatpush.bf16.msra.mxu0 %v5970
    %6028 = vmatpush.bf16.msra.mxu0 %v5969
    %6029 = vmatpush.bf16.msra.mxu0 %v5968
    %6030 = vmatpush.bf16.msra.mxu0 %v5967
    %6031 = vmatpush.bf16.msra.mxu0 %v5966
    %6032 = vmatpush.bf16.msra.mxu0 %v5965
    %6033 = vmatpush.bf16.msra.mxu0 %v5964
    %6034 = vmatpush.bf16.msra.mxu0 %v5963
    %6035 = vmatmul.bf16.gmra.mxu0 %v5760
    %v6036 = vpop.f32.mrf.mxu0
    %v6037 = vadd.f32 %v5833, %v6036
    %v6038 = vpop.f32.mrf.mxu0
    %6039 = vdwg.mxu0
    %6040 = vmatpush.bf16.msra.mxu0 %v5978
    %6041 = vmatpush.bf16.msra.mxu0 %v5977
    %6042 = vmatpush.bf16.msra.mxu0 %v5976
    %6043 = vmatpush.bf16.msra.mxu0 %v5975
    %6044 = vmatpush.bf16.msra.mxu0 %v5974
    %6045 = vmatpush.bf16.msra.mxu0 %v5973
    %6046 = vmatpush.bf16.msra.mxu0 %v5972
    %6047 = vmatpush.bf16.msra.mxu0 %v5971
    %6048 = vmatmul.bf16.gmra.mxu0 %v5762
    %v6049 = vpop.f32.mrf.mxu0
    %v6050 = vadd.f32 %v6037, %v6049
    %v6051 = vpop.f32.mrf.mxu0
    %6052 = vdwg.mxu0
    %6053 = vmatpush.bf16.msra.mxu0 %v5986
    %6054 = vmatpush.bf16.msra.mxu0 %v5985
    %6055 = vmatpush.bf16.msra.mxu0 %v5984
    %6056 = vmatpush.bf16.msra.mxu0 %v5983
    %6057 = vmatpush.bf16.msra.mxu0 %v5982
    %6058 = vmatpush.bf16.msra.mxu0 %v5981
    %6059 = vmatpush.bf16.msra.mxu0 %v5980
    %6060 = vmatpush.bf16.msra.mxu0 %v5979
    %6061 = vmatmul.bf16.gmra.mxu0 %v5764
    %v6062 = vpop.f32.mrf.mxu0
    %v6063 = vadd.f32 %v6050, %v6062
    %v6064 = vpop.f32.mrf.mxu0
    %6065 = vdwg.mxu0
    %6066 = vmatpush.bf16.msra.mxu0 %v5994
    %6067 = vmatpush.bf16.msra.mxu0 %v5993
    %6068 = vmatpush.bf16.msra.mxu0 %v5992
    %6069 = vmatpush.bf16.msra.mxu0 %v5991
    %6070 = vmatpush.bf16.msra.mxu0 %v5990
    %6071 = vmatpush.bf16.msra.mxu0 %v5989
    %6072 = vmatpush.bf16.msra.mxu0 %v5988
    %6073 = vmatpush.bf16.msra.mxu0 %v5987
    %6074 = vmatmul.bf16.gmra.mxu0 %v5766
    %v6075 = vpop.f32.mrf.mxu0
    %v6076 = vadd.f32 %v6063, %v6075
    %v6077 = vpop.f32.mrf.mxu0
    %6078 = vdwg.mxu0
    %vm6079 = vcmask 80896
    %6080 = vst.msk [vmem:[%s9] sm:$0xff] %vm6079, %v6076
    // Predicated region
    $region46: #{cnn_forward.1} parent=1 // pred_check
      _
    $region47: #{cnn_forward.1} parent=1 // pred_check_branch
      %6082 = sbr.rel (0) target = $region49
    $region48: #{cnn_forward.1} parent=1 // pred_region
      _
    $region49: #{cnn_forward.1} parent=1 // pred_fallthru
      _
    // Predicated region
    $region50: #{cnn_forward.1} parent=1 // pred_check
      _
    $region51: #{cnn_forward.1} parent=1 // pred_check_branch
      %6084 = sbr.rel (0) target = $region53
    $region52: #{cnn_forward.1} parent=1 // pred_region
      _
    $region53: #{cnn_forward.1} parent=1 // pred_fallthru
      _
    %6085 = vsyncpa [#allocation3], 1
    %6086 = vsyncpa [#allocation5], 1

</llo_original>
